<compile_context>
chip_gen: v6e
topology: v6e:2x2x1
jax: 0.10.0
libtpu: 0.0.40
codegen_flags: <defaults>
</compile_context>

<pallas_src>
import functools

import numpy as np

import jax
import jax.numpy as jnp
from jax import lax
from jax.experimental import pallas as pl
from jax.experimental.pallas import tpu as pltpu


# ---------------------------------------------------------------------------
# pltpu.roll sign-convention probe (evaluated eagerly, cached)
# ---------------------------------------------------------------------------
_ROLL_SIGN = None


def _roll_sign():
    """Return s such that pltpu.roll(x, shift=(s*k) % N, axis=0)[i] == x[(i+k) % N]."""
    global _ROLL_SIGN
    if _ROLL_SIGN is not None:
        return _ROLL_SIGN

    def probe(x_ref, o_ref):
        o_ref[...] = pltpu.roll(x_ref[...], shift=1, axis=0)

    try:
        # ensure_compile_time_eval keeps this concrete even if we are (re-)traced.
        with jax.ensure_compile_time_eval():
            x = jnp.broadcast_to(jnp.arange(8, dtype=jnp.float32)[:, None], (8, 128))
            r = pl.pallas_call(
                probe, out_shape=jax.ShapeDtypeStruct((8, 128), jnp.float32))(x)
            v = int(jax.device_get(r)[0, 0])
        # v == 7: jnp.roll convention (out[i] = in[i - shift]) -> sign -1
        # v == 1: out[i] = in[i + shift]                        -> sign +1
        _ROLL_SIGN = 1 if v == 1 else -1
    except Exception:
        _ROLL_SIGN = -1  # jnp.roll convention (the expected one)
    return _ROLL_SIGN


def _padded_width(W):
    # padded width: >= W + 2 zero columns, rounded up to a sublane multiple (8)
    return ((W + 2 + 7) // 8) * 8


def _tpu_vmem_bytes():
    try:
        info = pltpu.get_tpu_info()
        for attr in ("vmem_capacity_bytes", "vmem_size_bytes", "vmem_bytes"):
            v = getattr(info, attr, None)
            if v:
                return int(v)
    except Exception:
        pass
    return 64 * 1024 * 1024  # conservative (v7x per-TensorCore VMEM)


# ---------------------------------------------------------------------------
# Fused C1 kernel
# ---------------------------------------------------------------------------
def _c1_kernel(*refs, n, th, H, W, Wp, roll_sign, compute_dtype):
    halo = n
    TH = th + 2 * halo
    P = TH * Wp
    f32 = jnp.float32
    cdt = compute_dtype

    xc_ref = refs[0]
    xtop = refs[1:1 + halo]                       # halo rows above the tile
    xbot = refs[1 + halo:1 + 2 * halo]            # halo rows below the tile
    w1_ref, b1_ref, w3_ref, b3_ref, o_ref, ybuf = refs[1 + 2 * halo:]

    C1 = xc_ref.shape[-1]
    C2 = w1_ref.shape[-1]

    hi = pl.program_id(1)
    g0 = hi * th - halo                           # image row of local row 0

    def act(v):  # SiLU; exp + approx reciprocal both run on the EUP slot
        return v * pl.reciprocal(1.0 + jnp.exp(-v), approx=True)

    # --- cv1: 1x1 conv + folded BN + SiLU on the contiguous (TH*W, C1) tile ---
    parts = [r[...].reshape(1, W, C1) for r in xtop]
    parts.append(xc_ref[...].reshape(th, W, C1))
    parts += [r[...].reshape(1, W, C1) for r in xbot]
    x_all = jnp.concatenate(parts, axis=0).reshape(TH * W, C1)

    y = jnp.dot(x_all.astype(cdt), w1_ref[...], preferred_element_type=f32)
    y = act(y + b1_ref[...])                      # (TH*W, C2) f32
    y3 = y.reshape(TH, W, C2)
    ybuf[...] = y3                                # residual source (read once later)

    # --- pad width to Wp: valid data in columns [0, W), zeros in [W, Wp) ------
    zpad = jnp.concatenate(
        [y3, jnp.zeros((TH, Wp - W, C2), f32)], axis=1).reshape(P, C2)

    # Validity mask over the flattened padded tile: zero for out-of-image rows
    # (clamped halos / 3x3 zero padding) and for the pad columns, so that roll
    # wrap-around only ever reads zeros.
    li = lax.broadcasted_iota(jnp.int32, (TH, Wp, 1), 0)
    ci = lax.broadcasted_iota(jnp.int32, (TH, Wp, 1), 1)
    grow = g0 + li
    maskP = ((ci < W) & (grow >= 0) & (grow < H)).reshape(P, 1)

    z = jnp.where(maskP, zpad, 0.0)               # layer-0 input, f32 value

    # --- n x (3x3 conv + folded BN + SiLU): roll (XLU) + bf16 MXU matmul ------
    def shifted(v, off):
        # returns s with s[q] = v[(q + off) % P]
        if off == 0:
            return v
        return pltpu.roll(v, shift=(roll_sign * off) % P, axis=0)

    for l in range(n):
        acc = None                                # value accumulation (no scratch)
        for dy in range(3):
            for dx in range(3):
                off = (dy - 1) * Wp + (dx - 1)
                t = jnp.dot(shifted(z, off).astype(cdt),
                            w3_ref[l * 9 + dy * 3 + dx],
                            preferred_element_type=f32)
                acc = t if acc is None else acc + t
        zo = act(acc + b3_ref[l])                 # (P, C2) f32
        # re-zero pads / out-of-image rows only if another 3x3 layer follows
        z = jnp.where(maskP, zo, 0.0) if l < n - 1 else zo

    # --- residual add + store (vreg-aligned row slice + prefix column slice) --
    zc = z.reshape(TH, Wp, C2)[halo:halo + th, :W, :]     # (th, W, C2)
    res = zc + ybuf[halo:halo + th]
    o_ref[...] = res.reshape(1, th, W, C2).astype(o_ref.dtype)


def _pick_tile_h(B, H, W, C1, C2, n, x_isz, w_isz, budget):
    """Largest divisor of H whose fused-tile footprint fits the VMEM budget,
    preferring B * (H/th) >= 2 grid steps so both TensorCores get work."""
    Wp = _padded_width(W)

    def footprint(th):
        TH = th + 2 * n
        P = TH * Wp
        blocks = 2 * x_isz * (th * W * C1 + 2 * n * W * C1)   # input blocks (dbl-buf)
        blocks += 2 * x_isz * th * W * C2                     # output block (dbl-buf)
        weights = 2 * w_isz * (C1 * C2 + 9 * n * C2 * C2) + 2 * 4 * (1 + n) * C2
        scratch = 4 * TH * W * C2                             # ybuf (f32)
        live = 4 * 4 * P * C2                                 # ~4 live f32 tiles
        return blocks + weights + scratch + live

    divs = [d for d in range(1, H + 1) if H % d == 0]
    fitting = [d for d in divs if footprint(d) <= budget]
    th = max(fitting) if fitting else divs[0]
    while B * (H // th) < 2:                                  # megacore occupancy
        smaller = [d for d in divs if d < th]
        if not smaller:
            break
        th = max(smaller)
    return th


def c1_fused(x_nhwc, w1, b1, w3s, b3s, *, tile_h=None, compute_dtype=jnp.bfloat16):
    """Fused C1 forward. x: (B,H,W,C1) NHWC; w1: (C1,C2); b1: (1,C2);
    w3s: (9n,C2,C2) laid out [layer*9 + ky*3 + kx]; b3s: (n,1,C2)."""
    B, H, W, C1 = x_nhwc.shape
    C2 = w1.shape[1]
    assert w1.shape[0] == C1
    assert w3s.shape[0] % 9 == 0
    n = w3s.shape[0] // 9
    assert n >= 1
    halo = n
    Wp = _padded_width(W)
    assert Wp >= W + 2, "roll wrap-around must land in zero pad columns"

    cdt = x_nhwc.dtype if compute_dtype is None else compute_dtype
    w1c = w1.astype(cdt)
    w3c = w3s.astype(cdt)

    vmem_cap = _tpu_vmem_bytes()
    vmem_limit = min(vmem_cap, max(32 * 1024 * 1024, int(0.75 * vmem_cap)))
    budget = vmem_limit // 2

    x_isz = x_nhwc.dtype.itemsize
    w_isz = np.dtype(cdt).itemsize
    th = tile_h if tile_h is not None else _pick_tile_h(
        B, H, W, C1, C2, n, x_isz, w_isz, budget)
    assert H % th == 0
    TH = th + 2 * halo
    HT = H // th

    kernel = functools.partial(_c1_kernel, n=n, th=th, H=H, W=W, Wp=Wp,
                               roll_sign=_roll_sign(), compute_dtype=cdt)

    # TODO(synk): merge the 2n single-row halo fetches into one block per side
    # (needs element-offset halo indexing); left as per-row clamped DMAs.
    in_specs = [pl.BlockSpec((1, th, W, C1), lambda b, h: (b, h, 0, 0))]
    for k in range(halo):       # rows just above the tile (clamped; masked in-kernel)
        in_specs.append(pl.BlockSpec(
            (1, 1, W, C1),
            lambda b, h, k=k: (b, jnp.clip(h * th - halo + k, 0, H - 1), 0, 0)))
    for k in range(halo):       # rows just below the tile
        in_specs.append(pl.BlockSpec(
            (1, 1, W, C1),
            lambda b, h, k=k: (b, jnp.clip(h * th + th + k, 0, H - 1), 0, 0)))
    in_specs += [
        pl.BlockSpec((C1, C2), lambda b, h: (0, 0)),
        pl.BlockSpec((1, C2), lambda b, h: (0, 0)),
        pl.BlockSpec((9 * n, C2, C2), lambda b, h: (0, 0, 0)),
        pl.BlockSpec((n, 1, C2), lambda b, h: (0, 0, 0)),
    ]

    return pl.pallas_call(
        kernel,
        out_shape=jax.ShapeDtypeStruct((B, H, W, C2), x_nhwc.dtype),
        grid=(B, HT),
        in_specs=in_specs,
        out_specs=pl.BlockSpec((1, th, W, C2), lambda b, h: (b, h, 0, 0)),
        scratch_shapes=[
            pltpu.VMEM((TH, W, C2), jnp.float32),   # y (cv1 output / residual)
        ],
        compiler_params=pltpu.CompilerParams(
            dimension_semantics=("parallel", "parallel"),
            vmem_limit_bytes=int(vmem_limit),
        ),
    )(x_nhwc, *([x_nhwc] * (2 * halo)), w1c, b1, w3c, b3s)


# ---------------------------------------------------------------------------
# Parameter construction (deterministic, synthetic) + BN folding
# ---------------------------------------------------------------------------
def fold_bn(w, gamma, beta, mean, var, eps=1e-3):
    # ultralytics Conv uses BatchNorm2d(eps=1e-3); fold the BN scale into the
    # conv weight's output-channel axis, return effective bias.
    scale = gamma * jax.lax.rsqrt(var + eps)
    return (w * scale).astype(jnp.float32), (beta - mean * scale).astype(jnp.float32)


def make_c1_params(key, c1, c2, n=1):
    keys = jax.random.split(key, 5 * (n + 1))
    k = iter(keys)
    w1 = 0.1 * jax.random.normal(next(k), (c1, c2), jnp.float32)
    g = 1.0 + 0.05 * jax.random.normal(next(k), (c2,), jnp.float32)
    b = 0.05 * jax.random.normal(next(k), (c2,), jnp.float32)
    m = 0.05 * jax.random.normal(next(k), (c2,), jnp.float32)
    v = 0.5 + jax.random.uniform(next(k), (c2,), jnp.float32)
    w1e, b1e = fold_bn(w1, g, b, m, v)
    b1e = b1e.reshape(1, c2)

    w3_list, b3_list = [], []
    for _ in range(n):
        w3 = 0.1 * jax.random.normal(next(k), (3, 3, c2, c2), jnp.float32)
        g = 1.0 + 0.05 * jax.random.normal(next(k), (c2,), jnp.float32)
        b = 0.05 * jax.random.normal(next(k), (c2,), jnp.float32)
        m = 0.05 * jax.random.normal(next(k), (c2,), jnp.float32)
        v = 0.5 + jax.random.uniform(next(k), (c2,), jnp.float32)
        w3e, b3e = fold_bn(w3, g, b, m, v)
        w3_list.append(w3e.reshape(9, c2, c2))        # [ky*3 + kx]
        b3_list.append(b3e.reshape(1, c2))
    w3s = jnp.concatenate(w3_list, axis=0)            # (9n, c2, c2)
    b3s = jnp.stack(b3_list, axis=0)                  # (n, 1, c2)
    return w1e, b1e, w3s, b3s


@jax.jit
def c1_forward(x_nchw, params):
    w1, b1, w3s, b3s = params
    x = jnp.transpose(x_nchw, (0, 2, 3, 1))           # NCHW -> NHWC (kernel layout)
    y = c1_fused(x, w1, b1, w3s, b3s)
    return jnp.transpose(y, (0, 3, 1, 2))             # back to NCHW


# ---------------------------------------------------------------------------
# Pure-XLA reference (for correctness check)
# ---------------------------------------------------------------------------
def c1_reference(x_nhwc, w1, b1, w3s, b3s):
    def silu(v):
        return v * jax.nn.sigmoid(v)

    c2 = w1.shape[1]
    n = b3s.shape[0]
    y = silu(jnp.einsum("bhwc,cd->bhwd", x_nhwc, w1) + b1.reshape(1, 1, 1, c2))
    z = y
    for l in range(n):
        w = w3s[l * 9:(l + 1) * 9].reshape(3, 3, c2, c2)   # HWIO
        z = silu(jax.lax.conv_general_dilated(
            z, w, window_strides=(1, 1), padding="SAME",
            dimension_numbers=("NHWC", "HWIO", "NHWC")) + b3s[l].reshape(1, 1, 1, c2))
    return z + y


if __name__ == "__main__":
    _roll_sign()  # evaluate the roll-convention probe eagerly (outside any jit)

    root = jax.random.PRNGKey(0)
    cases = [
        dict(B=2, c1=4, c2=8, H=16, W=16, n=1),
        dict(B=1, c1=8, c2=16, H=16, W=16, n=2),
    ]
    for i, cfg in enumerate(cases):
        root, kx, kp = jax.random.split(root, 3)
        x = jax.random.normal(
            kx, (cfg["B"], cfg["c1"], cfg["H"], cfg["W"]), jnp.float32)  # NCHW
        params = make_c1_params(kp, cfg["c1"], cfg["c2"], n=cfg["n"])
        out = c1_forward(x, params)
        jax.block_until_ready(out)
        assert out.shape == (cfg["B"], cfg["c2"], cfg["H"], cfg["W"])
        ref = jnp.transpose(
            c1_reference(jnp.transpose(x, (0, 2, 3, 1)), *params), (0, 3, 1, 2))
        err = float(jnp.max(jnp.abs(out - ref)))
        assert err < 5e-2, f"case {i}: max abs err = {err}"
    print("KERNEL_OK")
</pallas_src>

<mosaic_0001>
module attributes {stable_mosaic.version = 11 : i64} {
  func.func @probe(%arg0: memref<8x128xf32, #tpu.memory_space<vmem>>, %arg1: memref<8x128xf32, #tpu.memory_space<vmem>>) attributes {dimension_semantics = [], scalar_prefetch = 0 : i64, scratch_operands = 0 : i64, tpu.core_type = #tpu.core_type<tc>} {
    %c0 = arith.constant 0 : index
    %c0_0 = arith.constant 0 : index
    %0 = vector.load %arg0[%c0, %c0_0] : memref<8x128xf32, #tpu.memory_space<vmem>>, vector<8x128xf32>
    %c1_i32 = arith.constant 1 : i32
    %1 = tpu.dynamic_rotate %0 by %c1_i32 dim 0 : vector<8x128xf32>, i32 -> vector<8x128xf32>
    %c0_1 = arith.constant 0 : index
    %c0_2 = arith.constant 0 : index
    %2 = vector.load %arg1[%c0_1, %c0_2] : memref<8x128xf32, #tpu.memory_space<vmem>>, vector<8x128xf32>
    tpu.vector_store %arg1[%c0_1, %c0_2], %1 {strides = array<i32>} : memref<8x128xf32, #tpu.memory_space<vmem>>, vector<8x128xf32>,
    return
  }
}

module attributes {stable_mosaic.version = 11 : i64} {
  func.func @_c1_kernel(%arg0: i32, %arg1: i32, %arg2: memref<1x16x16x4xf32, #tpu.memory_space<vmem>>, %arg3: memref<1x1x16x4xf32, #tpu.memory_space<vmem>>, %arg4: memref<1x1x16x4xf32, #tpu.memory_space<vmem>>, %arg5: memref<4x8xbf16, #tpu.memory_space<vmem>>, %arg6: memref<1x8xf32, #tpu.memory_space<vmem>>, %arg7: memref<9x8x8xbf16, #tpu.memory_space<vmem>>, %arg8: memref<1x1x8xf32, #tpu.memory_space<vmem>>, %arg9: memref<1x16x16x8xf32, #tpu.memory_space<vmem>>, %arg10: memref<18x16x8xf32, #tpu.memory_space<vmem>>) attributes {dimension_semantics = [#tpu.dimension_semantics<parallel>, #tpu.dimension_semantics<parallel>], iteration_bounds = array<i64: 2, 1>, scalar_prefetch = 0 : i64, scratch_operands = 1 : i64, tpu.core_type = #tpu.core_type<tc>, window_params = [{transform_indices = @transform_0, window_bounds = array<i64: 1, 16, 16, 4>}, {transform_indices = @transform_1, window_bounds = array<i64: 1, 1, 16, 4>}, {transform_indices = @transform_2, window_bounds = array<i64: 1, 1, 16, 4>}, {pipeline_mode = #tpu.pipeline_mode<synchronous>, transform_indices = @transform_3, window_bounds = array<i64: 4, 8>}, {pipeline_mode = #tpu.pipeline_mode<synchronous>, transform_indices = @transform_4, window_bounds = array<i64: 1, 8>}, {pipeline_mode = #tpu.pipeline_mode<synchronous>, transform_indices = @transform_5, window_bounds = array<i64: 9, 8, 8>}, {pipeline_mode = #tpu.pipeline_mode<synchronous>, transform_indices = @transform_6, window_bounds = array<i64: 1, 1, 8>}, {transform_indices = @transform_7, window_bounds = array<i64: 1, 16, 16, 8>}]} {
    %c16_i32 = arith.constant 16 : i32
    %0 = arith.muli %arg1, %c16_i32 : i32
    %c1_i32 = arith.constant 1 : i32
    %1 = arith.subi %0, %c1_i32 : i32
    %c0 = arith.constant 0 : index
    %c0_0 = arith.constant 0 : index
    %c0_1 = arith.constant 0 : index
    %c0_2 = arith.constant 0 : index
    %2 = vector.load %arg3[%c0, %c0_0, %c0_1, %c0_2] : memref<1x1x16x4xf32, #tpu.memory_space<vmem>>, vector<1x1x16x4xf32>
    %3 = vector.shape_cast %2 : vector<1x1x16x4xf32> to vector<1x16x4xf32>
    %c0_3 = arith.constant 0 : index
    %c0_4 = arith.constant 0 : index
    %c0_5 = arith.constant 0 : index
    %c0_6 = arith.constant 0 : index
    %4 = vector.load %arg2[%c0_3, %c0_4, %c0_5, %c0_6] : memref<1x16x16x4xf32, #tpu.memory_space<vmem>>, vector<1x16x16x4xf32>
    %5 = vector.shape_cast %4 : vector<1x16x16x4xf32> to vector<16x16x4xf32>
    %c0_7 = arith.constant 0 : index
    %c0_8 = arith.constant 0 : index
    %c0_9 = arith.constant 0 : index
    %c0_10 = arith.constant 0 : index
    %6 = vector.load %arg4[%c0_7, %c0_8, %c0_9, %c0_10] : memref<1x1x16x4xf32, #tpu.memory_space<vmem>>, vector<1x1x16x4xf32>
    %7 = vector.shape_cast %6 : vector<1x1x16x4xf32> to vector<1x16x4xf32>
    %8 = tpu.concatenate %3, %5, %7 in 0 : vector<1x16x4xf32>, vector<16x16x4xf32>, vector<1x16x4xf32> -> vector<18x16x4xf32>
    %9 = vector.shape_cast %8 : vector<18x16x4xf32> to vector<288x4xf32>
    %10 = arith.truncf %9 : vector<288x4xf32> to vector<288x4xbf16>
    %c0_11 = arith.constant 0 : index
    %c0_12 = arith.constant 0 : index
    %11 = vector.load %arg5[%c0_11, %c0_12] : memref<4x8xbf16, #tpu.memory_space<vmem>>, vector<4x8xbf16>
    %cst = arith.constant dense<0.000000e+00> : vector<288x8xf32>
    %12 = tpu.matmul %10, %11, %cst {dimension_numbers = #tpu.dot_dimension_numbers<[1], [0], [0], [1], [0, 0, 1, 1], [], []>} : vector<288x4xbf16>, vector<4x8xbf16>, vector<288x8xf32> -> vector<288x8xf32>
    %c0_13 = arith.constant 0 : index
    %c0_14 = arith.constant 0 : index
    %13 = vector.load %arg6[%c0_13, %c0_14] : memref<1x8xf32, #tpu.memory_space<vmem>>, vector<1x8xf32>
    %14 = vector.broadcast %13 : vector<1x8xf32> to vector<288x8xf32>
    %15 = arith.addf %12, %14 : vector<288x8xf32>
    %cst_15 = arith.constant 0.000000e+00 : f32
    %16 = vector.broadcast %cst_15 : f32 to vector<288x8xf32>
    %17 = arith.subf %16, %15 : vector<288x8xf32>
    %18 = math.exp %17 : vector<288x8xf32>
    %cst_16 = arith.constant 1.000000e+00 : f32
    %19 = vector.broadcast %cst_16 : f32 to vector<288x8xf32>
    %20 = arith.addf %19, %18 : vector<288x8xf32>
    %21 = tpu.reciprocal %20 {approx = true} : vector<288x8xf32> -> vector<288x8xf32>
    %22 = arith.mulf %15, %21 : vector<288x8xf32>
    %23 = vector.shape_cast %22 : vector<288x8xf32> to vector<18x16x8xf32>
    %c0_17 = arith.constant 0 : index
    %c0_18 = arith.constant 0 : index
    %c0_19 = arith.constant 0 : index
    %24 = vector.load %arg10[%c0_17, %c0_18, %c0_19] : memref<18x16x8xf32, #tpu.memory_space<vmem>>, vector<18x16x8xf32>
    tpu.vector_store %arg10[%c0_17, %c0_18, %c0_19], %23 {strides = array<i32>} : memref<18x16x8xf32, #tpu.memory_space<vmem>>, vector<18x16x8xf32>,
    %cst_20 = arith.constant 0.000000e+00 : f32
    %25 = vector.broadcast %cst_20 : f32 to vector<18x8x8xf32>
    %26 = tpu.concatenate %23, %25 in 1 : vector<18x16x8xf32>, vector<18x8x8xf32> -> vector<18x24x8xf32>
    %27 = vector.shape_cast %26 : vector<18x24x8xf32> to vector<432x8xf32>
    %28 = tpu.iota {dimensions = array<i32: 0>} : vector<18x24x1xi32>
    %29 = tpu.iota {dimensions = array<i32: 1>} : vector<18x24x1xi32>
    %30 = vector.broadcast %1 : i32 to vector<18x24x1xi32>
    %31 = arith.addi %30, %28 : vector<18x24x1xi32>
    %c16_i32_21 = arith.constant 16 : i32
    %32 = vector.broadcast %c16_i32_21 : i32 to vector<18x24x1xi32>
    %33 = arith.cmpi slt, %29, %32 : vector<18x24x1xi32>
    %c0_i32 = arith.constant 0 : i32
    %34 = vector.broadcast %c0_i32 : i32 to vector<18x24x1xi32>
    %35 = arith.cmpi sge, %31, %34 : vector<18x24x1xi32>
    %36 = arith.andi %33, %35 : vector<18x24x1xi1>
    %c16_i32_22 = arith.constant 16 : i32
    %37 = vector.broadcast %c16_i32_22 : i32 to vector<18x24x1xi32>
    %38 = arith.cmpi slt, %31, %37 : vector<18x24x1xi32>
    %39 = arith.andi %36, %38 : vector<18x24x1xi1>
    %40 = vector.shape_cast %39 : vector<18x24x1xi1> to vector<432x1xi1>
    %cst_23 = arith.constant 0.000000e+00 : f32
    %41 = vector.shape_cast %40 : vector<432x1xi1> to vector<432x1xi1>
    %42 = vector.broadcast %41 : vector<432x1xi1> to vector<432x8xi1>
    %43 = vector.broadcast %cst_23 : f32 to vector<432x8xf32>
    %44 = arith.select %42, %27, %43 : vector<432x8xi1>, vector<432x8xf32>
    %c25_i32 = arith.constant 25 : i32
    %45 = tpu.dynamic_rotate %44 by %c25_i32 dim 0 : vector<432x8xf32>, i32 -> vector<432x8xf32>
    %46 = arith.truncf %45 : vector<432x8xf32> to vector<432x8xbf16>
    %c0_24 = arith.constant 0 : index
    %c0_25 = arith.constant 0 : index
    %c0_26 = arith.constant 0 : index
    %47 = vector.load %arg7[%c0_24, %c0_25, %c0_26] : memref<9x8x8xbf16, #tpu.memory_space<vmem>>, vector<1x8x8xbf16>
    %48 = vector.shape_cast %47 : vector<1x8x8xbf16> to vector<8x8xbf16>
    %cst_27 = arith.constant dense<0.000000e+00> : vector<432x8xf32>
    %49 = tpu.matmul %46, %48, %cst_27 {dimension_numbers = #tpu.dot_dimension_numbers<[1], [0], [0], [1], [0, 0, 1, 1], [], []>} : vector<432x8xbf16>, vector<8x8xbf16>, vector<432x8xf32> -> vector<432x8xf32>
    %c24_i32 = arith.constant 24 : i32
    %50 = tpu.dynamic_rotate %44 by %c24_i32 dim 0 : vector<432x8xf32>, i32 -> vector<432x8xf32>
    %51 = arith.truncf %50 : vector<432x8xf32> to vector<432x8xbf16>
    %c1 = arith.constant 1 : index
    %c0_28 = arith.constant 0 : index
    %c0_29 = arith.constant 0 : index
    %52 = vector.load %arg7[%c1, %c0_28, %c0_29] : memref<9x8x8xbf16, #tpu.memory_space<vmem>>, vector<1x8x8xbf16>
    %53 = vector.shape_cast %52 : vector<1x8x8xbf16> to vector<8x8xbf16>
    %cst_30 = arith.constant dense<0.000000e+00> : vector<432x8xf32>
    %54 = tpu.matmul %51, %53, %cst_30 {dimension_numbers = #tpu.dot_dimension_numbers<[1], [0], [0], [1], [0, 0, 1, 1], [], []>} : vector<432x8xbf16>, vector<8x8xbf16>, vector<432x8xf32> -> vector<432x8xf32>
    %55 = arith.addf %49, %54 : vector<432x8xf32>
    %c23_i32 = arith.constant 23 : i32
    %56 = tpu.dynamic_rotate %44 by %c23_i32 dim 0 : vector<432x8xf32>, i32 -> vector<432x8xf32>
    %57 = arith.truncf %56 : vector<432x8xf32> to vector<432x8xbf16>
    %c2 = arith.constant 2 : index
    %c0_31 = arith.constant 0 : index
    %c0_32 = arith.constant 0 : index
    %58 = vector.load %arg7[%c2, %c0_31, %c0_32] : memref<9x8x8xbf16, #tpu.memory_space<vmem>>, vector<1x8x8xbf16>
    %59 = vector.shape_cast %58 : vector<1x8x8xbf16> to vector<8x8xbf16>
    %cst_33 = arith.constant dense<0.000000e+00> : vector<432x8xf32>
    %60 = tpu.matmul %57, %59, %cst_33 {dimension_numbers = #tpu.dot_dimension_numbers<[1], [0], [0], [1], [0, 0, 1, 1], [], []>} : vector<432x8xbf16>, vector<8x8xbf16>, vector<432x8xf32> -> vector<432x8xf32>
    %61 = arith.addf %55, %60 : vector<432x8xf32>
    %c1_i32_34 = arith.constant 1 : i32
    %62 = tpu.dynamic_rotate %44 by %c1_i32_34 dim 0 : vector<432x8xf32>, i32 -> vector<432x8xf32>
    %63 = arith.truncf %62 : vector<432x8xf32> to vector<432x8xbf16>
    %c3 = arith.constant 3 : index
    %c0_35 = arith.constant 0 : index
    %c0_36 = arith.constant 0 : index
    %64 = vector.load %arg7[%c3, %c0_35, %c0_36] : memref<9x8x8xbf16, #tpu.memory_space<vmem>>, vector<1x8x8xbf16>
    %65 = vector.shape_cast %64 : vector<1x8x8xbf16> to vector<8x8xbf16>
    %cst_37 = arith.constant dense<0.000000e+00> : vector<432x8xf32>
    %66 = tpu.matmul %63, %65, %cst_37 {dimension_numbers = #tpu.dot_dimension_numbers<[1], [0], [0], [1], [0, 0, 1, 1], [], []>} : vector<432x8xbf16>, vector<8x8xbf16>, vector<432x8xf32> -> vector<432x8xf32>
    %67 = arith.addf %61, %66 : vector<432x8xf32>
    %68 = arith.truncf %44 : vector<432x8xf32> to vector<432x8xbf16>
    %c4 = arith.constant 4 : index
    %c0_38 = arith.constant 0 : index
    %c0_39 = arith.constant 0 : index
    %69 = vector.load %arg7[%c4, %c0_38, %c0_39] : memref<9x8x8xbf16, #tpu.memory_space<vmem>>, vector<1x8x8xbf16>
    %70 = vector.shape_cast %69 : vector<1x8x8xbf16> to vector<8x8xbf16>
    %cst_40 = arith.constant dense<0.000000e+00> : vector<432x8xf32>
    %71 = tpu.matmul %68, %70, %cst_40 {dimension_numbers = #tpu.dot_dimension_numbers<[1], [0], [0], [1], [0, 0, 1, 1], [], []>} : vector<432x8xbf16>, vector<8x8xbf16>, vector<432x8xf32> -> vector<432x8xf32>
    %72 = arith.addf %67, %71 : vector<432x8xf32>
    %c431_i32 = arith.constant 431 : i32
    %73 = tpu.dynamic_rotate %44 by %c431_i32 dim 0 : vector<432x8xf32>, i32 -> vector<432x8xf32>
    %74 = arith.truncf %73 : vector<432x8xf32> to vector<432x8xbf16>
    %c5 = arith.constant 5 : index
    %c0_41 = arith.constant 0 : index
    %c0_42 = arith.constant 0 : index
    %75 = vector.load %arg7[%c5, %c0_41, %c0_42] : memref<9x8x8xbf16, #tpu.memory_space<vmem>>, vector<1x8x8xbf16>
    %76 = vector.shape_cast %75 : vector<1x8x8xbf16> to vector<8x8xbf16>
    %cst_43 = arith.constant dense<0.000000e+00> : vector<432x8xf32>
    %77 = tpu.matmul %74, %76, %cst_43 {dimension_numbers = #tpu.dot_dimension_numbers<[1], [0], [0], [1], [0, 0, 1, 1], [], []>} : vector<432x8xbf16>, vector<8x8xbf16>, vector<432x8xf32> -> vector<432x8xf32>
    %78 = arith.addf %72, %77 : vector<432x8xf32>
    %c409_i32 = arith.constant 409 : i32
    %79 = tpu.dynamic_rotate %44 by %c409_i32 dim 0 : vector<432x8xf32>, i32 -> vector<432x8xf32>
    %80 = arith.truncf %79 : vector<432x8xf32> to vector<432x8xbf16>
    %c6 = arith.constant 6 : index
    %c0_44 = arith.constant 0 : index
    %c0_45 = arith.constant 0 : index
    %81 = vector.load %arg7[%c6, %c0_44, %c0_45] : memref<9x8x8xbf16, #tpu.memory_space<vmem>>, vector<1x8x8xbf16>
    %82 = vector.shape_cast %81 : vector<1x8x8xbf16> to vector<8x8xbf16>
    %cst_46 = arith.constant dense<0.000000e+00> : vector<432x8xf32>
    %83 = tpu.matmul %80, %82, %cst_46 {dimension_numbers = #tpu.dot_dimension_numbers<[1], [0], [0], [1], [0, 0, 1, 1], [], []>} : vector<432x8xbf16>, vector<8x8xbf16>, vector<432x8xf32> -> vector<432x8xf32>
    %84 = arith.addf %78, %83 : vector<432x8xf32>
    %c408_i32 = arith.constant 408 : i32
    %85 = tpu.dynamic_rotate %44 by %c408_i32 dim 0 : vector<432x8xf32>, i32 -> vector<432x8xf32>
    %86 = arith.truncf %85 : vector<432x8xf32> to vector<432x8xbf16>
    %c7 = arith.constant 7 : index
    %c0_47 = arith.constant 0 : index
    %c0_48 = arith.constant 0 : index
    %87 = vector.load %arg7[%c7, %c0_47, %c0_48] : memref<9x8x8xbf16, #tpu.memory_space<vmem>>, vector<1x8x8xbf16>
    %88 = vector.shape_cast %87 : vector<1x8x8xbf16> to vector<8x8xbf16>
    %cst_49 = arith.constant dense<0.000000e+00> : vector<432x8xf32>
    %89 = tpu.matmul %86, %88, %cst_49 {dimension_numbers = #tpu.dot_dimension_numbers<[1], [0], [0], [1], [0, 0, 1, 1], [], []>} : vector<432x8xbf16>, vector<8x8xbf16>, vector<432x8xf32> -> vector<432x8xf32>
    %90 = arith.addf %84, %89 : vector<432x8xf32>
    %c407_i32 = arith.constant 407 : i32
    %91 = tpu.dynamic_rotate %44 by %c407_i32 dim 0 : vector<432x8xf32>, i32 -> vector<432x8xf32>
    %92 = arith.truncf %91 : vector<432x8xf32> to vector<432x8xbf16>
    %c8 = arith.constant 8 : index
    %c0_50 = arith.constant 0 : index
    %c0_51 = arith.constant 0 : index
    %93 = vector.load %arg7[%c8, %c0_50, %c0_51] : memref<9x8x8xbf16, #tpu.memory_space<vmem>>, vector<1x8x8xbf16>
    %94 = vector.shape_cast %93 : vector<1x8x8xbf16> to vector<8x8xbf16>
    %cst_52 = arith.constant dense<0.000000e+00> : vector<432x8xf32>
    %95 = tpu.matmul %92, %94, %cst_52 {dimension_numbers = #tpu.dot_dimension_numbers<[1], [0], [0], [1], [0, 0, 1, 1], [], []>} : vector<432x8xbf16>, vector<8x8xbf16>, vector<432x8xf32> -> vector<432x8xf32>
    %96 = arith.addf %90, %95 : vector<432x8xf32>
    %c0_53 = arith.constant 0 : index
    %c0_54 = arith.constant 0 : index
    %c0_55 = arith.constant 0 : index
    %97 = vector.load %arg8[%c0_53, %c0_54, %c0_55] : memref<1x1x8xf32, #tpu.memory_space<vmem>>, vector<1x1x8xf32>
    %98 = vector.shape_cast %97 : vector<1x1x8xf32> to vector<1x8xf32>
    %99 = vector.broadcast %98 : vector<1x8xf32> to vector<432x8xf32>
    %100 = arith.addf %96, %99 : vector<432x8xf32>
    %cst_56 = arith.constant 0.000000e+00 : f32
    %101 = vector.broadcast %cst_56 : f32 to vector<432x8xf32>
    %102 = arith.subf %101, %100 : vector<432x8xf32>
    %103 = math.exp %102 : vector<432x8xf32>
    %cst_57 = arith.constant 1.000000e+00 : f32
    %104 = vector.broadcast %cst_57 : f32 to vector<432x8xf32>
    %105 = arith.addf %104, %103 : vector<432x8xf32>
    %106 = tpu.reciprocal %105 {approx = true} : vector<432x8xf32> -> vector<432x8xf32>
    %107 = arith.mulf %100, %106 : vector<432x8xf32>
    %108 = vector.shape_cast %107 : vector<432x8xf32> to vector<18x24x8xf32>
    %109 = vector.extract_strided_slice %108 {offsets = [1, 0, 0], sizes = [16, 16, 8], strides = [1, 1, 1]} : vector<18x24x8xf32> to vector<16x16x8xf32>
    %c1_58 = arith.constant 1 : index
    %c0_59 = arith.constant 0 : index
    %c0_60 = arith.constant 0 : index
    %110 = vector.load %arg10[%c1_58, %c0_59, %c0_60] : memref<18x16x8xf32, #tpu.memory_space<vmem>>, vector<16x16x8xf32>
    %111 = arith.addf %109, %110 : vector<16x16x8xf32>
    %112 = vector.shape_cast %111 : vector<16x16x8xf32> to vector<1x16x16x8xf32>
    %c0_61 = arith.constant 0 : index
    %c0_62 = arith.constant 0 : index
    %c0_63 = arith.constant 0 : index
    %c0_64 = arith.constant 0 : index
    %113 = vector.load %arg9[%c0_61, %c0_62, %c0_63, %c0_64] : memref<1x16x16x8xf32, #tpu.memory_space<vmem>>, vector<1x16x16x8xf32>
    tpu.vector_store %arg9[%c0_61, %c0_62, %c0_63, %c0_64], %112 {strides = array<i32>} : memref<1x16x16x8xf32, #tpu.memory_space<vmem>>, vector<1x16x16x8xf32>,
    return
  }
  func.func @transform_0(%arg0: i32, %arg1: i32) -> (i32, i32, i32, i32) {
    %c0_i32 = arith.constant 0 : i32
    %c0_i32_0 = arith.constant 0 : i32
    %c0_i32_1 = arith.constant 0 : i32
    return %arg0, %arg1, %c0_i32, %c0_i32_0 : i32, i32, i32, i32
  }
  func.func @transform_1(%arg0: i32, %arg1: i32) -> (i32, i32, i32, i32) {
    %c16_i32 = arith.constant 16 : i32
    %0 = arith.muli %arg1, %c16_i32 : i32
    %c1_i32 = arith.constant 1 : i32
    %1 = arith.subi %0, %c1_i32 : i32
    %c0_i32 = arith.constant 0 : i32
    %2 = arith.addi %1, %c0_i32 : i32
    %c0_i32_0 = arith.constant 0 : i32
    %c15_i32 = arith.constant 15 : i32
    %3 = arith.maxsi %c0_i32_0, %2 : i32
    %4 = arith.minsi %c15_i32, %3 : i32
    %c0_i32_1 = arith.constant 0 : i32
    %c0_i32_2 = arith.constant 0 : i32
    %c0_i32_3 = arith.constant 0 : i32
    return %arg0, %4, %c0_i32_1, %c0_i32_2 : i32, i32, i32, i32
  }
  func.func @transform_2(%arg0: i32, %arg1: i32) -> (i32, i32, i32, i32) {
    %c16_i32 = arith.constant 16 : i32
    %0 = arith.muli %arg1, %c16_i32 : i32
    %c16_i32_0 = arith.constant 16 : i32
    %1 = arith.addi %0, %c16_i32_0 : i32
    %c0_i32 = arith.constant 0 : i32
    %2 = arith.addi %1, %c0_i32 : i32
    %c0_i32_1 = arith.constant 0 : i32
    %c15_i32 = arith.constant 15 : i32
    %3 = arith.maxsi %c0_i32_1, %2 : i32
    %4 = arith.minsi %c15_i32, %3 : i32
    %c0_i32_2 = arith.constant 0 : i32
    %c0_i32_3 = arith.constant 0 : i32
    %c0_i32_4 = arith.constant 0 : i32
    return %arg0, %4, %c0_i32_2, %c0_i32_3 : i32, i32, i32, i32
  }
  func.func @transform_3(%arg0: i32, %arg1: i32) -> (i32, i32) {
    %c0_i32 = arith.constant 0 : i32
    %c0_i32_0 = arith.constant 0 : i32
    %c0_i32_1 = arith.constant 0 : i32
    return %c0_i32, %c0_i32_0 : i32, i32
  }
  func.func @transform_4(%arg0: i32, %arg1: i32) -> (i32, i32) {
    %c0_i32 = arith.constant 0 : i32
    %c0_i32_0 = arith.constant 0 : i32
    %c0_i32_1 = arith.constant 0 : i32
    return %c0_i32, %c0_i32_0 : i32, i32
  }
  func.func @transform_5(%arg0: i32, %arg1: i32) -> (i32, i32, i32) {
    %c0_i32 = arith.constant 0 : i32
    %c0_i32_0 = arith.constant 0 : i32
    %c0_i32_1 = arith.constant 0 : i32
    %c0_i32_2 = arith.constant 0 : i32
    return %c0_i32, %c0_i32_0, %c0_i32_1 : i32, i32, i32
  }
  func.func @transform_6(%arg0: i32, %arg1: i32) -> (i32, i32, i32) {
    %c0_i32 = arith.constant 0 : i32
    %c0_i32_0 = arith.constant 0 : i32
    %c0_i32_1 = arith.constant 0 : i32
    %c0_i32_2 = arith.constant 0 : i32
    return %c0_i32, %c0_i32_0, %c0_i32_1 : i32, i32, i32
  }
  func.func @transform_7(%arg0: i32, %arg1: i32) -> (i32, i32, i32, i32) {
    %c0_i32 = arith.constant 0 : i32
    %c0_i32_0 = arith.constant 0 : i32
    %c0_i32_1 = arith.constant 0 : i32
    return %arg0, %arg1, %c0_i32, %c0_i32_0 : i32, i32, i32, i32
  }
}

</mosaic_0001>

<llo_original>
// kernel: tpu_custom_call.1
$region0: #{tpu_custom_call.1}
  #allocation0 [shape = 'u32[]', space=smem, size = 0x4, offset = 0x4, fixed_abs, tag = 'smem constant byte address 0x4 - core index']
  #allocation1 [shape = 'u32[144,128]{1,0:T(1,128)}', space=vmem, size = 0x12000, scoped, tag = 'internal scratch']
  %s0 = inlined_call_operand.hbm [shape: f32[8,128], index: 0, kind: input, shape index: {}]
  %s1 = inlined_call_operand.hbm [shape: f32[8,128], index: 1, kind: output, shape index: {}]
  %s2 = sld [smem:[#allocation0]]
  $region18: #{tpu_custom_call.1} parent=0
    _
  %s4 = ssub.s32 1, %s2
  %s5 = scalar_select 0, %s4, %s2
  $region1: #{tpu_custom_call.1} parent=0
    #allocation2 [shape = 'u8[4096]{0}', space=vmem, size = 0x1000, scoped, tag = 'input window, operand 0, single buffered']
    #allocation3 [shape = 's32[1]{0}', space=sflag, size = 0x4, scoped, tag = 'scoped memory for tpu_custom_call.1']
    #allocation4 [shape = 's32[1]{0}', space=sflag, size = 0x4, scoped, tag = 'scoped memory for tpu_custom_call.1']
    #allocation5 [shape = 'u8[4096]{0}', space=vmem, size = 0x1000, scoped, tag = 'output window, operand 0, single buffered']
    %6 = vsyncpa [#allocation3], 0
    %7 = vsyncpa [#allocation4], 0
    // Predicated region
    $region2: #{tpu_custom_call.1} parent=1 // pred_check
      _
    $region3: #{tpu_custom_call.1} parent=1 // pred_check_branch
      %9 = sbr.rel (0) target = $region5
    $region4: #{tpu_custom_call.1} parent=1 // pred_region
      %s11 = ssub.s32 128, 128
      %12 = vsyncadd [#allocation3], %s11
      %s14 = sshll.u32 [#allocation2], 4
      %s15 = int_to_ptr.vmem [resolvable:$true] %s14
      %17 = dma.hbm_to_vmem [thread:$0]  %s0, 128, %s15, [#allocation3]
    $region5: #{tpu_custom_call.1} parent=1 // pred_fallthru
      _
    // Predicated region
    $region6: #{tpu_custom_call.1} parent=1 // pred_check
      _
    $region7: #{tpu_custom_call.1} parent=1 // pred_check_branch
      %19 = sbr.rel (0) target = $region9
    $region8: #{tpu_custom_call.1} parent=1 // pred_region
      %20 = dma.done [#allocation3], 128
    $region9: #{tpu_custom_call.1} parent=1 // pred_fallthru
      _
    %v21 = vld [vmem:[#allocation2] sm:$0xff]
    %v22 = vrot.slane %v21, 7
    %23 = vst [vmem:[#allocation5] sm:$0xff] %v22
    // Predicated region
    $region10: #{tpu_custom_call.1} parent=1 // pred_check
      _
    $region11: #{tpu_custom_call.1} parent=1 // pred_check_branch
      %25 = sbr.rel (0) target = $region13
    $region12: #{tpu_custom_call.1} parent=1 // pred_region
      %s27 = ssub.s32 128, 128
      %28 = vsyncadd [#allocation4], %s27
      %s30 = sshll.u32 [#allocation5], 4
      %s31 = int_to_ptr.vmem [resolvable:$true] %s30
      %33 = dma.vmem_to_hbm [thread:$0]  %s31, 128, %s1, [#allocation4]
    $region13: #{tpu_custom_call.1} parent=1 // pred_fallthru
      _
    // Predicated region
    $region14: #{tpu_custom_call.1} parent=1 // pred_check
      _
    $region15: #{tpu_custom_call.1} parent=1 // pred_check_branch
      %35 = sbr.rel (0) target = $region17
    $region16: #{tpu_custom_call.1} parent=1 // pred_region
      %36 = dma.done [#allocation4], 128
    $region17: #{tpu_custom_call.1} parent=1 // pred_fallthru
      _
    %37 = vsyncpa [#allocation3], 1
    %38 = vsyncpa [#allocation4], 1

// kernel: c1_forward.1
$region0: #{c1_forward.1}
  #allocation0 [shape = 'u32[]', space=smem, size = 0x4, offset = 0x4, fixed_abs, tag = 'smem constant byte address 0x4 - core index']
  #allocation1 [shape = 'u32[144,128]{1,0:T(1,128)}', space=vmem, size = 0x12000, scoped, tag = 'internal scratch']
  #allocation2 [shape = 'f32[18,16,8]{2,1,0:T(8,128)}', space=vmem, size = 0x24000, scoped, tag = 'scratch operand']
  %s0 = inlined_call_operand.vmem [shape: f32[2,16,16,4], index: 0, kind: input, shape index: {}, may-alias: {0,1,2}]
  %s1 = inlined_call_operand.vmem [shape: f32[2,16,16,4], index: 1, kind: input, shape index: {}, may-alias: {0,1,2}]
  %s2 = inlined_call_operand.vmem [shape: f32[2,16,16,4], index: 2, kind: input, shape index: {}, may-alias: {0,1,2}]
  %s3 = inlined_call_operand.vmem [shape: bf16[4,8], index: 3, kind: input, shape index: {}]
  %s4 = inlined_call_operand.vmem [shape: f32[1,8], index: 4, kind: input, shape index: {}]
  %s5 = inlined_call_operand.vmem [shape: bf16[9,8,8], index: 5, kind: input, shape index: {}]
  %s6 = inlined_call_operand.vmem [shape: f32[1,1,8], index: 6, kind: input, shape index: {}]
  %s7 = inlined_call_operand.vmem [shape: f32[2,16,16,8], index: 7, kind: output, shape index: {}]
  %s8 = sld [smem:[#allocation0]]
  $region61: #{c1_forward.1} parent=0
    _
  %s10 = ssub.s32 1, %s8
  %s11 = scalar_select 0, %s10, %s8
  loop: start=0, step=1, limit=4
  $region2: #{c1_forward.1} parent=0 // loop_pre_header
    _
  $region3: #{c1_forward.1} parent=0 // loop_header
    %s13 = sphi 0, %s17
    %p14 = scmp.ge.s32.totalorder %s13, 4
    %s20 = sphi 0, %s32
    %s21 = sphi 0, %s28
    %s22 = sphi 0, %s20
    %s23 = sphi 0, %s21
    %s24 = sphi 0, %s22
    %s25 = sphi 0, %s23
    %s37 = sphi 0, %s39
    %s40 = sphi 0, %s37
    %s41 = sphi 0, %s40
    %s57 = sphi 0, %s41
    %s77 = sphi 0, %s79
    %s80 = sphi 0, %s77
    %s81 = sphi 0, %s80
    %s97 = sphi 0, %s81
    %s117 = sphi 0, %s119
    %s120 = sphi 0, %s117
    %s121 = sphi 0, %s120
    %s137 = sphi 0, %s121
    %s141 = sphi 0, %s141
    %s143 = sphi 0, %s141
    %s144 = sphi 0, %s143
    %s158 = sphi 0, %s144
    %s162 = sphi 0, %s162
    %s164 = sphi 0, %s162
    %s165 = sphi 0, %s164
    %s179 = sphi 0, %s165
    %s183 = sphi 0, %s183
    %s185 = sphi 0, %s183
    %s186 = sphi 0, %s185
    %s200 = sphi 0, %s186
    %s204 = sphi 0, %s204
    %s206 = sphi 0, %s204
    %s207 = sphi 0, %s206
    %s221 = sphi 0, %s207
    %s229 = sphi 0, %s231
    %s232 = sphi 0, %s229
    %s233 = sphi 0, %s232
    %s249 = sphi 0, %s233
  $region4: #{c1_forward.1} parent=0 // loop_header_branch
    %16 = sbr.rel (%p14) target = $region8
  $region5: #{c1_forward.1} parent=0 // loop_body
    %s18 = ssub.s32 %s13, 1
    %s19 = ssub.s32 %s13, 2
    %s26 = sadd.s32 1, %s21
    %p27 = scmp.ge.s32.totalorder %s26, 1
    %s28 = scalar_select %p27, 0, %s26
    %s29 = sadd.s32 1, %s20
    %s30 = scalar_select %p27, %s29, %s20
    %p31 = scmp.ge.s32.totalorder %s30, 2
    %s32 = scalar_select %p31, 0, %s30
    %s33 = ssub.s32 %s20, %s32
    %s34 = ssub.s32 %s21, %s28
    %s35 = sor.u32 %s33, %s34
    %p36 = scmp.eq.s32.totalorder %s35, 0
    %s38 = sadd.s32 %s37, 1
    %s39 = scalar_select %p36, %s37, %s38
    %p42 = pneg %p36
    %p43 = scmp.eq.s32.totalorder %s13, 1
    %p44 = por %p42, %p43
    %p45 = scmp.ne.s32.totalorder %s37, %s40
    %p46 = scmp.eq.s32.totalorder %s13, 0
    %p47 = por %p45, %p46
    %p48 = scmp.ne.s32.totalorder %s37, %s40
    %p49 = scmp.eq.s32.totalorder %s18, 1
    %p50 = por %p48, %p49
    %p51 = scmp.ne.s32.totalorder %s40, %s41
    %p52 = scmp.eq.s32.totalorder %s18, 0
    %p53 = por %p51, %p52
    %p54 = scmp.ne.s32.totalorder %s40, %s41
    %p55 = scmp.eq.s32.totalorder %s19, 1
    %p56 = por %p54, %p55
    %p58 = scmp.ne.s32.totalorder %s41, %s57
    %p59 = scmp.eq.s32.totalorder %s19, 0
    %p60 = por %p58, %p59
    %s61 = smul.u32 %s21, 16
    %s62 = ssub.s32 %s61, 1
    %p63 = scmp.gt.s32.totalorder %s62, 0
    %s64 = scalar_select %p63, %s62, 0
    %p65 = scmp.lt.s32.totalorder %s64, 15
    %s66 = scalar_select %p65, %s64, 15
    %s67 = smul.u32 %s28, 16
    %s68 = ssub.s32 %s67, 1
    %p69 = scmp.gt.s32.totalorder %s68, 0
    %s70 = scalar_select %p69, %s68, 0
    %p71 = scmp.lt.s32.totalorder %s70, 15
    %s72 = scalar_select %p71, %s70, 15
    %s73 = ssub.s32 %s20, %s32
    %s74 = ssub.s32 %s66, %s72
    %s75 = sor.u32 %s73, %s74
    %p76 = scmp.eq.s32.totalorder %s75, 0
    %s78 = sadd.s32 %s77, 1
    %s79 = scalar_select %p76, %s77, %s78
    %p82 = pneg %p76
    %p83 = scmp.eq.s32.totalorder %s13, 1
    %p84 = por %p82, %p83
    %p85 = scmp.ne.s32.totalorder %s77, %s80
    %p86 = scmp.eq.s32.totalorder %s13, 0
    %p87 = por %p85, %p86
    %p88 = scmp.ne.s32.totalorder %s77, %s80
    %p89 = scmp.eq.s32.totalorder %s18, 1
    %p90 = por %p88, %p89
    %p91 = scmp.ne.s32.totalorder %s80, %s81
    %p92 = scmp.eq.s32.totalorder %s18, 0
    %p93 = por %p91, %p92
    %p94 = scmp.ne.s32.totalorder %s80, %s81
    %p95 = scmp.eq.s32.totalorder %s19, 1
    %p96 = por %p94, %p95
    %p98 = scmp.ne.s32.totalorder %s81, %s97
    %p99 = scmp.eq.s32.totalorder %s19, 0
    %p100 = por %p98, %p99
    %s101 = smul.u32 %s21, 16
    %s102 = sadd.s32 %s101, 16
    %p103 = scmp.gt.s32.totalorder %s102, 0
    %s104 = scalar_select %p103, %s102, 0
    %p105 = scmp.lt.s32.totalorder %s104, 15
    %s106 = scalar_select %p105, %s104, 15
    %s107 = smul.u32 %s28, 16
    %s108 = sadd.s32 %s107, 16
    %p109 = scmp.gt.s32.totalorder %s108, 0
    %s110 = scalar_select %p109, %s108, 0
    %p111 = scmp.lt.s32.totalorder %s110, 15
    %s112 = scalar_select %p111, %s110, 15
    %s113 = ssub.s32 %s20, %s32
    %s114 = ssub.s32 %s106, %s112
    %s115 = sor.u32 %s113, %s114
    %p116 = scmp.eq.s32.totalorder %s115, 0
    %s118 = sadd.s32 %s117, 1
    %s119 = scalar_select %p116, %s117, %s118
    %p122 = pneg %p116
    %p123 = scmp.eq.s32.totalorder %s13, 1
    %p124 = por %p122, %p123
    %p125 = scmp.ne.s32.totalorder %s117, %s120
    %p126 = scmp.eq.s32.totalorder %s13, 0
    %p127 = por %p125, %p126
    %p128 = scmp.ne.s32.totalorder %s117, %s120
    %p129 = scmp.eq.s32.totalorder %s18, 1
    %p130 = por %p128, %p129
    %p131 = scmp.ne.s32.totalorder %s120, %s121
    %p132 = scmp.eq.s32.totalorder %s18, 0
    %p133 = por %p131, %p132
    %p134 = scmp.ne.s32.totalorder %s120, %s121
    %p135 = scmp.eq.s32.totalorder %s19, 1
    %p136 = por %p134, %p135
    %p138 = scmp.ne.s32.totalorder %s121, %s137
    %p139 = scmp.eq.s32.totalorder %s19, 0
    %p140 = por %p138, %p139
    %s142 = sadd.s32 %s141, 1
    %p145 = scmp.eq.s32.totalorder %s13, 1
    %p146 = scmp.ne.s32.totalorder %s141, %s143
    %p147 = scmp.eq.s32.totalorder %s13, 0
    %p148 = por %p146, %p147
    %p149 = scmp.ne.s32.totalorder %s141, %s143
    %p150 = scmp.eq.s32.totalorder %s18, 1
    %p151 = por %p149, %p150
    %p152 = scmp.ne.s32.totalorder %s143, %s144
    %p153 = scmp.eq.s32.totalorder %s18, 0
    %p154 = por %p152, %p153
    %p155 = scmp.ne.s32.totalorder %s143, %s144
    %p156 = scmp.eq.s32.totalorder %s19, 1
    %p157 = por %p155, %p156
    %p159 = scmp.ne.s32.totalorder %s144, %s158
    %p160 = scmp.eq.s32.totalorder %s19, 0
    %p161 = por %p159, %p160
    %s163 = sadd.s32 %s162, 1
    %p166 = scmp.eq.s32.totalorder %s13, 1
    %p167 = scmp.ne.s32.totalorder %s162, %s164
    %p168 = scmp.eq.s32.totalorder %s13, 0
    %p169 = por %p167, %p168
    %p170 = scmp.ne.s32.totalorder %s162, %s164
    %p171 = scmp.eq.s32.totalorder %s18, 1
    %p172 = por %p170, %p171
    %p173 = scmp.ne.s32.totalorder %s164, %s165
    %p174 = scmp.eq.s32.totalorder %s18, 0
    %p175 = por %p173, %p174
    %p176 = scmp.ne.s32.totalorder %s164, %s165
    %p177 = scmp.eq.s32.totalorder %s19, 1
    %p178 = por %p176, %p177
    %p180 = scmp.ne.s32.totalorder %s165, %s179
    %p181 = scmp.eq.s32.totalorder %s19, 0
    %p182 = por %p180, %p181
    %s184 = sadd.s32 %s183, 1
    %p187 = scmp.eq.s32.totalorder %s13, 1
    %p188 = scmp.ne.s32.totalorder %s183, %s185
    %p189 = scmp.eq.s32.totalorder %s13, 0
    %p190 = por %p188, %p189
    %p191 = scmp.ne.s32.totalorder %s183, %s185
    %p192 = scmp.eq.s32.totalorder %s18, 1
    %p193 = por %p191, %p192
    %p194 = scmp.ne.s32.totalorder %s185, %s186
    %p195 = scmp.eq.s32.totalorder %s18, 0
    %p196 = por %p194, %p195
    %p197 = scmp.ne.s32.totalorder %s185, %s186
    %p198 = scmp.eq.s32.totalorder %s19, 1
    %p199 = por %p197, %p198
    %p201 = scmp.ne.s32.totalorder %s186, %s200
    %p202 = scmp.eq.s32.totalorder %s19, 0
    %p203 = por %p201, %p202
    %s205 = sadd.s32 %s204, 1
    %p208 = scmp.eq.s32.totalorder %s13, 1
    %p209 = scmp.ne.s32.totalorder %s204, %s206
    %p210 = scmp.eq.s32.totalorder %s13, 0
    %p211 = por %p209, %p210
    %p212 = scmp.ne.s32.totalorder %s204, %s206
    %p213 = scmp.eq.s32.totalorder %s18, 1
    %p214 = por %p212, %p213
    %p215 = scmp.ne.s32.totalorder %s206, %s207
    %p216 = scmp.eq.s32.totalorder %s18, 0
    %p217 = por %p215, %p216
    %p218 = scmp.ne.s32.totalorder %s206, %s207
    %p219 = scmp.eq.s32.totalorder %s19, 1
    %p220 = por %p218, %p219
    %p222 = scmp.ne.s32.totalorder %s207, %s221
    %p223 = scmp.eq.s32.totalorder %s19, 0
    %p224 = por %p222, %p223
    %s225 = ssub.s32 %s20, %s32
    %s226 = ssub.s32 %s21, %s28
    %s227 = sor.u32 %s225, %s226
    %p228 = scmp.eq.s32.totalorder %s227, 0
    %s230 = sadd.s32 %s229, 1
    %s231 = scalar_select %p228, %s229, %s230
    %p234 = pneg %p228
    %p235 = scmp.eq.s32.totalorder %s13, 1
    %p236 = por %p234, %p235
    %p237 = scmp.ne.s32.totalorder %s229, %s232
    %p238 = scmp.eq.s32.totalorder %s13, 0
    %p239 = por %p237, %p238
    %p240 = scmp.ne.s32.totalorder %s229, %s232
    %p241 = scmp.eq.s32.totalorder %s18, 1
    %p242 = por %p240, %p241
    %p243 = scmp.ne.s32.totalorder %s232, %s233
    %p244 = scmp.eq.s32.totalorder %s18, 0
    %p245 = por %p243, %p244
    %p246 = scmp.ne.s32.totalorder %s232, %s233
    %p247 = scmp.eq.s32.totalorder %s19, 1
    %p248 = por %p246, %p247
    %p250 = scmp.ne.s32.totalorder %s233, %s249
    %p251 = scmp.eq.s32.totalorder %s19, 0
    %p252 = por %p250, %p251
    %p253 = scmp.le.s32.totalorder 1, %s13
    %p254 = scmp.lt.s32.totalorder %s13, 3
    %p255 = pnand %p253, %p254
    %p256 = pneg %p255
    // Predicated region
    $region9: #{c1_forward.1} parent=5 // pred_check
      _
    $region10: #{c1_forward.1} parent=5 // pred_check_branch
      %258 = sbr.rel (%p255) target = $region12
    $region11: #{c1_forward.1} parent=5 // pred_region
      %s259 = ssub.s32 %s13, 1
      // Predicated region
      $region13: #{c1_forward.1} parent=11 // pred_check
        %p260 = pneg %p154
      $region14: #{c1_forward.1} parent=11 // pred_check_branch
        %262 = sbr.rel (%p260) target = $region16
      $region15: #{c1_forward.1} parent=11 // pred_region
        _
      $region16: #{c1_forward.1} parent=11 // pred_fallthru
        _
      // Predicated region
      $region17: #{c1_forward.1} parent=11 // pred_check
        %p263 = pneg %p175
      $region18: #{c1_forward.1} parent=11 // pred_check_branch
        %265 = sbr.rel (%p263) target = $region20
      $region19: #{c1_forward.1} parent=11 // pred_region
        _
      $region20: #{c1_forward.1} parent=11 // pred_fallthru
        _
      // Predicated region
      $region21: #{c1_forward.1} parent=11 // pred_check
        %p266 = pneg %p196
      $region22: #{c1_forward.1} parent=11 // pred_check_branch
        %268 = sbr.rel (%p266) target = $region24
      $region23: #{c1_forward.1} parent=11 // pred_region
        _
      $region24: #{c1_forward.1} parent=11 // pred_fallthru
        _
      // Predicated region
      $region25: #{c1_forward.1} parent=11 // pred_check
        %p269 = pneg %p217
      $region26: #{c1_forward.1} parent=11 // pred_check_branch
        %271 = sbr.rel (%p269) target = $region28
      $region27: #{c1_forward.1} parent=11 // pred_region
        _
      $region28: #{c1_forward.1} parent=11 // pred_fallthru
        _
    $region12: #{c1_forward.1} parent=5 // pred_fallthru
      _
    %p272 = scmp.lt.s32.totalorder %s13, 2
    // Predicated region
    $region29: #{c1_forward.1} parent=5 // pred_check
      %p273 = pneg %p272
    $region30: #{c1_forward.1} parent=5 // pred_check_branch
      %275 = sbr.rel (%p273) target = $region32
    $region31: #{c1_forward.1} parent=5 // pred_region
      // Predicated region
      $region33: #{c1_forward.1} parent=31 // pred_check
        %p276 = pneg %p47
      $region34: #{c1_forward.1} parent=31 // pred_check_branch
        %278 = sbr.rel (%p276) target = $region36
      $region35: #{c1_forward.1} parent=31 // pred_region
        %s279 = smul.u32 16, %s21
        %p280 = scmp.lt.s32.totalorder %s20, 1
        %s281 = scalar_select %p280, %s20, 1
        %p282 = scmp.lt.s32.totalorder %s279, 15
        %s283 = scalar_select %p282, %s279, 15
        %s284 = smul.addr %s283, 2
        %s285 = smul.addr %s281, 32
        %s286 = sadd.s32 %s284, %s285
        %s287 = smul.addr %s286, 8
        %s288 = scalar_lea.vmem %s0, %s287
        %s289 = smul.u32 16, %s21
      $region36: #{c1_forward.1} parent=31 // pred_fallthru
        _
      // Predicated region
      $region37: #{c1_forward.1} parent=31 // pred_check
        %p290 = pneg %p87
      $region38: #{c1_forward.1} parent=31 // pred_check_branch
        %292 = sbr.rel (%p290) target = $region40
      $region39: #{c1_forward.1} parent=31 // pred_region
        %s293 = smul.u32 %s21, 16
        %s294 = ssub.s32 %s293, 1
        %p295 = scmp.gt.s32.totalorder %s294, 0
        %s296 = scalar_select %p295, %s294, 0
        %p297 = scmp.lt.s32.totalorder %s296, 15
        %s298 = scalar_select %p297, %s296, 15
        %p299 = scmp.lt.s32.totalorder %s20, 1
        %s300 = scalar_select %p299, %s20, 1
        %p301 = scmp.lt.s32.totalorder %s298, 15
        %s302 = scalar_select %p301, %s298, 15
        %s303 = smul.addr %s302, 2
        %s304 = smul.addr %s300, 32
        %s305 = sadd.s32 %s303, %s304
        %s306 = smul.addr %s305, 8
        %s307 = scalar_lea.vmem %s1, %s306
        %s308 = smul.u32 %s21, 16
        %s309 = ssub.s32 %s308, 1
        %p310 = scmp.gt.s32.totalorder %s309, 0
        %s311 = scalar_select %p310, %s309, 0
        %p312 = scmp.lt.s32.totalorder %s311, 15
        %s313 = scalar_select %p312, %s311, 15
      $region40: #{c1_forward.1} parent=31 // pred_fallthru
        _
      // Predicated region
      $region41: #{c1_forward.1} parent=31 // pred_check
        %p314 = pneg %p127
      $region42: #{c1_forward.1} parent=31 // pred_check_branch
        %316 = sbr.rel (%p314) target = $region44
      $region43: #{c1_forward.1} parent=31 // pred_region
        %s317 = smul.u32 %s21, 16
        %s318 = sadd.s32 %s317, 16
        %p319 = scmp.gt.s32.totalorder %s318, 0
        %s320 = scalar_select %p319, %s318, 0
        %p321 = scmp.lt.s32.totalorder %s320, 15
        %s322 = scalar_select %p321, %s320, 15
        %p323 = scmp.lt.s32.totalorder %s20, 1
        %s324 = scalar_select %p323, %s20, 1
        %p325 = scmp.lt.s32.totalorder %s322, 15
        %s326 = scalar_select %p325, %s322, 15
        %s327 = smul.addr %s326, 2
        %s328 = smul.addr %s324, 32
        %s329 = sadd.s32 %s327, %s328
        %s330 = smul.addr %s329, 8
        %s331 = scalar_lea.vmem %s2, %s330
        %s332 = smul.u32 %s21, 16
        %s333 = sadd.s32 %s332, 16
        %p334 = scmp.gt.s32.totalorder %s333, 0
        %s335 = scalar_select %p334, %s333, 0
        %p336 = scmp.lt.s32.totalorder %s335, 15
        %s337 = scalar_select %p336, %s335, 15
      $region44: #{c1_forward.1} parent=31 // pred_fallthru
        _
    $region32: #{c1_forward.1} parent=5 // pred_fallthru
      _
    %p338 = scmp.le.s32.totalorder 1, %s13
    %p339 = scmp.lt.s32.totalorder %s13, 3
    %p340 = pnand %p338, %p339
    %p341 = pneg %p340
    // Predicated region
    $region45: #{c1_forward.1} parent=5 // pred_check
      _
    $region46: #{c1_forward.1} parent=5 // pred_check_branch
      %343 = sbr.rel (%p340) target = $region48
    $region47: #{c1_forward.1} parent=5 // pred_region
      %s344 = ssub.s32 %s13, 1
      %s345 = smul.u32 16, %s23
      %p346 = scmp.lt.s32.totalorder %s22, 1
      %s347 = scalar_select %p346, %s22, 1
      %p348 = scmp.lt.s32.totalorder %s345, 15
      %s349 = scalar_select %p348, %s345, 15
      %s350 = smul.addr %s349, 2
      %s351 = smul.addr %s347, 32
      %s352 = sadd.s32 %s350, %s351
      %s353 = smul.addr %s352, 8
      %s354 = scalar_lea.vmem %s0, %s353
      %p355 = pneg %p53
      %p356 = pneg %p50
      %s357 = smul.u32 %s23, 16
      %s358 = ssub.s32 %s357, 1
      %p359 = scmp.gt.s32.totalorder %s358, 0
      %s360 = scalar_select %p359, %s358, 0
      %p361 = scmp.lt.s32.totalorder %s360, 15
      %s362 = scalar_select %p361, %s360, 15
      %p363 = scmp.lt.s32.totalorder %s22, 1
      %s364 = scalar_select %p363, %s22, 1
      %p365 = scmp.lt.s32.totalorder %s362, 15
      %s366 = scalar_select %p365, %s362, 15
      %s367 = smul.addr %s366, 2
      %s368 = smul.addr %s364, 32
      %s369 = sadd.s32 %s367, %s368
      %s370 = smul.addr %s369, 8
      %s371 = scalar_lea.vmem %s1, %s370
      %p372 = pneg %p93
      %p373 = pneg %p90
      %s374 = smul.u32 %s23, 16
      %s375 = sadd.s32 %s374, 16
      %p376 = scmp.gt.s32.totalorder %s375, 0
      %s377 = scalar_select %p376, %s375, 0
      %p378 = scmp.lt.s32.totalorder %s377, 15
      %s379 = scalar_select %p378, %s377, 15
      %p380 = scmp.lt.s32.totalorder %s22, 1
      %s381 = scalar_select %p380, %s22, 1
      %p382 = scmp.lt.s32.totalorder %s379, 15
      %s383 = scalar_select %p382, %s379, 15
      %s384 = smul.addr %s383, 2
      %s385 = smul.addr %s381, 32
      %s386 = sadd.s32 %s384, %s385
      %s387 = smul.addr %s386, 8
      %s388 = scalar_lea.vmem %s2, %s387
      %p389 = pneg %p133
      %p390 = pneg %p130
      %p391 = pneg %p154
      %p392 = pneg %p151
      %p393 = pneg %p175
      %p394 = pneg %p172
      %p395 = pneg %p196
      %p396 = pneg %p193
      %p397 = pneg %p217
      %p398 = pneg %p214
      %p399 = pneg %p245
      %p400 = pneg %p242
      %s401 = smul.u32 16, %s23
      %p402 = scmp.lt.s32.totalorder %s22, 1
      %s403 = scalar_select %p402, %s22, 1
      %p404 = scmp.lt.s32.totalorder %s401, 15
      %s405 = scalar_select %p404, %s401, 15
      %s406 = smul.addr %s405, 2
      %s407 = smul.addr %s403, 32
      %s408 = sadd.s32 %s406, %s407
      %s409 = smul.addr %s408, 8
      %s410 = scalar_lea.vmem %s7, %s409
      %s411 = smul.u32 16, %s23
      %p412 = scmp.lt.s32.totalorder %s22, 1
      %s413 = scalar_select %p412, %s22, 1
      %p414 = scmp.lt.s32.totalorder %s411, 15
      %s415 = scalar_select %p414, %s411, 15
      %s416 = smul.addr %s415, 2
      %s417 = smul.addr %s413, 32
      %s418 = sadd.s32 %s416, %s417
      %s419 = smul.addr %s418, 8
      %s420 = scalar_lea.vmem %s0, %s419
      %s421 = smul.u32 16, %s23
      %s422 = smul.u32 %s23, 16
      %s423 = ssub.s32 %s422, 1
      %p424 = scmp.gt.s32.totalorder %s423, 0
      %s425 = scalar_select %p424, %s423, 0
      %p426 = scmp.lt.s32.totalorder %s425, 15
      %s427 = scalar_select %p426, %s425, 15
      %p428 = scmp.lt.s32.totalorder %s22, 1
      %s429 = scalar_select %p428, %s22, 1
      %p430 = scmp.lt.s32.totalorder %s427, 15
      %s431 = scalar_select %p430, %s427, 15
      %s432 = smul.addr %s431, 2
      %s433 = smul.addr %s429, 32
      %s434 = sadd.s32 %s432, %s433
      %s435 = smul.addr %s434, 8
      %s436 = scalar_lea.vmem %s1, %s435
      %s437 = smul.u32 %s23, 16
      %s438 = ssub.s32 %s437, 1
      %p439 = scmp.gt.s32.totalorder %s438, 0
      %s440 = scalar_select %p439, %s438, 0
      %p441 = scmp.lt.s32.totalorder %s440, 15
      %s442 = scalar_select %p441, %s440, 15
      %s443 = smul.u32 %s23, 16
      %s444 = sadd.s32 %s443, 16
      %p445 = scmp.gt.s32.totalorder %s444, 0
      %s446 = scalar_select %p445, %s444, 0
      %p447 = scmp.lt.s32.totalorder %s446, 15
      %s448 = scalar_select %p447, %s446, 15
      %p449 = scmp.lt.s32.totalorder %s22, 1
      %s450 = scalar_select %p449, %s22, 1
      %p451 = scmp.lt.s32.totalorder %s448, 15
      %s452 = scalar_select %p451, %s448, 15
      %s453 = smul.addr %s452, 2
      %s454 = smul.addr %s450, 32
      %s455 = sadd.s32 %s453, %s454
      %s456 = smul.addr %s455, 8
      %s457 = scalar_lea.vmem %s2, %s456
      %s458 = smul.u32 %s23, 16
      %s459 = sadd.s32 %s458, 16
      %p460 = scmp.gt.s32.totalorder %s459, 0
      %s461 = scalar_select %p460, %s459, 0
      %p462 = scmp.lt.s32.totalorder %s461, 15
      %s463 = scalar_select %p462, %s461, 15
      %s464 = smul.u32 16, %s23
      %p465 = scmp.lt.s32.totalorder %s22, 1
      %s466 = scalar_select %p465, %s22, 1
      %p467 = scmp.lt.s32.totalorder %s464, 15
      %s468 = scalar_select %p467, %s464, 15
      %s469 = smul.addr %s468, 2
      %s470 = smul.addr %s466, 32
      %s471 = sadd.s32 %s469, %s470
      %s472 = smul.addr %s471, 8
      %s473 = scalar_lea.vmem %s7, %s472
      %s474 = smul.u32 16, %s23
      %s476 = smul.u32 %s23, 16
      %s477 = ssub.s32 %s476, 1
      %v478 = vld [vmem:[%s436] sm:$0xff]
      %v479 = vld [vmem:[%s436 + $0x8] sm:$0xff]
      %v480 = vld [vmem:[%s420] sm:$0xff]
      %v481 = vld [vmem:[%s420 + $0x8] sm:$0xff]
      %v482 = vld [vmem:[%s420 + $0x10] sm:$0xff]
      %v483 = vld [vmem:[%s420 + $0x18] sm:$0xff]
      %v484 = vld [vmem:[%s420 + $0x20] sm:$0xff]
      %v485 = vld [vmem:[%s420 + $0x28] sm:$0xff]
      %v486 = vld [vmem:[%s420 + $0x30] sm:$0xff]
      %v487 = vld [vmem:[%s420 + $0x38] sm:$0xff]
      %v488 = vld [vmem:[%s420 + $0x40] sm:$0xff]
      %v489 = vld [vmem:[%s420 + $0x48] sm:$0xff]
      %v490 = vld [vmem:[%s420 + $0x50] sm:$0xff]
      %v491 = vld [vmem:[%s420 + $0x58] sm:$0xff]
      %v492 = vld [vmem:[%s420 + $0x60] sm:$0xff]
      %v493 = vld [vmem:[%s420 + $0x68] sm:$0xff]
      %v494 = vld [vmem:[%s420 + $0x70] sm:$0xff]
      %v495 = vld [vmem:[%s420 + $0x78] sm:$0xff]
      %v496 = vld [vmem:[%s420 + $0x80] sm:$0xff]
      %v497 = vld [vmem:[%s420 + $0x88] sm:$0xff]
      %v498 = vld [vmem:[%s420 + $0x90] sm:$0xff]
      %v499 = vld [vmem:[%s420 + $0x98] sm:$0xff]
      %v500 = vld [vmem:[%s420 + $0xa0] sm:$0xff]
      %v501 = vld [vmem:[%s420 + $0xa8] sm:$0xff]
      %v502 = vld [vmem:[%s420 + $0xb0] sm:$0xff]
      %v503 = vld [vmem:[%s420 + $0xb8] sm:$0xff]
      %v504 = vld [vmem:[%s420 + $0xc0] sm:$0xff]
      %v505 = vld [vmem:[%s420 + $0xc8] sm:$0xff]
      %v506 = vld [vmem:[%s420 + $0xd0] sm:$0xff]
      %v507 = vld [vmem:[%s420 + $0xd8] sm:$0xff]
      %v508 = vld [vmem:[%s420 + $0xe0] sm:$0xff]
      %v509 = vld [vmem:[%s420 + $0xe8] sm:$0xff]
      %v510 = vld [vmem:[%s420 + $0xf0] sm:$0xff]
      %v511 = vld [vmem:[%s420 + $0xf8] sm:$0xff]
      %v512 = vld [vmem:[%s457] sm:$0xff]
      %v513 = vld [vmem:[%s457 + $0x8] sm:$0xff]
      %v514 = vpack.c.bf16 %v479, %v478
      %v515 = vpack.c.bf16 %v481, %v480
      %v516 = vpack.c.bf16 %v483, %v482
      %v517 = vpack.c.bf16 %v485, %v484
      %v518 = vpack.c.bf16 %v487, %v486
      %v519 = vpack.c.bf16 %v489, %v488
      %v520 = vpack.c.bf16 %v491, %v490
      %v521 = vpack.c.bf16 %v493, %v492
      %v522 = vpack.c.bf16 %v495, %v494
      %v523 = vpack.c.bf16 %v497, %v496
      %v524 = vpack.c.bf16 %v499, %v498
      %v525 = vpack.c.bf16 %v501, %v500
      %v526 = vpack.c.bf16 %v503, %v502
      %v527 = vpack.c.bf16 %v505, %v504
      %v528 = vpack.c.bf16 %v507, %v506
      %v529 = vpack.c.bf16 %v509, %v508
      %v530 = vpack.c.bf16 %v511, %v510
      %v531 = vpack.c.bf16 %v513, %v512
      %v532 = vld [vmem:[%s3] sm:$0x3]
      %v533 = vld [vmem:[%s4] sm:$0x1]
      %v535 = vlaneseq
      %v536 = vshrl.u32 %v535, 7
      %v537 = vsub.s32 0, %v536
      %v538 = vrot.slane %v533, %v537
      %vm540 = vcmask 31744
      %v542 = vsel %vm540, %v514, 0
      %v545 = vsel %vm540, %v515, 0
      %v548 = vsel %vm540, %v516, 0
      %v551 = vsel %vm540, %v517, 0
      %v554 = vsel %vm540, %v518, 0
      %v557 = vsel %vm540, %v519, 0
      %v560 = vsel %vm540, %v520, 0
      %v563 = vsel %vm540, %v521, 0
      %v566 = vsel %vm540, %v522, 0
      %v569 = vsel %vm540, %v523, 0
      %v572 = vsel %vm540, %v524, 0
      %v575 = vsel %vm540, %v525, 0
      %v578 = vsel %vm540, %v526, 0
      %v581 = vsel %vm540, %v527, 0
      %v584 = vsel %vm540, %v528, 0
      %v587 = vsel %vm540, %v529, 0
      %v590 = vsel %vm540, %v530, 0
      %v593 = vsel %vm540, %v531, 0
      %vm595 = vcmask 1041408
      %v597 = vsel %vm595, %v532, 0
      %599 = vmatprep.subr.bf16.mxu0 0
      %600 = vmatpush1.bf16.msra.mxu0 0
      %601 = vmatprep.subr.bf16.mxu0 0
      %602 = vmatpush1.bf16.msra.mxu0 0
      %603 = vmatprep.subr.bf16.mxu0 0
      %604 = vmatpush1.bf16.msra.mxu0 0
      %605 = vmatprep.subr.bf16.mxu0 0
      %606 = vmatpush1.bf16.msra.mxu0 0
      %607 = vmatprep.subr.bf16.mxu0 0
      %608 = vmatpush1.bf16.msra.mxu0 0
      %609 = vmatprep.subr.bf16.mxu0 0
      %610 = vmatpush1.bf16.msra.mxu0 0
      %611 = vmatprep.subr.bf16.mxu0 0
      %612 = vmatpush1.bf16.msra.mxu0 0
      %613 = vmatprep.subr.bf16.mxu0 0
      %614 = vmatpush1.bf16.msra.mxu0 %v597
      %615 = vmatprep.subr.bf16.mxu0 0
      %616 = vmatpush2.bf16.msra.mxu0 0
      %617 = vmatprep.subr.bf16.mxu0 0
      %618 = vmatpush2.bf16.msra.mxu0 0
      %619 = vmatprep.subr.bf16.mxu0 0
      %620 = vmatpush2.bf16.msra.mxu0 0
      %621 = vmatprep.subr.bf16.mxu0 0
      %622 = vmatpush2.bf16.msra.mxu0 0
      %623 = vmatprep.subr.bf16.mxu0 0
      %624 = vmatpush2.bf16.msra.mxu0 0
      %625 = vmatprep.subr.bf16.mxu0 0
      %626 = vmatpush2.bf16.msra.mxu0 0
      %627 = vmatprep.subr.bf16.mxu0 0
      %628 = vmatpush2.bf16.msra.mxu0 0
      %629 = vmatprep.subr.bf16.mxu0 0
      %630 = vmatpush2.bf16.msra.mxu0 0
      %631 = vmatprep.mubr.bf16.mxu0 0
      %632 = vmatmul.mubr.bf16.gmra.mxu0 %v542
      %v633 = vpop.f32.mrf.mxu0
      %v634 = vadd.f32 %v538, %v633
      %v635 = vpop.f32.mrf.mxu0
      %v636 = vpop.f32.mrf.mxu0
      %v637 = vadd.f32 %v538, %v636
      %v638 = vpop.f32.mrf.mxu0
      %639 = vmatprep.mubr.bf16.mxu0 0
      %640 = vmatmul.mubr.bf16.gmra.mxu0 %v545
      %v641 = vpop.f32.mrf.mxu0
      %v642 = vadd.f32 %v538, %v641
      %v643 = vpop.f32.mrf.mxu0
      %v644 = vpop.f32.mrf.mxu0
      %v645 = vadd.f32 %v538, %v644
      %v646 = vpop.f32.mrf.mxu0
      %647 = vmatprep.mubr.bf16.mxu0 0
      %648 = vmatmul.mubr.bf16.gmra.mxu0 %v548
      %v649 = vpop.f32.mrf.mxu0
      %v650 = vadd.f32 %v538, %v649
      %v651 = vpop.f32.mrf.mxu0
      %v652 = vpop.f32.mrf.mxu0
      %v653 = vadd.f32 %v538, %v652
      %v654 = vpop.f32.mrf.mxu0
      %655 = vmatprep.mubr.bf16.mxu0 0
      %656 = vmatmul.mubr.bf16.gmra.mxu0 %v551
      %v657 = vpop.f32.mrf.mxu0
      %v658 = vadd.f32 %v538, %v657
      %v659 = vpop.f32.mrf.mxu0
      %v660 = vpop.f32.mrf.mxu0
      %v661 = vadd.f32 %v538, %v660
      %v662 = vpop.f32.mrf.mxu0
      %663 = vmatprep.mubr.bf16.mxu0 0
      %664 = vmatmul.mubr.bf16.gmra.mxu0 %v554
      %v665 = vpop.f32.mrf.mxu0
      %v666 = vadd.f32 %v538, %v665
      %v667 = vpop.f32.mrf.mxu0
      %v668 = vpop.f32.mrf.mxu0
      %v669 = vadd.f32 %v538, %v668
      %v670 = vpop.f32.mrf.mxu0
      %671 = vmatprep.mubr.bf16.mxu0 0
      %672 = vmatmul.mubr.bf16.gmra.mxu0 %v557
      %v673 = vpop.f32.mrf.mxu0
      %v674 = vadd.f32 %v538, %v673
      %v675 = vpop.f32.mrf.mxu0
      %v676 = vpop.f32.mrf.mxu0
      %v677 = vadd.f32 %v538, %v676
      %v678 = vpop.f32.mrf.mxu0
      %679 = vmatprep.mubr.bf16.mxu0 0
      %680 = vmatmul.mubr.bf16.gmra.mxu0 %v560
      %v681 = vpop.f32.mrf.mxu0
      %v682 = vadd.f32 %v538, %v681
      %v683 = vpop.f32.mrf.mxu0
      %v684 = vpop.f32.mrf.mxu0
      %v685 = vadd.f32 %v538, %v684
      %v686 = vpop.f32.mrf.mxu0
      %687 = vmatprep.mubr.bf16.mxu0 0
      %688 = vmatmul.mubr.bf16.gmra.mxu0 %v563
      %v689 = vpop.f32.mrf.mxu0
      %v690 = vadd.f32 %v538, %v689
      %v691 = vpop.f32.mrf.mxu0
      %v692 = vpop.f32.mrf.mxu0
      %v693 = vadd.f32 %v538, %v692
      %v694 = vpop.f32.mrf.mxu0
      %695 = vmatprep.mubr.bf16.mxu0 0
      %696 = vmatmul.mubr.bf16.gmra.mxu0 %v566
      %v697 = vpop.f32.mrf.mxu0
      %v698 = vadd.f32 %v538, %v697
      %v699 = vpop.f32.mrf.mxu0
      %v700 = vpop.f32.mrf.mxu0
      %v701 = vadd.f32 %v538, %v700
      %v702 = vpop.f32.mrf.mxu0
      %703 = vmatprep.mubr.bf16.mxu0 0
      %704 = vmatmul.mubr.bf16.gmra.mxu0 %v569
      %v705 = vpop.f32.mrf.mxu0
      %v706 = vadd.f32 %v538, %v705
      %v707 = vpop.f32.mrf.mxu0
      %v708 = vpop.f32.mrf.mxu0
      %v709 = vadd.f32 %v538, %v708
      %v710 = vpop.f32.mrf.mxu0
      %711 = vmatprep.mubr.bf16.mxu0 0
      %712 = vmatmul.mubr.bf16.gmra.mxu0 %v572
      %v713 = vpop.f32.mrf.mxu0
      %v714 = vadd.f32 %v538, %v713
      %v715 = vpop.f32.mrf.mxu0
      %v716 = vpop.f32.mrf.mxu0
      %v717 = vadd.f32 %v538, %v716
      %v718 = vpop.f32.mrf.mxu0
      %719 = vmatprep.mubr.bf16.mxu0 0
      %720 = vmatmul.mubr.bf16.gmra.mxu0 %v575
      %v721 = vpop.f32.mrf.mxu0
      %v722 = vadd.f32 %v538, %v721
      %v723 = vpop.f32.mrf.mxu0
      %v724 = vpop.f32.mrf.mxu0
      %v725 = vadd.f32 %v538, %v724
      %v726 = vpop.f32.mrf.mxu0
      %727 = vmatprep.mubr.bf16.mxu0 0
      %728 = vmatmul.mubr.bf16.gmra.mxu0 %v578
      %v729 = vpop.f32.mrf.mxu0
      %v730 = vadd.f32 %v538, %v729
      %v731 = vpop.f32.mrf.mxu0
      %v732 = vpop.f32.mrf.mxu0
      %v733 = vadd.f32 %v538, %v732
      %v734 = vpop.f32.mrf.mxu0
      %735 = vmatprep.mubr.bf16.mxu0 0
      %736 = vmatmul.mubr.bf16.gmra.mxu0 %v581
      %v737 = vpop.f32.mrf.mxu0
      %v738 = vadd.f32 %v538, %v737
      %v739 = vpop.f32.mrf.mxu0
      %v740 = vpop.f32.mrf.mxu0
      %v741 = vadd.f32 %v538, %v740
      %v742 = vpop.f32.mrf.mxu0
      %743 = vmatprep.mubr.bf16.mxu0 0
      %744 = vmatmul.mubr.bf16.gmra.mxu0 %v584
      %v745 = vpop.f32.mrf.mxu0
      %v746 = vadd.f32 %v538, %v745
      %v747 = vpop.f32.mrf.mxu0
      %v748 = vpop.f32.mrf.mxu0
      %v749 = vadd.f32 %v538, %v748
      %v750 = vpop.f32.mrf.mxu0
      %751 = vmatprep.mubr.bf16.mxu0 0
      %752 = vmatmul.mubr.bf16.gmra.mxu0 %v587
      %v753 = vpop.f32.mrf.mxu0
      %v754 = vadd.f32 %v538, %v753
      %v755 = vpop.f32.mrf.mxu0
      %v756 = vpop.f32.mrf.mxu0
      %v757 = vadd.f32 %v538, %v756
      %v758 = vpop.f32.mrf.mxu0
      %759 = vmatprep.mubr.bf16.mxu0 0
      %760 = vmatmul.mubr.bf16.gmra.mxu0 %v590
      %v761 = vpop.f32.mrf.mxu0
      %v762 = vadd.f32 %v538, %v761
      %v763 = vpop.f32.mrf.mxu0
      %v764 = vpop.f32.mrf.mxu0
      %v765 = vadd.f32 %v538, %v764
      %v766 = vpop.f32.mrf.mxu0
      %767 = vmatprep.mubr.bf16.mxu0 0
      %768 = vmatmul.mubr.bf16.gmra.mxu0 %v593
      %v769 = vpop.f32.mrf.mxu0
      %v770 = vadd.f32 %v538, %v769
      %v771 = vpop.f32.mrf.mxu0
      %v772 = vpop.f32.mrf.mxu0
      %v773 = vadd.f32 %v538, %v772
      %v774 = vpop.f32.mrf.mxu0
      %775 = vdwg.mxu0
      %v776 = vsub.f32 0.0, %v634
      %v777 = vsub.f32 0.0, %v637
      %v778 = vsub.f32 0.0, %v642
      %v779 = vsub.f32 0.0, %v645
      %v780 = vsub.f32 0.0, %v650
      %v781 = vsub.f32 0.0, %v653
      %v782 = vsub.f32 0.0, %v658
      %v783 = vsub.f32 0.0, %v661
      %v784 = vsub.f32 0.0, %v666
      %v785 = vsub.f32 0.0, %v669
      %v786 = vsub.f32 0.0, %v674
      %v787 = vsub.f32 0.0, %v677
      %v788 = vsub.f32 0.0, %v682
      %v789 = vsub.f32 0.0, %v685
      %v790 = vsub.f32 0.0, %v690
      %v791 = vsub.f32 0.0, %v693
      %v792 = vsub.f32 0.0, %v698
      %v793 = vsub.f32 0.0, %v701
      %v794 = vsub.f32 0.0, %v706
      %v795 = vsub.f32 0.0, %v709
      %v796 = vsub.f32 0.0, %v714
      %v797 = vsub.f32 0.0, %v717
      %v798 = vsub.f32 0.0, %v722
      %v799 = vsub.f32 0.0, %v725
      %v800 = vsub.f32 0.0, %v730
      %v801 = vsub.f32 0.0, %v733
      %v802 = vsub.f32 0.0, %v738
      %v803 = vsub.f32 0.0, %v741
      %v804 = vsub.f32 0.0, %v746
      %v805 = vsub.f32 0.0, %v749
      %v806 = vsub.f32 0.0, %v754
      %v807 = vsub.f32 0.0, %v757
      %v808 = vsub.f32 0.0, %v762
      %v809 = vsub.f32 0.0, %v765
      %v810 = vsub.f32 0.0, %v770
      %v811 = vsub.f32 0.0, %v773
      %v812 = vmul.f32 %v776, 1.442695
      %v813 = vpow.pop %v812
      %v814 = vmul.f32 %v777, 1.442695
      %v815 = vpow.pop %v814
      %v816 = vmul.f32 %v778, 1.442695
      %v817 = vpow.pop %v816
      %v818 = vmul.f32 %v779, 1.442695
      %v819 = vpow.pop %v818
      %v820 = vmul.f32 %v780, 1.442695
      %v821 = vpow.pop %v820
      %v822 = vmul.f32 %v781, 1.442695
      %v823 = vpow.pop %v822
      %v824 = vmul.f32 %v782, 1.442695
      %v825 = vpow.pop %v824
      %v826 = vmul.f32 %v783, 1.442695
      %v827 = vpow.pop %v826
      %v828 = vmul.f32 %v784, 1.442695
      %v829 = vpow.pop %v828
      %v830 = vmul.f32 %v785, 1.442695
      %v831 = vpow.pop %v830
      %v832 = vmul.f32 %v786, 1.442695
      %v833 = vpow.pop %v832
      %v834 = vmul.f32 %v787, 1.442695
      %v835 = vpow.pop %v834
      %v836 = vmul.f32 %v788, 1.442695
      %v837 = vpow.pop %v836
      %v838 = vmul.f32 %v789, 1.442695
      %v839 = vpow.pop %v838
      %v840 = vmul.f32 %v790, 1.442695
      %v841 = vpow.pop %v840
      %v842 = vmul.f32 %v791, 1.442695
      %v843 = vpow.pop %v842
      %v844 = vmul.f32 %v792, 1.442695
      %v845 = vpow.pop %v844
      %v846 = vmul.f32 %v793, 1.442695
      %v847 = vpow.pop %v846
      %v848 = vmul.f32 %v794, 1.442695
      %v849 = vpow.pop %v848
      %v850 = vmul.f32 %v795, 1.442695
      %v851 = vpow.pop %v850
      %v852 = vmul.f32 %v796, 1.442695
      %v853 = vpow.pop %v852
      %v854 = vmul.f32 %v797, 1.442695
      %v855 = vpow.pop %v854
      %v856 = vmul.f32 %v798, 1.442695
      %v857 = vpow.pop %v856
      %v858 = vmul.f32 %v799, 1.442695
      %v859 = vpow.pop %v858
      %v860 = vmul.f32 %v800, 1.442695
      %v861 = vpow.pop %v860
      %v862 = vmul.f32 %v801, 1.442695
      %v863 = vpow.pop %v862
      %v864 = vmul.f32 %v802, 1.442695
      %v865 = vpow.pop %v864
      %v866 = vmul.f32 %v803, 1.442695
      %v867 = vpow.pop %v866
      %v868 = vmul.f32 %v804, 1.442695
      %v869 = vpow.pop %v868
      %v870 = vmul.f32 %v805, 1.442695
      %v871 = vpow.pop %v870
      %v872 = vmul.f32 %v806, 1.442695
      %v873 = vpow.pop %v872
      %v874 = vmul.f32 %v807, 1.442695
      %v875 = vpow.pop %v874
      %v876 = vmul.f32 %v808, 1.442695
      %v877 = vpow.pop %v876
      %v878 = vmul.f32 %v809, 1.442695
      %v879 = vpow.pop %v878
      %v880 = vmul.f32 %v810, 1.442695
      %v881 = vpow.pop %v880
      %v882 = vmul.f32 %v811, 1.442695
      %v883 = vpow.pop %v882
      %v884 = vadd.f32 %v813, 1.0
      %v885 = vadd.f32 %v815, 1.0
      %v886 = vadd.f32 %v817, 1.0
      %v887 = vadd.f32 %v819, 1.0
      %v888 = vadd.f32 %v821, 1.0
      %v889 = vadd.f32 %v823, 1.0
      %v890 = vadd.f32 %v825, 1.0
      %v891 = vadd.f32 %v827, 1.0
      %v892 = vadd.f32 %v829, 1.0
      %v893 = vadd.f32 %v831, 1.0
      %v894 = vadd.f32 %v833, 1.0
      %v895 = vadd.f32 %v835, 1.0
      %v896 = vadd.f32 %v837, 1.0
      %v897 = vadd.f32 %v839, 1.0
      %v898 = vadd.f32 %v841, 1.0
      %v899 = vadd.f32 %v843, 1.0
      %v900 = vadd.f32 %v845, 1.0
      %v901 = vadd.f32 %v847, 1.0
      %v902 = vadd.f32 %v849, 1.0
      %v903 = vadd.f32 %v851, 1.0
      %v904 = vadd.f32 %v853, 1.0
      %v905 = vadd.f32 %v855, 1.0
      %v906 = vadd.f32 %v857, 1.0
      %v907 = vadd.f32 %v859, 1.0
      %v908 = vadd.f32 %v861, 1.0
      %v909 = vadd.f32 %v863, 1.0
      %v910 = vadd.f32 %v865, 1.0
      %v911 = vadd.f32 %v867, 1.0
      %v912 = vadd.f32 %v869, 1.0
      %v913 = vadd.f32 %v871, 1.0
      %v914 = vadd.f32 %v873, 1.0
      %v915 = vadd.f32 %v875, 1.0
      %v916 = vadd.f32 %v877, 1.0
      %v917 = vadd.f32 %v879, 1.0
      %v918 = vadd.f32 %v881, 1.0
      %v919 = vadd.f32 %v883, 1.0
      %v920 = vrcp.pop %v884
      %v921 = vrcp.pop %v885
      %v922 = vrcp.pop %v886
      %v923 = vrcp.pop %v887
      %v924 = vrcp.pop %v888
      %v925 = vrcp.pop %v889
      %v926 = vrcp.pop %v890
      %v927 = vrcp.pop %v891
      %v928 = vrcp.pop %v892
      %v929 = vrcp.pop %v893
      %v930 = vrcp.pop %v894
      %v931 = vrcp.pop %v895
      %v932 = vrcp.pop %v896
      %v933 = vrcp.pop %v897
      %v934 = vrcp.pop %v898
      %v935 = vrcp.pop %v899
      %v936 = vrcp.pop %v900
      %v937 = vrcp.pop %v901
      %v938 = vrcp.pop %v902
      %v939 = vrcp.pop %v903
      %v940 = vrcp.pop %v904
      %v941 = vrcp.pop %v905
      %v942 = vrcp.pop %v906
      %v943 = vrcp.pop %v907
      %v944 = vrcp.pop %v908
      %v945 = vrcp.pop %v909
      %v946 = vrcp.pop %v910
      %v947 = vrcp.pop %v911
      %v948 = vrcp.pop %v912
      %v949 = vrcp.pop %v913
      %v950 = vrcp.pop %v914
      %v951 = vrcp.pop %v915
      %v952 = vrcp.pop %v916
      %v953 = vrcp.pop %v917
      %v954 = vrcp.pop %v918
      %v955 = vrcp.pop %v919
      %v956 = vmul.f32 %v634, %v920
      %v957 = vmul.f32 %v637, %v921
      %v958 = vmul.f32 %v642, %v922
      %v959 = vmul.f32 %v645, %v923
      %v960 = vmul.f32 %v650, %v924
      %v961 = vmul.f32 %v653, %v925
      %v962 = vmul.f32 %v658, %v926
      %v963 = vmul.f32 %v661, %v927
      %v964 = vmul.f32 %v666, %v928
      %v965 = vmul.f32 %v669, %v929
      %v966 = vmul.f32 %v674, %v930
      %v967 = vmul.f32 %v677, %v931
      %v968 = vmul.f32 %v682, %v932
      %v969 = vmul.f32 %v685, %v933
      %v970 = vmul.f32 %v690, %v934
      %v971 = vmul.f32 %v693, %v935
      %v972 = vmul.f32 %v698, %v936
      %v973 = vmul.f32 %v701, %v937
      %v974 = vmul.f32 %v706, %v938
      %v975 = vmul.f32 %v709, %v939
      %v976 = vmul.f32 %v714, %v940
      %v977 = vmul.f32 %v717, %v941
      %v978 = vmul.f32 %v722, %v942
      %v979 = vmul.f32 %v725, %v943
      %v980 = vmul.f32 %v730, %v944
      %v981 = vmul.f32 %v733, %v945
      %v982 = vmul.f32 %v738, %v946
      %v983 = vmul.f32 %v741, %v947
      %v984 = vmul.f32 %v746, %v948
      %v985 = vmul.f32 %v749, %v949
      %v986 = vmul.f32 %v754, %v950
      %v987 = vmul.f32 %v757, %v951
      %v988 = vmul.f32 %v762, %v952
      %v989 = vmul.f32 %v765, %v953
      %v990 = vmul.f32 %v770, %v954
      %v991 = vmul.f32 %v773, %v955
      %vm992 = vcmask 64512
      %993 = vst.msk [vmem:[#allocation2] sm:$0xff] %vm992, %v956
      %994 = vst.msk [vmem:[#allocation2 + $0x8] sm:$0xff] %vm992, %v957
      %995 = vst.msk [vmem:[#allocation2 + $0x10] sm:$0xff] %vm992, %v958
      %996 = vst.msk [vmem:[#allocation2 + $0x18] sm:$0xff] %vm992, %v959
      %997 = vst.msk [vmem:[#allocation2 + $0x20] sm:$0xff] %vm992, %v960
      %998 = vst.msk [vmem:[#allocation2 + $0x28] sm:$0xff] %vm992, %v961
      %999 = vst.msk [vmem:[#allocation2 + $0x30] sm:$0xff] %vm992, %v962
      %1000 = vst.msk [vmem:[#allocation2 + $0x38] sm:$0xff] %vm992, %v963
      %1001 = vst.msk [vmem:[#allocation2 + $0x40] sm:$0xff] %vm992, %v964
      %1002 = vst.msk [vmem:[#allocation2 + $0x48] sm:$0xff] %vm992, %v965
      %1003 = vst.msk [vmem:[#allocation2 + $0x50] sm:$0xff] %vm992, %v966
      %1004 = vst.msk [vmem:[#allocation2 + $0x58] sm:$0xff] %vm992, %v967
      %1005 = vst.msk [vmem:[#allocation2 + $0x60] sm:$0xff] %vm992, %v968
      %1006 = vst.msk [vmem:[#allocation2 + $0x68] sm:$0xff] %vm992, %v969
      %1007 = vst.msk [vmem:[#allocation2 + $0x70] sm:$0xff] %vm992, %v970
      %1008 = vst.msk [vmem:[#allocation2 + $0x78] sm:$0xff] %vm992, %v971
      %1009 = vst.msk [vmem:[#allocation2 + $0x80] sm:$0xff] %vm992, %v972
      %1010 = vst.msk [vmem:[#allocation2 + $0x88] sm:$0xff] %vm992, %v973
      %1011 = vst.msk [vmem:[#allocation2 + $0x90] sm:$0xff] %vm992, %v974
      %1012 = vst.msk [vmem:[#allocation2 + $0x98] sm:$0xff] %vm992, %v975
      %1013 = vst.msk [vmem:[#allocation2 + $0xa0] sm:$0xff] %vm992, %v976
      %1014 = vst.msk [vmem:[#allocation2 + $0xa8] sm:$0xff] %vm992, %v977
      %1015 = vst.msk [vmem:[#allocation2 + $0xb0] sm:$0xff] %vm992, %v978
      %1016 = vst.msk [vmem:[#allocation2 + $0xb8] sm:$0xff] %vm992, %v979
      %1017 = vst.msk [vmem:[#allocation2 + $0xc0] sm:$0xff] %vm992, %v980
      %1018 = vst.msk [vmem:[#allocation2 + $0xc8] sm:$0xff] %vm992, %v981
      %1019 = vst.msk [vmem:[#allocation2 + $0xd0] sm:$0xff] %vm992, %v982
      %1020 = vst.msk [vmem:[#allocation2 + $0xd8] sm:$0xff] %vm992, %v983
      %1021 = vst.msk [vmem:[#allocation2 + $0xe0] sm:$0xff] %vm992, %v984
      %1022 = vst.msk [vmem:[#allocation2 + $0xe8] sm:$0xff] %vm992, %v985
      %1023 = vst.msk [vmem:[#allocation2 + $0xf0] sm:$0xff] %vm992, %v986
      %1024 = vst.msk [vmem:[#allocation2 + $0xf8] sm:$0xff] %vm992, %v987
      %1025 = vst.msk [vmem:[#allocation2 + $0x100] sm:$0xff] %vm992, %v988
      %1026 = vst.msk [vmem:[#allocation2 + $0x108] sm:$0xff] %vm992, %v989
      %1027 = vst.msk [vmem:[#allocation2 + $0x110] sm:$0xff] %vm992, %v990
      %1028 = vst.msk [vmem:[#allocation2 + $0x118] sm:$0xff] %vm992, %v991
      %v1029 = vlaneseq
      %v1030 = vshrl.u32 %v1029, 7
      %v1031 = vadd.s32 %v1030, 8
      %v1032 = vstv %s477
      %v1033 = vadd.s32 %v1032, 1
      %v1034 = vadd.s32 %v1032, 2
      %v1035 = vadd.s32 %v1032, 3
      %v1036 = vadd.s32 %v1032, 4
      %v1037 = vadd.s32 %v1032, 5
      %v1038 = vadd.s32 %v1032, 6
      %v1039 = vadd.s32 %v1032, 7
      %v1040 = vadd.s32 %v1032, 8
      %v1041 = vadd.s32 %v1032, 9
      %v1042 = vadd.s32 %v1032, 10
      %v1043 = vadd.s32 %v1032, 11
      %v1044 = vadd.s32 %v1032, 12
      %v1045 = vadd.s32 %v1032, 13
      %v1046 = vadd.s32 %v1032, 14
      %v1047 = vadd.s32 %v1032, 15
      %v1048 = vadd.s32 %v1032, 16
      %v1049 = vadd.s32 %v1032, 17
      %vm1050 = vcmp.lt.s32.totalorder %v1030, 16
      %vm1051 = vcmp.lt.s32.totalorder %v1031, 16
      %vm1052 = vcmp.ge.s32.totalorder %v1032, 0
      %vm1053 = vcmp.ge.s32.totalorder %v1033, 0
      %vm1054 = vcmp.ge.s32.totalorder %v1034, 0
      %vm1055 = vcmp.ge.s32.totalorder %v1035, 0
      %vm1056 = vcmp.ge.s32.totalorder %v1036, 0
      %vm1057 = vcmp.ge.s32.totalorder %v1037, 0
      %vm1058 = vcmp.ge.s32.totalorder %v1038, 0
      %vm1059 = vcmp.ge.s32.totalorder %v1039, 0
      %vm1060 = vcmp.ge.s32.totalorder %v1040, 0
      %vm1061 = vcmp.ge.s32.totalorder %v1041, 0
      %vm1062 = vcmp.ge.s32.totalorder %v1042, 0
      %vm1063 = vcmp.ge.s32.totalorder %v1043, 0
      %vm1064 = vcmp.ge.s32.totalorder %v1044, 0
      %vm1065 = vcmp.ge.s32.totalorder %v1045, 0
      %vm1066 = vcmp.ge.s32.totalorder %v1046, 0
      %vm1067 = vcmp.ge.s32.totalorder %v1047, 0
      %vm1068 = vcmp.ge.s32.totalorder %v1048, 0
      %vm1069 = vcmp.ge.s32.totalorder %v1049, 0
      %vm1070 = vmand %vm1050, %vm1052
      %vm1071 = vmand %vm1051, %vm1052
      %vm1072 = vmand %vm1050, %vm1053
      %vm1073 = vmand %vm1051, %vm1053
      %vm1074 = vmand %vm1050, %vm1054
      %vm1075 = vmand %vm1051, %vm1054
      %vm1076 = vmand %vm1050, %vm1055
      %vm1077 = vmand %vm1051, %vm1055
      %vm1078 = vmand %vm1050, %vm1056
      %vm1079 = vmand %vm1051, %vm1056
      %vm1080 = vmand %vm1050, %vm1057
      %vm1081 = vmand %vm1051, %vm1057
      %vm1082 = vmand %vm1050, %vm1058
      %vm1083 = vmand %vm1051, %vm1058
      %vm1084 = vmand %vm1050, %vm1059
      %vm1085 = vmand %vm1051, %vm1059
      %vm1086 = vmand %vm1050, %vm1060
      %vm1087 = vmand %vm1051, %vm1060
      %vm1088 = vmand %vm1050, %vm1061
      %vm1089 = vmand %vm1051, %vm1061
      %vm1090 = vmand %vm1050, %vm1062
      %vm1091 = vmand %vm1051, %vm1062
      %vm1092 = vmand %vm1050, %vm1063
      %vm1093 = vmand %vm1051, %vm1063
      %vm1094 = vmand %vm1050, %vm1064
      %vm1095 = vmand %vm1051, %vm1064
      %vm1096 = vmand %vm1050, %vm1065
      %vm1097 = vmand %vm1051, %vm1065
      %vm1098 = vmand %vm1050, %vm1066
      %vm1099 = vmand %vm1051, %vm1066
      %vm1100 = vmand %vm1050, %vm1067
      %vm1101 = vmand %vm1051, %vm1067
      %vm1102 = vmand %vm1050, %vm1068
      %vm1103 = vmand %vm1051, %vm1068
      %vm1104 = vmand %vm1050, %vm1069
      %vm1105 = vmand %vm1051, %vm1069
      %vm1106 = vcmp.lt.s32.totalorder %v1032, 16
      %vm1107 = vcmp.lt.s32.totalorder %v1033, 16
      %vm1108 = vcmp.lt.s32.totalorder %v1034, 16
      %vm1109 = vcmp.lt.s32.totalorder %v1035, 16
      %vm1110 = vcmp.lt.s32.totalorder %v1036, 16
      %vm1111 = vcmp.lt.s32.totalorder %v1037, 16
      %vm1112 = vcmp.lt.s32.totalorder %v1038, 16
      %vm1113 = vcmp.lt.s32.totalorder %v1039, 16
      %vm1114 = vcmp.lt.s32.totalorder %v1040, 16
      %vm1115 = vcmp.lt.s32.totalorder %v1041, 16
      %vm1116 = vcmp.lt.s32.totalorder %v1042, 16
      %vm1117 = vcmp.lt.s32.totalorder %v1043, 16
      %vm1118 = vcmp.lt.s32.totalorder %v1044, 16
      %vm1119 = vcmp.lt.s32.totalorder %v1045, 16
      %vm1120 = vcmp.lt.s32.totalorder %v1046, 16
      %vm1121 = vcmp.lt.s32.totalorder %v1047, 16
      %vm1122 = vcmp.lt.s32.totalorder %v1048, 16
      %vm1123 = vcmp.lt.s32.totalorder %v1049, 16
      %vm1124 = vmand %vm1070, %vm1106
      %vm1125 = vmand %vm1071, %vm1106
      %vm1126 = vmand %vm1072, %vm1107
      %vm1127 = vmand %vm1073, %vm1107
      %vm1128 = vmand %vm1074, %vm1108
      %vm1129 = vmand %vm1075, %vm1108
      %vm1130 = vmand %vm1076, %vm1109
      %vm1131 = vmand %vm1077, %vm1109
      %vm1132 = vmand %vm1078, %vm1110
      %vm1133 = vmand %vm1079, %vm1110
      %vm1134 = vmand %vm1080, %vm1111
      %vm1135 = vmand %vm1081, %vm1111
      %vm1136 = vmand %vm1082, %vm1112
      %vm1137 = vmand %vm1083, %vm1112
      %vm1138 = vmand %vm1084, %vm1113
      %vm1139 = vmand %vm1085, %vm1113
      %vm1140 = vmand %vm1086, %vm1114
      %vm1141 = vmand %vm1087, %vm1114
      %vm1142 = vmand %vm1088, %vm1115
      %vm1143 = vmand %vm1089, %vm1115
      %vm1144 = vmand %vm1090, %vm1116
      %vm1145 = vmand %vm1091, %vm1116
      %vm1146 = vmand %vm1092, %vm1117
      %vm1147 = vmand %vm1093, %vm1117
      %vm1148 = vmand %vm1094, %vm1118
      %vm1149 = vmand %vm1095, %vm1118
      %vm1150 = vmand %vm1096, %vm1119
      %vm1151 = vmand %vm1097, %vm1119
      %vm1152 = vmand %vm1098, %vm1120
      %vm1153 = vmand %vm1099, %vm1120
      %vm1154 = vmand %vm1100, %vm1121
      %vm1155 = vmand %vm1101, %vm1121
      %vm1156 = vmand %vm1102, %vm1122
      %vm1157 = vmand %vm1103, %vm1122
      %vm1158 = vmand %vm1104, %vm1123
      %vm1159 = vmand %vm1105, %vm1123
      %v1160 = vsel %vm1124, 1, 0
      %v1161 = vsel %vm1125, 1, 0
      %v1162 = vsel %vm1126, 1, 0
      %v1163 = vsel %vm1127, 1, 0
      %v1164 = vsel %vm1128, 1, 0
      %v1165 = vsel %vm1129, 1, 0
      %v1166 = vsel %vm1130, 1, 0
      %v1167 = vsel %vm1131, 1, 0
      %v1168 = vsel %vm1132, 1, 0
      %v1169 = vsel %vm1133, 1, 0
      %v1170 = vsel %vm1134, 1, 0
      %v1171 = vsel %vm1135, 1, 0
      %v1172 = vsel %vm1136, 1, 0
      %v1173 = vsel %vm1137, 1, 0
      %v1174 = vsel %vm1138, 1, 0
      %v1175 = vsel %vm1139, 1, 0
      %v1176 = vsel %vm1140, 1, 0
      %v1177 = vsel %vm1141, 1, 0
      %v1178 = vsel %vm1142, 1, 0
      %v1179 = vsel %vm1143, 1, 0
      %v1180 = vsel %vm1144, 1, 0
      %v1181 = vsel %vm1145, 1, 0
      %v1182 = vsel %vm1146, 1, 0
      %v1183 = vsel %vm1147, 1, 0
      %v1184 = vsel %vm1148, 1, 0
      %v1185 = vsel %vm1149, 1, 0
      %v1186 = vsel %vm1150, 1, 0
      %v1187 = vsel %vm1151, 1, 0
      %v1188 = vsel %vm1152, 1, 0
      %v1189 = vsel %vm1153, 1, 0
      %v1190 = vsel %vm1154, 1, 0
      %v1191 = vsel %vm1155, 1, 0
      %v1192 = vsel %vm1156, 1, 0
      %v1193 = vsel %vm1157, 1, 0
      %v1194 = vsel %vm1158, 1, 0
      %v1195 = vsel %vm1159, 1, 0
      %vm1196 = vcmp.eq.s32.totalorder %v1160, 1
      %vm1197 = vcmp.eq.s32.totalorder %v1161, 1
      %vm1198 = vcmp.eq.s32.totalorder %v1162, 1
      %vm1199 = vcmp.eq.s32.totalorder %v1163, 1
      %vm1200 = vcmp.eq.s32.totalorder %v1164, 1
      %vm1201 = vcmp.eq.s32.totalorder %v1165, 1
      %vm1202 = vcmp.eq.s32.totalorder %v1166, 1
      %vm1203 = vcmp.eq.s32.totalorder %v1167, 1
      %vm1204 = vcmp.eq.s32.totalorder %v1168, 1
      %vm1205 = vcmp.eq.s32.totalorder %v1169, 1
      %vm1206 = vcmp.eq.s32.totalorder %v1170, 1
      %vm1207 = vcmp.eq.s32.totalorder %v1171, 1
      %vm1208 = vcmp.eq.s32.totalorder %v1172, 1
      %vm1209 = vcmp.eq.s32.totalorder %v1173, 1
      %vm1210 = vcmp.eq.s32.totalorder %v1174, 1
      %vm1211 = vcmp.eq.s32.totalorder %v1175, 1
      %vm1212 = vcmp.eq.s32.totalorder %v1176, 1
      %vm1213 = vcmp.eq.s32.totalorder %v1177, 1
      %vm1214 = vcmp.eq.s32.totalorder %v1178, 1
      %vm1215 = vcmp.eq.s32.totalorder %v1179, 1
      %vm1216 = vcmp.eq.s32.totalorder %v1180, 1
      %vm1217 = vcmp.eq.s32.totalorder %v1181, 1
      %vm1218 = vcmp.eq.s32.totalorder %v1182, 1
      %vm1219 = vcmp.eq.s32.totalorder %v1183, 1
      %vm1220 = vcmp.eq.s32.totalorder %v1184, 1
      %vm1221 = vcmp.eq.s32.totalorder %v1185, 1
      %vm1222 = vcmp.eq.s32.totalorder %v1186, 1
      %vm1223 = vcmp.eq.s32.totalorder %v1187, 1
      %vm1224 = vcmp.eq.s32.totalorder %v1188, 1
      %vm1225 = vcmp.eq.s32.totalorder %v1189, 1
      %vm1226 = vcmp.eq.s32.totalorder %v1190, 1
      %vm1227 = vcmp.eq.s32.totalorder %v1191, 1
      %vm1228 = vcmp.eq.s32.totalorder %v1192, 1
      %vm1229 = vcmp.eq.s32.totalorder %v1193, 1
      %vm1230 = vcmp.eq.s32.totalorder %v1194, 1
      %vm1231 = vcmp.eq.s32.totalorder %v1195, 1
      %v1232 = vsel %vm1196, %v956, 0.0
      %v1233 = vsel %vm1197, %v957, 0.0
      %v1234 = vsel %vm1198, %v958, 0.0
      %v1235 = vsel %vm1199, %v959, 0.0
      %v1236 = vsel %vm1200, %v960, 0.0
      %v1237 = vsel %vm1201, %v961, 0.0
      %v1238 = vsel %vm1202, %v962, 0.0
      %v1239 = vsel %vm1203, %v963, 0.0
      %v1240 = vsel %vm1204, %v964, 0.0
      %v1241 = vsel %vm1205, %v965, 0.0
      %v1242 = vsel %vm1206, %v966, 0.0
      %v1243 = vsel %vm1207, %v967, 0.0
      %v1244 = vsel %vm1208, %v968, 0.0
      %v1245 = vsel %vm1209, %v969, 0.0
      %v1246 = vsel %vm1210, %v970, 0.0
      %v1247 = vsel %vm1211, %v971, 0.0
      %v1248 = vsel %vm1212, %v972, 0.0
      %v1249 = vsel %vm1213, %v973, 0.0
      %v1250 = vsel %vm1214, %v974, 0.0
      %v1251 = vsel %vm1215, %v975, 0.0
      %v1252 = vsel %vm1216, %v976, 0.0
      %v1253 = vsel %vm1217, %v977, 0.0
      %v1254 = vsel %vm1218, %v978, 0.0
      %v1255 = vsel %vm1219, %v979, 0.0
      %v1256 = vsel %vm1220, %v980, 0.0
      %v1257 = vsel %vm1221, %v981, 0.0
      %v1258 = vsel %vm1222, %v982, 0.0
      %v1259 = vsel %vm1223, %v983, 0.0
      %v1260 = vsel %vm1224, %v984, 0.0
      %v1261 = vsel %vm1225, %v985, 0.0
      %v1262 = vsel %vm1226, %v986, 0.0
      %v1263 = vsel %vm1227, %v987, 0.0
      %v1264 = vsel %vm1228, %v988, 0.0
      %v1265 = vsel %vm1229, %v989, 0.0
      %v1266 = vsel %vm1230, %v990, 0.0
      %v1267 = vsel %vm1231, %v991, 0.0
      %v1268 = vrot.slane %v1232, 7
      %v1269 = vrot.slane %v1233, 7
      %v1270 = vrot.slane %v1234, 7
      %v1271 = vrot.slane %v1235, 7
      %v1272 = vrot.slane %v1236, 7
      %v1273 = vrot.slane %v1237, 7
      %v1274 = vrot.slane %v1238, 7
      %v1275 = vrot.slane %v1239, 7
      %v1276 = vrot.slane %v1240, 7
      %v1277 = vrot.slane %v1241, 7
      %v1278 = vrot.slane %v1242, 7
      %v1279 = vrot.slane %v1243, 7
      %v1280 = vrot.slane %v1244, 7
      %v1281 = vrot.slane %v1245, 7
      %v1282 = vrot.slane %v1246, 7
      %v1283 = vrot.slane %v1247, 7
      %v1284 = vrot.slane %v1248, 7
      %v1285 = vrot.slane %v1249, 7
      %v1286 = vrot.slane %v1250, 7
      %v1287 = vrot.slane %v1251, 7
      %v1288 = vrot.slane %v1252, 7
      %v1289 = vrot.slane %v1253, 7
      %v1290 = vrot.slane %v1254, 7
      %v1291 = vrot.slane %v1255, 7
      %v1292 = vrot.slane %v1256, 7
      %v1293 = vrot.slane %v1257, 7
      %v1294 = vrot.slane %v1258, 7
      %v1295 = vrot.slane %v1259, 7
      %v1296 = vrot.slane %v1260, 7
      %v1297 = vrot.slane %v1261, 7
      %v1298 = vrot.slane %v1262, 7
      %v1299 = vrot.slane %v1263, 7
      %v1300 = vrot.slane %v1264, 7
      %v1301 = vrot.slane %v1265, 7
      %v1302 = vrot.slane %v1266, 7
      %v1303 = vrot.slane %v1267, 7
      %vm1304 = vcmp.lt.s32.totalorder %v1030, 1
      %v1305 = vsel %vm1304, %v1303, 0.0
      %v1306 = vsel %vm1304, %v1302, %v1303
      %v1307 = vsel %vm1304, 0.0, %v1302
      %v1308 = vsel %vm1304, %v1301, 0.0
      %v1309 = vsel %vm1304, %v1300, %v1301
      %v1310 = vsel %vm1304, 0.0, %v1300
      %v1311 = vsel %vm1304, %v1299, 0.0
      %v1312 = vsel %vm1304, %v1298, %v1299
      %v1313 = vsel %vm1304, 0.0, %v1298
      %v1314 = vsel %vm1304, %v1297, 0.0
      %v1315 = vsel %vm1304, %v1296, %v1297
      %v1316 = vsel %vm1304, 0.0, %v1296
      %v1317 = vsel %vm1304, %v1295, 0.0
      %v1318 = vsel %vm1304, %v1294, %v1295
      %v1319 = vsel %vm1304, 0.0, %v1294
      %v1320 = vsel %vm1304, %v1293, 0.0
      %v1321 = vsel %vm1304, %v1292, %v1293
      %v1322 = vsel %vm1304, 0.0, %v1292
      %v1323 = vsel %vm1304, %v1291, 0.0
      %v1324 = vsel %vm1304, %v1290, %v1291
      %v1325 = vsel %vm1304, 0.0, %v1290
      %v1326 = vsel %vm1304, %v1289, 0.0
      %v1327 = vsel %vm1304, %v1288, %v1289
      %v1328 = vsel %vm1304, 0.0, %v1288
      %v1329 = vsel %vm1304, %v1287, 0.0
      %v1330 = vsel %vm1304, %v1286, %v1287
      %v1331 = vsel %vm1304, 0.0, %v1286
      %v1332 = vsel %vm1304, %v1285, 0.0
      %v1333 = vsel %vm1304, %v1284, %v1285
      %v1334 = vsel %vm1304, 0.0, %v1284
      %v1335 = vsel %vm1304, %v1283, 0.0
      %v1336 = vsel %vm1304, %v1282, %v1283
      %v1337 = vsel %vm1304, 0.0, %v1282
      %v1338 = vsel %vm1304, %v1281, 0.0
      %v1339 = vsel %vm1304, %v1280, %v1281
      %v1340 = vsel %vm1304, 0.0, %v1280
      %v1341 = vsel %vm1304, %v1279, 0.0
      %v1342 = vsel %vm1304, %v1278, %v1279
      %v1343 = vsel %vm1304, 0.0, %v1278
      %v1344 = vsel %vm1304, %v1277, 0.0
      %v1345 = vsel %vm1304, %v1276, %v1277
      %v1346 = vsel %vm1304, 0.0, %v1276
      %v1347 = vsel %vm1304, %v1275, 0.0
      %v1348 = vsel %vm1304, %v1274, %v1275
      %v1349 = vsel %vm1304, 0.0, %v1274
      %v1350 = vsel %vm1304, %v1273, 0.0
      %v1351 = vsel %vm1304, %v1272, %v1273
      %v1352 = vsel %vm1304, 0.0, %v1272
      %v1353 = vsel %vm1304, %v1271, 0.0
      %v1354 = vsel %vm1304, %v1270, %v1271
      %v1355 = vsel %vm1304, 0.0, %v1270
      %v1356 = vsel %vm1304, %v1269, 0.0
      %v1357 = vsel %vm1304, %v1268, %v1269
      %v1358 = vsel %vm1304, 0.0, %v1268
      %v1359 = vpack.c.bf16 %v1306, %v1307
      %v1360 = vpack.c.bf16 %v1358, %v1305
      %v1361 = vpack.c.bf16 %v1356, %v1357
      %v1362 = vpack.c.bf16 %v1354, %v1355
      %v1363 = vpack.c.bf16 %v1352, %v1353
      %v1364 = vpack.c.bf16 %v1350, %v1351
      %v1365 = vpack.c.bf16 %v1348, %v1349
      %v1366 = vpack.c.bf16 %v1346, %v1347
      %v1367 = vpack.c.bf16 %v1344, %v1345
      %v1368 = vpack.c.bf16 %v1342, %v1343
      %v1369 = vpack.c.bf16 %v1340, %v1341
      %v1370 = vpack.c.bf16 %v1338, %v1339
      %v1371 = vpack.c.bf16 %v1336, %v1337
      %v1372 = vpack.c.bf16 %v1334, %v1335
      %v1373 = vpack.c.bf16 %v1332, %v1333
      %v1374 = vpack.c.bf16 %v1330, %v1331
      %v1375 = vpack.c.bf16 %v1328, %v1329
      %v1376 = vpack.c.bf16 %v1326, %v1327
      %v1377 = vpack.c.bf16 %v1324, %v1325
      %v1378 = vpack.c.bf16 %v1322, %v1323
      %v1379 = vpack.c.bf16 %v1320, %v1321
      %v1380 = vpack.c.bf16 %v1318, %v1319
      %v1381 = vpack.c.bf16 %v1316, %v1317
      %v1382 = vpack.c.bf16 %v1314, %v1315
      %v1383 = vpack.c.bf16 %v1312, %v1313
      %v1384 = vpack.c.bf16 %v1310, %v1311
      %v1385 = vpack.c.bf16 %v1308, %v1309
      %v1386 = vld [vmem:[%s5] sm:$0xf]
      %v1387 = vpack.c.bf16 %v1267, %v1266
      %v1388 = vpack.c.bf16 %v1232, 0.0
      %v1389 = vpack.c.bf16 0.0, %v1233
      %v1390 = vpack.c.bf16 %v1235, %v1234
      %v1391 = vpack.c.bf16 %v1236, 0.0
      %v1392 = vpack.c.bf16 0.0, %v1237
      %v1393 = vpack.c.bf16 %v1239, %v1238
      %v1394 = vpack.c.bf16 %v1240, 0.0
      %v1395 = vpack.c.bf16 0.0, %v1241
      %v1396 = vpack.c.bf16 %v1243, %v1242
      %v1397 = vpack.c.bf16 %v1244, 0.0
      %v1398 = vpack.c.bf16 0.0, %v1245
      %v1399 = vpack.c.bf16 %v1247, %v1246
      %v1400 = vpack.c.bf16 %v1248, 0.0
      %v1401 = vpack.c.bf16 0.0, %v1249
      %v1402 = vpack.c.bf16 %v1251, %v1250
      %v1403 = vpack.c.bf16 %v1252, 0.0
      %v1404 = vpack.c.bf16 0.0, %v1253
      %v1405 = vpack.c.bf16 %v1255, %v1254
      %v1406 = vpack.c.bf16 %v1256, 0.0
      %v1407 = vpack.c.bf16 0.0, %v1257
      %v1408 = vpack.c.bf16 %v1259, %v1258
      %v1409 = vpack.c.bf16 %v1260, 0.0
      %v1410 = vpack.c.bf16 0.0, %v1261
      %v1411 = vpack.c.bf16 %v1263, %v1262
      %v1412 = vpack.c.bf16 %v1264, 0.0
      %v1413 = vpack.c.bf16 0.0, %v1265
      %s1414 = scalar_lea.vmem %s5, 4
      %v1415 = vld [vmem:[%s1414] sm:$0xf]
      %v1417 = vsel %vm992, %v1387, 0
      %v1420 = vsel %vm992, %v1388, 0
      %v1423 = vsel %vm992, %v1389, 0
      %v1426 = vsel %vm992, %v1390, 0
      %v1429 = vsel %vm992, %v1391, 0
      %v1432 = vsel %vm992, %v1392, 0
      %v1435 = vsel %vm992, %v1393, 0
      %v1438 = vsel %vm992, %v1394, 0
      %v1441 = vsel %vm992, %v1395, 0
      %v1444 = vsel %vm992, %v1396, 0
      %v1447 = vsel %vm992, %v1397, 0
      %v1450 = vsel %vm992, %v1398, 0
      %v1453 = vsel %vm992, %v1399, 0
      %v1456 = vsel %vm992, %v1400, 0
      %v1459 = vsel %vm992, %v1401, 0
      %v1462 = vsel %vm992, %v1402, 0
      %v1465 = vsel %vm992, %v1403, 0
      %v1468 = vsel %vm992, %v1404, 0
      %v1471 = vsel %vm992, %v1405, 0
      %v1474 = vsel %vm992, %v1406, 0
      %v1477 = vsel %vm992, %v1407, 0
      %v1480 = vsel %vm992, %v1408, 0
      %v1483 = vsel %vm992, %v1409, 0
      %v1486 = vsel %vm992, %v1410, 0
      %v1489 = vsel %vm992, %v1411, 0
      %v1492 = vsel %vm992, %v1412, 0
      %v1495 = vsel %vm992, %v1413, 0
      %vm1497 = vcmask 1043456
      %v1499 = vsel %vm1497, %v1415, 0
      %1501 = vmatprep.subr.bf16.mxu0 0
      %1502 = vmatpush1.bf16.msra.mxu0 0
      %1503 = vmatprep.subr.bf16.mxu0 0
      %1504 = vmatpush1.bf16.msra.mxu0 0
      %1505 = vmatprep.subr.bf16.mxu0 0
      %1506 = vmatpush1.bf16.msra.mxu0 0
      %1507 = vmatprep.subr.bf16.mxu0 0
      %1508 = vmatpush1.bf16.msra.mxu0 0
      %1509 = vmatprep.subr.bf16.mxu0 0
      %1510 = vmatpush1.bf16.msra.mxu0 0
      %1511 = vmatprep.subr.bf16.mxu0 0
      %1512 = vmatpush1.bf16.msra.mxu0 0
      %1513 = vmatprep.subr.bf16.mxu0 0
      %1514 = vmatpush1.bf16.msra.mxu0 0
      %1515 = vmatprep.subr.bf16.mxu0 0
      %1516 = vmatpush1.bf16.msra.mxu0 %v1499
      %1517 = vmatprep.subr.bf16.mxu0 0
      %1518 = vmatpush2.bf16.msra.mxu0 0
      %1519 = vmatprep.subr.bf16.mxu0 0
      %1520 = vmatpush2.bf16.msra.mxu0 0
      %1521 = vmatprep.subr.bf16.mxu0 0
      %1522 = vmatpush2.bf16.msra.mxu0 0
      %1523 = vmatprep.subr.bf16.mxu0 0
      %1524 = vmatpush2.bf16.msra.mxu0 0
      %1525 = vmatprep.subr.bf16.mxu0 0
      %1526 = vmatpush2.bf16.msra.mxu0 0
      %1527 = vmatprep.subr.bf16.mxu0 0
      %1528 = vmatpush2.bf16.msra.mxu0 0
      %1529 = vmatprep.subr.bf16.mxu0 0
      %1530 = vmatpush2.bf16.msra.mxu0 0
      %1531 = vmatprep.subr.bf16.mxu0 0
      %1532 = vmatpush2.bf16.msra.mxu0 0
      %1533 = vmatprep.mubr.bf16.mxu0 0
      %1534 = vmatmul.mubr.bf16.gmra.mxu0 %v1417
      %v1535 = vpop.f32.mrf.mxu0
      %v1536 = vpop.f32.mrf.mxu0
      %v1537 = vpop.f32.mrf.mxu0
      %v1538 = vpop.f32.mrf.mxu0
      %1539 = vmatprep.mubr.bf16.mxu0 0
      %1540 = vmatmul.mubr.bf16.gmra.mxu0 %v1420
      %v1541 = vpop.f32.mrf.mxu0
      %v1542 = vpop.f32.mrf.mxu0
      %v1543 = vpop.f32.mrf.mxu0
      %v1544 = vadd.f32 0.0, %v1543
      %v1545 = vpop.f32.mrf.mxu0
      %1546 = vmatprep.mubr.bf16.mxu0 0
      %1547 = vmatmul.mubr.bf16.gmra.mxu0 %v1423
      %v1548 = vpop.f32.mrf.mxu0
      %v1549 = vadd.f32 0.0, %v1548
      %v1550 = vpop.f32.mrf.mxu0
      %v1551 = vpop.f32.mrf.mxu0
      %v1552 = vpop.f32.mrf.mxu0
      %1553 = vmatprep.mubr.bf16.mxu0 0
      %1554 = vmatmul.mubr.bf16.gmra.mxu0 %v1426
      %v1555 = vpop.f32.mrf.mxu0
      %v1556 = vadd.f32 0.0, %v1555
      %v1557 = vpop.f32.mrf.mxu0
      %v1558 = vpop.f32.mrf.mxu0
      %v1559 = vadd.f32 0.0, %v1558
      %v1560 = vpop.f32.mrf.mxu0
      %1561 = vmatprep.mubr.bf16.mxu0 0
      %1562 = vmatmul.mubr.bf16.gmra.mxu0 %v1429
      %v1563 = vpop.f32.mrf.mxu0
      %v1564 = vpop.f32.mrf.mxu0
      %v1565 = vpop.f32.mrf.mxu0
      %v1566 = vadd.f32 0.0, %v1565
      %v1567 = vpop.f32.mrf.mxu0
      %1568 = vmatprep.mubr.bf16.mxu0 0
      %1569 = vmatmul.mubr.bf16.gmra.mxu0 %v1432
      %v1570 = vpop.f32.mrf.mxu0
      %v1571 = vadd.f32 0.0, %v1570
      %v1572 = vpop.f32.mrf.mxu0
      %v1573 = vpop.f32.mrf.mxu0
      %v1574 = vpop.f32.mrf.mxu0
      %1575 = vmatprep.mubr.bf16.mxu0 0
      %1576 = vmatmul.mubr.bf16.gmra.mxu0 %v1435
      %v1577 = vpop.f32.mrf.mxu0
      %v1578 = vadd.f32 0.0, %v1577
      %v1579 = vpop.f32.mrf.mxu0
      %v1580 = vpop.f32.mrf.mxu0
      %v1581 = vadd.f32 0.0, %v1580
      %v1582 = vpop.f32.mrf.mxu0
      %1583 = vmatprep.mubr.bf16.mxu0 0
      %1584 = vmatmul.mubr.bf16.gmra.mxu0 %v1438
      %v1585 = vpop.f32.mrf.mxu0
      %v1586 = vpop.f32.mrf.mxu0
      %v1587 = vpop.f32.mrf.mxu0
      %v1588 = vadd.f32 0.0, %v1587
      %v1589 = vpop.f32.mrf.mxu0
      %1590 = vmatprep.mubr.bf16.mxu0 0
      %1591 = vmatmul.mubr.bf16.gmra.mxu0 %v1441
      %v1592 = vpop.f32.mrf.mxu0
      %v1593 = vadd.f32 0.0, %v1592
      %v1594 = vpop.f32.mrf.mxu0
      %v1595 = vpop.f32.mrf.mxu0
      %v1596 = vpop.f32.mrf.mxu0
      %1597 = vmatprep.mubr.bf16.mxu0 0
      %1598 = vmatmul.mubr.bf16.gmra.mxu0 %v1444
      %v1599 = vpop.f32.mrf.mxu0
      %v1600 = vadd.f32 0.0, %v1599
      %v1601 = vpop.f32.mrf.mxu0
      %v1602 = vpop.f32.mrf.mxu0
      %v1603 = vadd.f32 0.0, %v1602
      %v1604 = vpop.f32.mrf.mxu0
      %1605 = vmatprep.mubr.bf16.mxu0 0
      %1606 = vmatmul.mubr.bf16.gmra.mxu0 %v1447
      %v1607 = vpop.f32.mrf.mxu0
      %v1608 = vpop.f32.mrf.mxu0
      %v1609 = vpop.f32.mrf.mxu0
      %v1610 = vadd.f32 0.0, %v1609
      %v1611 = vpop.f32.mrf.mxu0
      %1612 = vmatprep.mubr.bf16.mxu0 0
      %1613 = vmatmul.mubr.bf16.gmra.mxu0 %v1450
      %v1614 = vpop.f32.mrf.mxu0
      %v1615 = vadd.f32 0.0, %v1614
      %v1616 = vpop.f32.mrf.mxu0
      %v1617 = vpop.f32.mrf.mxu0
      %v1618 = vpop.f32.mrf.mxu0
      %1619 = vmatprep.mubr.bf16.mxu0 0
      %1620 = vmatmul.mubr.bf16.gmra.mxu0 %v1453
      %v1621 = vpop.f32.mrf.mxu0
      %v1622 = vadd.f32 0.0, %v1621
      %v1623 = vpop.f32.mrf.mxu0
      %v1624 = vpop.f32.mrf.mxu0
      %v1625 = vadd.f32 0.0, %v1624
      %v1626 = vpop.f32.mrf.mxu0
      %1627 = vmatprep.mubr.bf16.mxu0 0
      %1628 = vmatmul.mubr.bf16.gmra.mxu0 %v1456
      %v1629 = vpop.f32.mrf.mxu0
      %v1630 = vpop.f32.mrf.mxu0
      %v1631 = vpop.f32.mrf.mxu0
      %v1632 = vadd.f32 0.0, %v1631
      %v1633 = vpop.f32.mrf.mxu0
      %1634 = vmatprep.mubr.bf16.mxu0 0
      %1635 = vmatmul.mubr.bf16.gmra.mxu0 %v1459
      %v1636 = vpop.f32.mrf.mxu0
      %v1637 = vadd.f32 0.0, %v1636
      %v1638 = vpop.f32.mrf.mxu0
      %v1639 = vpop.f32.mrf.mxu0
      %v1640 = vpop.f32.mrf.mxu0
      %1641 = vmatprep.mubr.bf16.mxu0 0
      %1642 = vmatmul.mubr.bf16.gmra.mxu0 %v1462
      %v1643 = vpop.f32.mrf.mxu0
      %v1644 = vadd.f32 0.0, %v1643
      %v1645 = vpop.f32.mrf.mxu0
      %v1646 = vpop.f32.mrf.mxu0
      %v1647 = vadd.f32 0.0, %v1646
      %v1648 = vpop.f32.mrf.mxu0
      %1649 = vmatprep.mubr.bf16.mxu0 0
      %1650 = vmatmul.mubr.bf16.gmra.mxu0 %v1465
      %v1651 = vpop.f32.mrf.mxu0
      %v1652 = vpop.f32.mrf.mxu0
      %v1653 = vpop.f32.mrf.mxu0
      %v1654 = vadd.f32 0.0, %v1653
      %v1655 = vpop.f32.mrf.mxu0
      %1656 = vmatprep.mubr.bf16.mxu0 0
      %1657 = vmatmul.mubr.bf16.gmra.mxu0 %v1468
      %v1658 = vpop.f32.mrf.mxu0
      %v1659 = vadd.f32 0.0, %v1658
      %v1660 = vpop.f32.mrf.mxu0
      %v1661 = vpop.f32.mrf.mxu0
      %v1662 = vpop.f32.mrf.mxu0
      %1663 = vmatprep.mubr.bf16.mxu0 0
      %1664 = vmatmul.mubr.bf16.gmra.mxu0 %v1471
      %v1665 = vpop.f32.mrf.mxu0
      %v1666 = vadd.f32 0.0, %v1665
      %v1667 = vpop.f32.mrf.mxu0
      %v1668 = vpop.f32.mrf.mxu0
      %v1669 = vadd.f32 0.0, %v1668
      %v1670 = vpop.f32.mrf.mxu0
      %1671 = vmatprep.mubr.bf16.mxu0 0
      %1672 = vmatmul.mubr.bf16.gmra.mxu0 %v1474
      %v1673 = vpop.f32.mrf.mxu0
      %v1674 = vpop.f32.mrf.mxu0
      %v1675 = vpop.f32.mrf.mxu0
      %v1676 = vadd.f32 0.0, %v1675
      %v1677 = vpop.f32.mrf.mxu0
      %1678 = vmatprep.mubr.bf16.mxu0 0
      %1679 = vmatmul.mubr.bf16.gmra.mxu0 %v1477
      %v1680 = vpop.f32.mrf.mxu0
      %v1681 = vadd.f32 0.0, %v1680
      %v1682 = vpop.f32.mrf.mxu0
      %v1683 = vpop.f32.mrf.mxu0
      %v1684 = vpop.f32.mrf.mxu0
      %1685 = vmatprep.mubr.bf16.mxu0 0
      %1686 = vmatmul.mubr.bf16.gmra.mxu0 %v1480
      %v1687 = vpop.f32.mrf.mxu0
      %v1688 = vadd.f32 0.0, %v1687
      %v1689 = vpop.f32.mrf.mxu0
      %v1690 = vpop.f32.mrf.mxu0
      %v1691 = vadd.f32 0.0, %v1690
      %v1692 = vpop.f32.mrf.mxu0
      %1693 = vmatprep.mubr.bf16.mxu0 0
      %1694 = vmatmul.mubr.bf16.gmra.mxu0 %v1483
      %v1695 = vpop.f32.mrf.mxu0
      %v1696 = vpop.f32.mrf.mxu0
      %v1697 = vpop.f32.mrf.mxu0
      %v1698 = vadd.f32 0.0, %v1697
      %v1699 = vpop.f32.mrf.mxu0
      %1700 = vmatprep.mubr.bf16.mxu0 0
      %1701 = vmatmul.mubr.bf16.gmra.mxu0 %v1486
      %v1702 = vpop.f32.mrf.mxu0
      %v1703 = vadd.f32 0.0, %v1702
      %v1704 = vpop.f32.mrf.mxu0
      %v1705 = vpop.f32.mrf.mxu0
      %v1706 = vpop.f32.mrf.mxu0
      %1707 = vmatprep.mubr.bf16.mxu0 0
      %1708 = vmatmul.mubr.bf16.gmra.mxu0 %v1489
      %v1709 = vpop.f32.mrf.mxu0
      %v1710 = vadd.f32 0.0, %v1709
      %v1711 = vpop.f32.mrf.mxu0
      %v1712 = vpop.f32.mrf.mxu0
      %v1713 = vadd.f32 0.0, %v1712
      %v1714 = vpop.f32.mrf.mxu0
      %1715 = vmatprep.mubr.bf16.mxu0 0
      %1716 = vmatmul.mubr.bf16.gmra.mxu0 %v1492
      %v1717 = vpop.f32.mrf.mxu0
      %v1718 = vpop.f32.mrf.mxu0
      %v1719 = vpop.f32.mrf.mxu0
      %v1720 = vpop.f32.mrf.mxu0
      %1721 = vmatprep.mubr.bf16.mxu0 0
      %1722 = vmatmul.mubr.bf16.gmra.mxu0 %v1495
      %v1723 = vpop.f32.mrf.mxu0
      %v1724 = vpop.f32.mrf.mxu0
      %v1725 = vpop.f32.mrf.mxu0
      %v1726 = vpop.f32.mrf.mxu0
      %1727 = vdwg.mxu0
      %v1729 = vsel %vm992, %v1359, 0
      %v1732 = vsel %vm992, %v1360, 0
      %v1735 = vsel %vm992, %v1361, 0
      %v1738 = vsel %vm992, %v1362, 0
      %v1741 = vsel %vm992, %v1363, 0
      %v1744 = vsel %vm992, %v1364, 0
      %v1747 = vsel %vm992, %v1365, 0
      %v1750 = vsel %vm992, %v1366, 0
      %v1753 = vsel %vm992, %v1367, 0
      %v1756 = vsel %vm992, %v1368, 0
      %v1759 = vsel %vm992, %v1369, 0
      %v1762 = vsel %vm992, %v1370, 0
      %v1765 = vsel %vm992, %v1371, 0
      %v1768 = vsel %vm992, %v1372, 0
      %v1771 = vsel %vm992, %v1373, 0
      %v1774 = vsel %vm992, %v1374, 0
      %v1777 = vsel %vm992, %v1375, 0
      %v1780 = vsel %vm992, %v1376, 0
      %v1783 = vsel %vm992, %v1377, 0
      %v1786 = vsel %vm992, %v1378, 0
      %v1789 = vsel %vm992, %v1379, 0
      %v1792 = vsel %vm992, %v1380, 0
      %v1795 = vsel %vm992, %v1381, 0
      %v1798 = vsel %vm992, %v1382, 0
      %v1801 = vsel %vm992, %v1383, 0
      %v1804 = vsel %vm992, %v1384, 0
      %v1807 = vsel %vm992, %v1385, 0
      %v1810 = vsel %vm1497, %v1386, 0
      %1812 = vmatprep.subr.bf16.mxu0 0
      %1813 = vmatpush1.bf16.msra.mxu0 0
      %1814 = vmatprep.subr.bf16.mxu0 0
      %1815 = vmatpush1.bf16.msra.mxu0 0
      %1816 = vmatprep.subr.bf16.mxu0 0
      %1817 = vmatpush1.bf16.msra.mxu0 0
      %1818 = vmatprep.subr.bf16.mxu0 0
      %1819 = vmatpush1.bf16.msra.mxu0 0
      %1820 = vmatprep.subr.bf16.mxu0 0
      %1821 = vmatpush1.bf16.msra.mxu0 0
      %1822 = vmatprep.subr.bf16.mxu0 0
      %1823 = vmatpush1.bf16.msra.mxu0 0
      %1824 = vmatprep.subr.bf16.mxu0 0
      %1825 = vmatpush1.bf16.msra.mxu0 0
      %1826 = vmatprep.subr.bf16.mxu0 0
      %1827 = vmatpush1.bf16.msra.mxu0 %v1810
      %1828 = vmatprep.subr.bf16.mxu0 0
      %1829 = vmatpush2.bf16.msra.mxu0 0
      %1830 = vmatprep.subr.bf16.mxu0 0
      %1831 = vmatpush2.bf16.msra.mxu0 0
      %1832 = vmatprep.subr.bf16.mxu0 0
      %1833 = vmatpush2.bf16.msra.mxu0 0
      %1834 = vmatprep.subr.bf16.mxu0 0
      %1835 = vmatpush2.bf16.msra.mxu0 0
      %1836 = vmatprep.subr.bf16.mxu0 0
      %1837 = vmatpush2.bf16.msra.mxu0 0
      %1838 = vmatprep.subr.bf16.mxu0 0
      %1839 = vmatpush2.bf16.msra.mxu0 0
      %1840 = vmatprep.subr.bf16.mxu0 0
      %1841 = vmatpush2.bf16.msra.mxu0 0
      %1842 = vmatprep.subr.bf16.mxu0 0
      %1843 = vmatpush2.bf16.msra.mxu0 0
      %1844 = vmatprep.mubr.bf16.mxu0 0
      %1845 = vmatmul.mubr.bf16.gmra.mxu0 %v1729
      %v1846 = vpop.f32.mrf.mxu0
      %v1847 = vpop.f32.mrf.mxu0
      %v1848 = vpop.f32.mrf.mxu0
      %v1849 = vpop.f32.mrf.mxu0
      %1850 = vmatprep.mubr.bf16.mxu0 0
      %1851 = vmatmul.mubr.bf16.gmra.mxu0 %v1732
      %v1852 = vpop.f32.mrf.mxu0
      %v1853 = vpop.f32.mrf.mxu0
      %v1854 = vpop.f32.mrf.mxu0
      %v1855 = vadd.f32 %v1544, %v1854
      %v1856 = vpop.f32.mrf.mxu0
      %1857 = vmatprep.mubr.bf16.mxu0 0
      %1858 = vmatmul.mubr.bf16.gmra.mxu0 %v1735
      %v1859 = vpop.f32.mrf.mxu0
      %v1860 = vadd.f32 %v1549, %v1859
      %v1861 = vpop.f32.mrf.mxu0
      %v1862 = vpop.f32.mrf.mxu0
      %v1863 = vpop.f32.mrf.mxu0
      %1864 = vmatprep.mubr.bf16.mxu0 0
      %1865 = vmatmul.mubr.bf16.gmra.mxu0 %v1738
      %v1866 = vpop.f32.mrf.mxu0
      %v1867 = vadd.f32 %v1556, %v1866
      %v1868 = vpop.f32.mrf.mxu0
      %v1869 = vpop.f32.mrf.mxu0
      %v1870 = vadd.f32 %v1559, %v1869
      %v1871 = vpop.f32.mrf.mxu0
      %1872 = vmatprep.mubr.bf16.mxu0 0
      %1873 = vmatmul.mubr.bf16.gmra.mxu0 %v1741
      %v1874 = vpop.f32.mrf.mxu0
      %v1875 = vpop.f32.mrf.mxu0
      %v1876 = vpop.f32.mrf.mxu0
      %v1877 = vadd.f32 %v1566, %v1876
      %v1878 = vpop.f32.mrf.mxu0
      %1879 = vmatprep.mubr.bf16.mxu0 0
      %1880 = vmatmul.mubr.bf16.gmra.mxu0 %v1744
      %v1881 = vpop.f32.mrf.mxu0
      %v1882 = vadd.f32 %v1571, %v1881
      %v1883 = vpop.f32.mrf.mxu0
      %v1884 = vpop.f32.mrf.mxu0
      %v1885 = vpop.f32.mrf.mxu0
      %1886 = vmatprep.mubr.bf16.mxu0 0
      %1887 = vmatmul.mubr.bf16.gmra.mxu0 %v1747
      %v1888 = vpop.f32.mrf.mxu0
      %v1889 = vadd.f32 %v1578, %v1888
      %v1890 = vpop.f32.mrf.mxu0
      %v1891 = vpop.f32.mrf.mxu0
      %v1892 = vadd.f32 %v1581, %v1891
      %v1893 = vpop.f32.mrf.mxu0
      %1894 = vmatprep.mubr.bf16.mxu0 0
      %1895 = vmatmul.mubr.bf16.gmra.mxu0 %v1750
      %v1896 = vpop.f32.mrf.mxu0
      %v1897 = vpop.f32.mrf.mxu0
      %v1898 = vpop.f32.mrf.mxu0
      %v1899 = vadd.f32 %v1588, %v1898
      %v1900 = vpop.f32.mrf.mxu0
      %1901 = vmatprep.mubr.bf16.mxu0 0
      %1902 = vmatmul.mubr.bf16.gmra.mxu0 %v1753
      %v1903 = vpop.f32.mrf.mxu0
      %v1904 = vadd.f32 %v1593, %v1903
      %v1905 = vpop.f32.mrf.mxu0
      %v1906 = vpop.f32.mrf.mxu0
      %v1907 = vpop.f32.mrf.mxu0
      %1908 = vmatprep.mubr.bf16.mxu0 0
      %1909 = vmatmul.mubr.bf16.gmra.mxu0 %v1756
      %v1910 = vpop.f32.mrf.mxu0
      %v1911 = vadd.f32 %v1600, %v1910
      %v1912 = vpop.f32.mrf.mxu0
      %v1913 = vpop.f32.mrf.mxu0
      %v1914 = vadd.f32 %v1603, %v1913
      %v1915 = vpop.f32.mrf.mxu0
      %1916 = vmatprep.mubr.bf16.mxu0 0
      %1917 = vmatmul.mubr.bf16.gmra.mxu0 %v1759
      %v1918 = vpop.f32.mrf.mxu0
      %v1919 = vpop.f32.mrf.mxu0
      %v1920 = vpop.f32.mrf.mxu0
      %v1921 = vadd.f32 %v1610, %v1920
      %v1922 = vpop.f32.mrf.mxu0
      %1923 = vmatprep.mubr.bf16.mxu0 0
      %1924 = vmatmul.mubr.bf16.gmra.mxu0 %v1762
      %v1925 = vpop.f32.mrf.mxu0
      %v1926 = vadd.f32 %v1615, %v1925
      %v1927 = vpop.f32.mrf.mxu0
      %v1928 = vpop.f32.mrf.mxu0
      %v1929 = vpop.f32.mrf.mxu0
      %1930 = vmatprep.mubr.bf16.mxu0 0
      %1931 = vmatmul.mubr.bf16.gmra.mxu0 %v1765
      %v1932 = vpop.f32.mrf.mxu0
      %v1933 = vadd.f32 %v1622, %v1932
      %v1934 = vpop.f32.mrf.mxu0
      %v1935 = vpop.f32.mrf.mxu0
      %v1936 = vadd.f32 %v1625, %v1935
      %v1937 = vpop.f32.mrf.mxu0
      %1938 = vmatprep.mubr.bf16.mxu0 0
      %1939 = vmatmul.mubr.bf16.gmra.mxu0 %v1768
      %v1940 = vpop.f32.mrf.mxu0
      %v1941 = vpop.f32.mrf.mxu0
      %v1942 = vpop.f32.mrf.mxu0
      %v1943 = vadd.f32 %v1632, %v1942
      %v1944 = vpop.f32.mrf.mxu0
      %1945 = vmatprep.mubr.bf16.mxu0 0
      %1946 = vmatmul.mubr.bf16.gmra.mxu0 %v1771
      %v1947 = vpop.f32.mrf.mxu0
      %v1948 = vadd.f32 %v1637, %v1947
      %v1949 = vpop.f32.mrf.mxu0
      %v1950 = vpop.f32.mrf.mxu0
      %v1951 = vpop.f32.mrf.mxu0
      %1952 = vmatprep.mubr.bf16.mxu0 0
      %1953 = vmatmul.mubr.bf16.gmra.mxu0 %v1774
      %v1954 = vpop.f32.mrf.mxu0
      %v1955 = vadd.f32 %v1644, %v1954
      %v1956 = vpop.f32.mrf.mxu0
      %v1957 = vpop.f32.mrf.mxu0
      %v1958 = vadd.f32 %v1647, %v1957
      %v1959 = vpop.f32.mrf.mxu0
      %1960 = vmatprep.mubr.bf16.mxu0 0
      %1961 = vmatmul.mubr.bf16.gmra.mxu0 %v1777
      %v1962 = vpop.f32.mrf.mxu0
      %v1963 = vpop.f32.mrf.mxu0
      %v1964 = vpop.f32.mrf.mxu0
      %v1965 = vadd.f32 %v1654, %v1964
      %v1966 = vpop.f32.mrf.mxu0
      %1967 = vmatprep.mubr.bf16.mxu0 0
      %1968 = vmatmul.mubr.bf16.gmra.mxu0 %v1780
      %v1969 = vpop.f32.mrf.mxu0
      %v1970 = vadd.f32 %v1659, %v1969
      %v1971 = vpop.f32.mrf.mxu0
      %v1972 = vpop.f32.mrf.mxu0
      %v1973 = vpop.f32.mrf.mxu0
      %1974 = vmatprep.mubr.bf16.mxu0 0
      %1975 = vmatmul.mubr.bf16.gmra.mxu0 %v1783
      %v1976 = vpop.f32.mrf.mxu0
      %v1977 = vadd.f32 %v1666, %v1976
      %v1978 = vpop.f32.mrf.mxu0
      %v1979 = vpop.f32.mrf.mxu0
      %v1980 = vadd.f32 %v1669, %v1979
      %v1981 = vpop.f32.mrf.mxu0
      %1982 = vmatprep.mubr.bf16.mxu0 0
      %1983 = vmatmul.mubr.bf16.gmra.mxu0 %v1786
      %v1984 = vpop.f32.mrf.mxu0
      %v1985 = vpop.f32.mrf.mxu0
      %v1986 = vpop.f32.mrf.mxu0
      %v1987 = vadd.f32 %v1676, %v1986
      %v1988 = vpop.f32.mrf.mxu0
      %1989 = vmatprep.mubr.bf16.mxu0 0
      %1990 = vmatmul.mubr.bf16.gmra.mxu0 %v1789
      %v1991 = vpop.f32.mrf.mxu0
      %v1992 = vadd.f32 %v1681, %v1991
      %v1993 = vpop.f32.mrf.mxu0
      %v1994 = vpop.f32.mrf.mxu0
      %v1995 = vpop.f32.mrf.mxu0
      %1996 = vmatprep.mubr.bf16.mxu0 0
      %1997 = vmatmul.mubr.bf16.gmra.mxu0 %v1792
      %v1998 = vpop.f32.mrf.mxu0
      %v1999 = vadd.f32 %v1688, %v1998
      %v2000 = vpop.f32.mrf.mxu0
      %v2001 = vpop.f32.mrf.mxu0
      %v2002 = vadd.f32 %v1691, %v2001
      %v2003 = vpop.f32.mrf.mxu0
      %2004 = vmatprep.mubr.bf16.mxu0 0
      %2005 = vmatmul.mubr.bf16.gmra.mxu0 %v1795
      %v2006 = vpop.f32.mrf.mxu0
      %v2007 = vpop.f32.mrf.mxu0
      %v2008 = vpop.f32.mrf.mxu0
      %v2009 = vadd.f32 %v1698, %v2008
      %v2010 = vpop.f32.mrf.mxu0
      %2011 = vmatprep.mubr.bf16.mxu0 0
      %2012 = vmatmul.mubr.bf16.gmra.mxu0 %v1798
      %v2013 = vpop.f32.mrf.mxu0
      %v2014 = vadd.f32 %v1703, %v2013
      %v2015 = vpop.f32.mrf.mxu0
      %v2016 = vpop.f32.mrf.mxu0
      %v2017 = vpop.f32.mrf.mxu0
      %2018 = vmatprep.mubr.bf16.mxu0 0
      %2019 = vmatmul.mubr.bf16.gmra.mxu0 %v1801
      %v2020 = vpop.f32.mrf.mxu0
      %v2021 = vadd.f32 %v1710, %v2020
      %v2022 = vpop.f32.mrf.mxu0
      %v2023 = vpop.f32.mrf.mxu0
      %v2024 = vadd.f32 %v1713, %v2023
      %v2025 = vpop.f32.mrf.mxu0
      %2026 = vmatprep.mubr.bf16.mxu0 0
      %2027 = vmatmul.mubr.bf16.gmra.mxu0 %v1804
      %v2028 = vpop.f32.mrf.mxu0
      %v2029 = vpop.f32.mrf.mxu0
      %v2030 = vpop.f32.mrf.mxu0
      %v2031 = vpop.f32.mrf.mxu0
      %2032 = vmatprep.mubr.bf16.mxu0 0
      %2033 = vmatmul.mubr.bf16.gmra.mxu0 %v1807
      %v2034 = vpop.f32.mrf.mxu0
      %v2035 = vpop.f32.mrf.mxu0
      %v2036 = vpop.f32.mrf.mxu0
      %v2037 = vpop.f32.mrf.mxu0
      %2038 = vdwg.mxu0
      %v2039 = vrot.slane %v1232, 1
      %v2040 = vrot.slane %v1233, 1
      %v2041 = vrot.slane %v1234, 1
      %v2042 = vrot.slane %v1235, 1
      %v2043 = vrot.slane %v1236, 1
      %v2044 = vrot.slane %v1237, 1
      %v2045 = vrot.slane %v1238, 1
      %v2046 = vrot.slane %v1239, 1
      %v2047 = vrot.slane %v1240, 1
      %v2048 = vrot.slane %v1241, 1
      %v2049 = vrot.slane %v1242, 1
      %v2050 = vrot.slane %v1243, 1
      %v2051 = vrot.slane %v1244, 1
      %v2052 = vrot.slane %v1245, 1
      %v2053 = vrot.slane %v1246, 1
      %v2054 = vrot.slane %v1247, 1
      %v2055 = vrot.slane %v1248, 1
      %v2056 = vrot.slane %v1249, 1
      %v2057 = vrot.slane %v1250, 1
      %v2058 = vrot.slane %v1251, 1
      %v2059 = vrot.slane %v1252, 1
      %v2060 = vrot.slane %v1253, 1
      %v2061 = vrot.slane %v1254, 1
      %v2062 = vrot.slane %v1255, 1
      %v2063 = vrot.slane %v1256, 1
      %v2064 = vrot.slane %v1257, 1
      %v2065 = vrot.slane %v1258, 1
      %v2066 = vrot.slane %v1259, 1
      %v2067 = vrot.slane %v1260, 1
      %v2068 = vrot.slane %v1261, 1
      %v2069 = vrot.slane %v1262, 1
      %v2070 = vrot.slane %v1263, 1
      %v2071 = vrot.slane %v1264, 1
      %v2072 = vrot.slane %v1265, 1
      %v2073 = vrot.slane %v1266, 1
      %v2074 = vrot.slane %v1267, 1
      %vm2075 = vcmp.lt.s32.totalorder %v1030, 7
      %v2076 = vsel %vm2075, %v2074, 0.0
      %v2077 = vsel %vm2075, %v2073, %v2074
      %v2078 = vsel %vm2075, 0.0, %v2073
      %v2079 = vsel %vm2075, %v2072, 0.0
      %v2080 = vsel %vm2075, %v2071, %v2072
      %v2081 = vsel %vm2075, 0.0, %v2071
      %v2082 = vsel %vm2075, %v2070, 0.0
      %v2083 = vsel %vm2075, %v2069, %v2070
      %v2084 = vsel %vm2075, 0.0, %v2069
      %v2085 = vsel %vm2075, %v2068, 0.0
      %v2086 = vsel %vm2075, %v2067, %v2068
      %v2087 = vsel %vm2075, 0.0, %v2067
      %v2088 = vsel %vm2075, %v2066, 0.0
      %v2089 = vsel %vm2075, %v2065, %v2066
      %v2090 = vsel %vm2075, 0.0, %v2065
      %v2091 = vsel %vm2075, %v2064, 0.0
      %v2092 = vsel %vm2075, %v2063, %v2064
      %v2093 = vsel %vm2075, 0.0, %v2063
      %v2094 = vsel %vm2075, %v2062, 0.0
      %v2095 = vsel %vm2075, %v2061, %v2062
      %v2096 = vsel %vm2075, 0.0, %v2061
      %v2097 = vsel %vm2075, %v2060, 0.0
      %v2098 = vsel %vm2075, %v2059, %v2060
      %v2099 = vsel %vm2075, 0.0, %v2059
      %v2100 = vsel %vm2075, %v2058, 0.0
      %v2101 = vsel %vm2075, %v2057, %v2058
      %v2102 = vsel %vm2075, 0.0, %v2057
      %v2103 = vsel %vm2075, %v2056, 0.0
      %v2104 = vsel %vm2075, %v2055, %v2056
      %v2105 = vsel %vm2075, 0.0, %v2055
      %v2106 = vsel %vm2075, %v2054, 0.0
      %v2107 = vsel %vm2075, %v2053, %v2054
      %v2108 = vsel %vm2075, 0.0, %v2053
      %v2109 = vsel %vm2075, %v2052, 0.0
      %v2110 = vsel %vm2075, %v2051, %v2052
      %v2111 = vsel %vm2075, 0.0, %v2051
      %v2112 = vsel %vm2075, %v2050, 0.0
      %v2113 = vsel %vm2075, %v2049, %v2050
      %v2114 = vsel %vm2075, 0.0, %v2049
      %v2115 = vsel %vm2075, %v2048, 0.0
      %v2116 = vsel %vm2075, %v2047, %v2048
      %v2117 = vsel %vm2075, 0.0, %v2047
      %v2118 = vsel %vm2075, %v2046, 0.0
      %v2119 = vsel %vm2075, %v2045, %v2046
      %v2120 = vsel %vm2075, 0.0, %v2045
      %v2121 = vsel %vm2075, %v2044, 0.0
      %v2122 = vsel %vm2075, %v2043, %v2044
      %v2123 = vsel %vm2075, 0.0, %v2043
      %v2124 = vsel %vm2075, %v2042, 0.0
      %v2125 = vsel %vm2075, %v2041, %v2042
      %v2126 = vsel %vm2075, 0.0, %v2041
      %v2127 = vsel %vm2075, %v2040, 0.0
      %v2128 = vsel %vm2075, %v2039, %v2040
      %v2129 = vsel %vm2075, 0.0, %v2039
      %v2130 = vpack.c.bf16 %v2076, %v2077
      %v2131 = vpack.c.bf16 %v2128, %v2129
      %v2132 = vpack.c.bf16 %v2126, %v2127
      %v2133 = vpack.c.bf16 %v2124, %v2125
      %v2134 = vpack.c.bf16 %v2122, %v2123
      %v2135 = vpack.c.bf16 %v2120, %v2121
      %v2136 = vpack.c.bf16 %v2118, %v2119
      %v2137 = vpack.c.bf16 %v2116, %v2117
      %v2138 = vpack.c.bf16 %v2114, %v2115
      %v2139 = vpack.c.bf16 %v2112, %v2113
      %v2140 = vpack.c.bf16 %v2110, %v2111
      %v2141 = vpack.c.bf16 %v2108, %v2109
      %v2142 = vpack.c.bf16 %v2106, %v2107
      %v2143 = vpack.c.bf16 %v2104, %v2105
      %v2144 = vpack.c.bf16 %v2102, %v2103
      %v2145 = vpack.c.bf16 %v2100, %v2101
      %v2146 = vpack.c.bf16 %v2098, %v2099
      %v2147 = vpack.c.bf16 %v2096, %v2097
      %v2148 = vpack.c.bf16 %v2094, %v2095
      %v2149 = vpack.c.bf16 %v2092, %v2093
      %v2150 = vpack.c.bf16 %v2090, %v2091
      %v2151 = vpack.c.bf16 %v2088, %v2089
      %v2152 = vpack.c.bf16 %v2086, %v2087
      %v2153 = vpack.c.bf16 %v2084, %v2085
      %v2154 = vpack.c.bf16 %v2082, %v2083
      %v2155 = vpack.c.bf16 %v2080, %v2081
      %v2156 = vpack.c.bf16 %v2078, %v2079
      %s2157 = scalar_lea.vmem %s5, 8
      %v2158 = vld [vmem:[%s2157] sm:$0xf]
      %v2160 = vsel %vm992, %v2130, 0
      %v2163 = vsel %vm992, %v2131, 0
      %v2166 = vsel %vm992, %v2132, 0
      %v2169 = vsel %vm992, %v2133, 0
      %v2172 = vsel %vm992, %v2134, 0
      %v2175 = vsel %vm992, %v2135, 0
      %v2178 = vsel %vm992, %v2136, 0
      %v2181 = vsel %vm992, %v2137, 0
      %v2184 = vsel %vm992, %v2138, 0
      %v2187 = vsel %vm992, %v2139, 0
      %v2190 = vsel %vm992, %v2140, 0
      %v2193 = vsel %vm992, %v2141, 0
      %v2196 = vsel %vm992, %v2142, 0
      %v2199 = vsel %vm992, %v2143, 0
      %v2202 = vsel %vm992, %v2144, 0
      %v2205 = vsel %vm992, %v2145, 0
      %v2208 = vsel %vm992, %v2146, 0
      %v2211 = vsel %vm992, %v2147, 0
      %v2214 = vsel %vm992, %v2148, 0
      %v2217 = vsel %vm992, %v2149, 0
      %v2220 = vsel %vm992, %v2150, 0
      %v2223 = vsel %vm992, %v2151, 0
      %v2226 = vsel %vm992, %v2152, 0
      %v2229 = vsel %vm992, %v2153, 0
      %v2232 = vsel %vm992, %v2154, 0
      %v2235 = vsel %vm992, %v2155, 0
      %v2238 = vsel %vm992, %v2156, 0
      %v2241 = vsel %vm1497, %v2158, 0
      %2243 = vmatprep.subr.bf16.mxu0 0
      %2244 = vmatpush1.bf16.msra.mxu0 0
      %2245 = vmatprep.subr.bf16.mxu0 0
      %2246 = vmatpush1.bf16.msra.mxu0 0
      %2247 = vmatprep.subr.bf16.mxu0 0
      %2248 = vmatpush1.bf16.msra.mxu0 0
      %2249 = vmatprep.subr.bf16.mxu0 0
      %2250 = vmatpush1.bf16.msra.mxu0 0
      %2251 = vmatprep.subr.bf16.mxu0 0
      %2252 = vmatpush1.bf16.msra.mxu0 0
      %2253 = vmatprep.subr.bf16.mxu0 0
      %2254 = vmatpush1.bf16.msra.mxu0 0
      %2255 = vmatprep.subr.bf16.mxu0 0
      %2256 = vmatpush1.bf16.msra.mxu0 0
      %2257 = vmatprep.subr.bf16.mxu0 0
      %2258 = vmatpush1.bf16.msra.mxu0 %v2241
      %2259 = vmatprep.subr.bf16.mxu0 0
      %2260 = vmatpush2.bf16.msra.mxu0 0
      %2261 = vmatprep.subr.bf16.mxu0 0
      %2262 = vmatpush2.bf16.msra.mxu0 0
      %2263 = vmatprep.subr.bf16.mxu0 0
      %2264 = vmatpush2.bf16.msra.mxu0 0
      %2265 = vmatprep.subr.bf16.mxu0 0
      %2266 = vmatpush2.bf16.msra.mxu0 0
      %2267 = vmatprep.subr.bf16.mxu0 0
      %2268 = vmatpush2.bf16.msra.mxu0 0
      %2269 = vmatprep.subr.bf16.mxu0 0
      %2270 = vmatpush2.bf16.msra.mxu0 0
      %2271 = vmatprep.subr.bf16.mxu0 0
      %2272 = vmatpush2.bf16.msra.mxu0 0
      %2273 = vmatprep.subr.bf16.mxu0 0
      %2274 = vmatpush2.bf16.msra.mxu0 0
      %2275 = vmatprep.mubr.bf16.mxu0 0
      %2276 = vmatmul.mubr.bf16.gmra.mxu0 %v2160
      %v2277 = vpop.f32.mrf.mxu0
      %v2278 = vpop.f32.mrf.mxu0
      %v2279 = vpop.f32.mrf.mxu0
      %v2280 = vpop.f32.mrf.mxu0
      %2281 = vmatprep.mubr.bf16.mxu0 0
      %2282 = vmatmul.mubr.bf16.gmra.mxu0 %v2163
      %v2283 = vpop.f32.mrf.mxu0
      %v2284 = vpop.f32.mrf.mxu0
      %v2285 = vpop.f32.mrf.mxu0
      %v2286 = vadd.f32 0.0, %v2285
      %v2287 = vpop.f32.mrf.mxu0
      %2288 = vmatprep.mubr.bf16.mxu0 0
      %2289 = vmatmul.mubr.bf16.gmra.mxu0 %v2166
      %v2290 = vpop.f32.mrf.mxu0
      %v2291 = vadd.f32 0.0, %v2290
      %v2292 = vpop.f32.mrf.mxu0
      %v2293 = vpop.f32.mrf.mxu0
      %v2294 = vpop.f32.mrf.mxu0
      %2295 = vmatprep.mubr.bf16.mxu0 0
      %2296 = vmatmul.mubr.bf16.gmra.mxu0 %v2169
      %v2297 = vpop.f32.mrf.mxu0
      %v2298 = vadd.f32 0.0, %v2297
      %v2299 = vpop.f32.mrf.mxu0
      %v2300 = vpop.f32.mrf.mxu0
      %v2301 = vadd.f32 0.0, %v2300
      %v2302 = vpop.f32.mrf.mxu0
      %2303 = vmatprep.mubr.bf16.mxu0 0
      %2304 = vmatmul.mubr.bf16.gmra.mxu0 %v2172
      %v2305 = vpop.f32.mrf.mxu0
      %v2306 = vpop.f32.mrf.mxu0
      %v2307 = vpop.f32.mrf.mxu0
      %v2308 = vadd.f32 0.0, %v2307
      %v2309 = vpop.f32.mrf.mxu0
      %2310 = vmatprep.mubr.bf16.mxu0 0
      %2311 = vmatmul.mubr.bf16.gmra.mxu0 %v2175
      %v2312 = vpop.f32.mrf.mxu0
      %v2313 = vadd.f32 0.0, %v2312
      %v2314 = vpop.f32.mrf.mxu0
      %v2315 = vpop.f32.mrf.mxu0
      %v2316 = vpop.f32.mrf.mxu0
      %2317 = vmatprep.mubr.bf16.mxu0 0
      %2318 = vmatmul.mubr.bf16.gmra.mxu0 %v2178
      %v2319 = vpop.f32.mrf.mxu0
      %v2320 = vadd.f32 0.0, %v2319
      %v2321 = vpop.f32.mrf.mxu0
      %v2322 = vpop.f32.mrf.mxu0
      %v2323 = vadd.f32 0.0, %v2322
      %v2324 = vpop.f32.mrf.mxu0
      %2325 = vmatprep.mubr.bf16.mxu0 0
      %2326 = vmatmul.mubr.bf16.gmra.mxu0 %v2181
      %v2327 = vpop.f32.mrf.mxu0
      %v2328 = vpop.f32.mrf.mxu0
      %v2329 = vpop.f32.mrf.mxu0
      %v2330 = vadd.f32 0.0, %v2329
      %v2331 = vpop.f32.mrf.mxu0
      %2332 = vmatprep.mubr.bf16.mxu0 0
      %2333 = vmatmul.mubr.bf16.gmra.mxu0 %v2184
      %v2334 = vpop.f32.mrf.mxu0
      %v2335 = vadd.f32 0.0, %v2334
      %v2336 = vpop.f32.mrf.mxu0
      %v2337 = vpop.f32.mrf.mxu0
      %v2338 = vpop.f32.mrf.mxu0
      %2339 = vmatprep.mubr.bf16.mxu0 0
      %2340 = vmatmul.mubr.bf16.gmra.mxu0 %v2187
      %v2341 = vpop.f32.mrf.mxu0
      %v2342 = vadd.f32 0.0, %v2341
      %v2343 = vpop.f32.mrf.mxu0
      %v2344 = vpop.f32.mrf.mxu0
      %v2345 = vadd.f32 0.0, %v2344
      %v2346 = vpop.f32.mrf.mxu0
      %2347 = vmatprep.mubr.bf16.mxu0 0
      %2348 = vmatmul.mubr.bf16.gmra.mxu0 %v2190
      %v2349 = vpop.f32.mrf.mxu0
      %v2350 = vpop.f32.mrf.mxu0
      %v2351 = vpop.f32.mrf.mxu0
      %v2352 = vadd.f32 0.0, %v2351
      %v2353 = vpop.f32.mrf.mxu0
      %2354 = vmatprep.mubr.bf16.mxu0 0
      %2355 = vmatmul.mubr.bf16.gmra.mxu0 %v2193
      %v2356 = vpop.f32.mrf.mxu0
      %v2357 = vadd.f32 0.0, %v2356
      %v2358 = vpop.f32.mrf.mxu0
      %v2359 = vpop.f32.mrf.mxu0
      %v2360 = vpop.f32.mrf.mxu0
      %2361 = vmatprep.mubr.bf16.mxu0 0
      %2362 = vmatmul.mubr.bf16.gmra.mxu0 %v2196
      %v2363 = vpop.f32.mrf.mxu0
      %v2364 = vadd.f32 0.0, %v2363
      %v2365 = vpop.f32.mrf.mxu0
      %v2366 = vpop.f32.mrf.mxu0
      %v2367 = vadd.f32 0.0, %v2366
      %v2368 = vpop.f32.mrf.mxu0
      %2369 = vmatprep.mubr.bf16.mxu0 0
      %2370 = vmatmul.mubr.bf16.gmra.mxu0 %v2199
      %v2371 = vpop.f32.mrf.mxu0
      %v2372 = vpop.f32.mrf.mxu0
      %v2373 = vpop.f32.mrf.mxu0
      %v2374 = vadd.f32 0.0, %v2373
      %v2375 = vpop.f32.mrf.mxu0
      %2376 = vmatprep.mubr.bf16.mxu0 0
      %2377 = vmatmul.mubr.bf16.gmra.mxu0 %v2202
      %v2378 = vpop.f32.mrf.mxu0
      %v2379 = vadd.f32 0.0, %v2378
      %v2380 = vpop.f32.mrf.mxu0
      %v2381 = vpop.f32.mrf.mxu0
      %v2382 = vpop.f32.mrf.mxu0
      %2383 = vmatprep.mubr.bf16.mxu0 0
      %2384 = vmatmul.mubr.bf16.gmra.mxu0 %v2205
      %v2385 = vpop.f32.mrf.mxu0
      %v2386 = vadd.f32 0.0, %v2385
      %v2387 = vpop.f32.mrf.mxu0
      %v2388 = vpop.f32.mrf.mxu0
      %v2389 = vadd.f32 0.0, %v2388
      %v2390 = vpop.f32.mrf.mxu0
      %2391 = vmatprep.mubr.bf16.mxu0 0
      %2392 = vmatmul.mubr.bf16.gmra.mxu0 %v2208
      %v2393 = vpop.f32.mrf.mxu0
      %v2394 = vpop.f32.mrf.mxu0
      %v2395 = vpop.f32.mrf.mxu0
      %v2396 = vadd.f32 0.0, %v2395
      %v2397 = vpop.f32.mrf.mxu0
      %2398 = vmatprep.mubr.bf16.mxu0 0
      %2399 = vmatmul.mubr.bf16.gmra.mxu0 %v2211
      %v2400 = vpop.f32.mrf.mxu0
      %v2401 = vadd.f32 0.0, %v2400
      %v2402 = vpop.f32.mrf.mxu0
      %v2403 = vpop.f32.mrf.mxu0
      %v2404 = vpop.f32.mrf.mxu0
      %2405 = vmatprep.mubr.bf16.mxu0 0
      %2406 = vmatmul.mubr.bf16.gmra.mxu0 %v2214
      %v2407 = vpop.f32.mrf.mxu0
      %v2408 = vadd.f32 0.0, %v2407
      %v2409 = vpop.f32.mrf.mxu0
      %v2410 = vpop.f32.mrf.mxu0
      %v2411 = vadd.f32 0.0, %v2410
      %v2412 = vpop.f32.mrf.mxu0
      %2413 = vmatprep.mubr.bf16.mxu0 0
      %2414 = vmatmul.mubr.bf16.gmra.mxu0 %v2217
      %v2415 = vpop.f32.mrf.mxu0
      %v2416 = vpop.f32.mrf.mxu0
      %v2417 = vpop.f32.mrf.mxu0
      %v2418 = vadd.f32 0.0, %v2417
      %v2419 = vpop.f32.mrf.mxu0
      %2420 = vmatprep.mubr.bf16.mxu0 0
      %2421 = vmatmul.mubr.bf16.gmra.mxu0 %v2220
      %v2422 = vpop.f32.mrf.mxu0
      %v2423 = vadd.f32 0.0, %v2422
      %v2424 = vpop.f32.mrf.mxu0
      %v2425 = vpop.f32.mrf.mxu0
      %v2426 = vpop.f32.mrf.mxu0
      %2427 = vmatprep.mubr.bf16.mxu0 0
      %2428 = vmatmul.mubr.bf16.gmra.mxu0 %v2223
      %v2429 = vpop.f32.mrf.mxu0
      %v2430 = vadd.f32 0.0, %v2429
      %v2431 = vpop.f32.mrf.mxu0
      %v2432 = vpop.f32.mrf.mxu0
      %v2433 = vadd.f32 0.0, %v2432
      %v2434 = vpop.f32.mrf.mxu0
      %2435 = vmatprep.mubr.bf16.mxu0 0
      %2436 = vmatmul.mubr.bf16.gmra.mxu0 %v2226
      %v2437 = vpop.f32.mrf.mxu0
      %v2438 = vpop.f32.mrf.mxu0
      %v2439 = vpop.f32.mrf.mxu0
      %v2440 = vadd.f32 0.0, %v2439
      %v2441 = vpop.f32.mrf.mxu0
      %2442 = vmatprep.mubr.bf16.mxu0 0
      %2443 = vmatmul.mubr.bf16.gmra.mxu0 %v2229
      %v2444 = vpop.f32.mrf.mxu0
      %v2445 = vadd.f32 0.0, %v2444
      %v2446 = vpop.f32.mrf.mxu0
      %v2447 = vpop.f32.mrf.mxu0
      %v2448 = vpop.f32.mrf.mxu0
      %2449 = vmatprep.mubr.bf16.mxu0 0
      %2450 = vmatmul.mubr.bf16.gmra.mxu0 %v2232
      %v2451 = vpop.f32.mrf.mxu0
      %v2452 = vadd.f32 0.0, %v2451
      %v2453 = vpop.f32.mrf.mxu0
      %v2454 = vpop.f32.mrf.mxu0
      %v2455 = vadd.f32 0.0, %v2454
      %v2456 = vpop.f32.mrf.mxu0
      %2457 = vmatprep.mubr.bf16.mxu0 0
      %2458 = vmatmul.mubr.bf16.gmra.mxu0 %v2235
      %v2459 = vpop.f32.mrf.mxu0
      %v2460 = vpop.f32.mrf.mxu0
      %v2461 = vpop.f32.mrf.mxu0
      %v2462 = vpop.f32.mrf.mxu0
      %2463 = vmatprep.mubr.bf16.mxu0 0
      %2464 = vmatmul.mubr.bf16.gmra.mxu0 %v2238
      %v2465 = vpop.f32.mrf.mxu0
      %v2466 = vpop.f32.mrf.mxu0
      %v2467 = vpop.f32.mrf.mxu0
      %v2468 = vpop.f32.mrf.mxu0
      %2469 = vdwg.mxu0
      %v2470 = vadd.f32 %v1855, %v2286
      %v2471 = vadd.f32 %v1860, %v2291
      %v2472 = vadd.f32 %v1867, %v2298
      %v2473 = vadd.f32 %v1870, %v2301
      %v2474 = vadd.f32 %v1877, %v2308
      %v2475 = vadd.f32 %v1882, %v2313
      %v2476 = vadd.f32 %v1889, %v2320
      %v2477 = vadd.f32 %v1892, %v2323
      %v2478 = vadd.f32 %v1899, %v2330
      %v2479 = vadd.f32 %v1904, %v2335
      %v2480 = vadd.f32 %v1911, %v2342
      %v2481 = vadd.f32 %v1914, %v2345
      %v2482 = vadd.f32 %v1921, %v2352
      %v2483 = vadd.f32 %v1926, %v2357
      %v2484 = vadd.f32 %v1933, %v2364
      %v2485 = vadd.f32 %v1936, %v2367
      %v2486 = vadd.f32 %v1943, %v2374
      %v2487 = vadd.f32 %v1948, %v2379
      %v2488 = vadd.f32 %v1955, %v2386
      %v2489 = vadd.f32 %v1958, %v2389
      %v2490 = vadd.f32 %v1965, %v2396
      %v2491 = vadd.f32 %v1970, %v2401
      %v2492 = vadd.f32 %v1977, %v2408
      %v2493 = vadd.f32 %v1980, %v2411
      %v2494 = vadd.f32 %v1987, %v2418
      %v2495 = vadd.f32 %v1992, %v2423
      %v2496 = vadd.f32 %v1999, %v2430
      %v2497 = vadd.f32 %v2002, %v2433
      %v2498 = vadd.f32 %v2009, %v2440
      %v2499 = vadd.f32 %v2014, %v2445
      %v2500 = vadd.f32 %v2021, %v2452
      %v2501 = vadd.f32 %v2024, %v2455
      %v2502 = vpack.c.bf16 %v1357, %v1358
      %v2503 = vpack.c.bf16 %v1355, %v1356
      %v2504 = vpack.c.bf16 %v1353, %v1354
      %v2505 = vpack.c.bf16 %v1351, %v1352
      %v2506 = vpack.c.bf16 %v1349, %v1350
      %v2507 = vpack.c.bf16 %v1347, %v1348
      %v2508 = vpack.c.bf16 %v1345, %v1346
      %v2509 = vpack.c.bf16 %v1343, %v1344
      %v2510 = vpack.c.bf16 %v1341, %v1342
      %v2511 = vpack.c.bf16 %v1339, %v1340
      %v2512 = vpack.c.bf16 %v1337, %v1338
      %v2513 = vpack.c.bf16 %v1335, %v1336
      %v2514 = vpack.c.bf16 %v1333, %v1334
      %v2515 = vpack.c.bf16 %v1331, %v1332
      %v2516 = vpack.c.bf16 %v1329, %v1330
      %v2517 = vpack.c.bf16 %v1327, %v1328
      %v2518 = vpack.c.bf16 %v1325, %v1326
      %v2519 = vpack.c.bf16 %v1323, %v1324
      %v2520 = vpack.c.bf16 %v1321, %v1322
      %v2521 = vpack.c.bf16 %v1319, %v1320
      %v2522 = vpack.c.bf16 %v1317, %v1318
      %v2523 = vpack.c.bf16 %v1315, %v1316
      %v2524 = vpack.c.bf16 %v1313, %v1314
      %v2525 = vpack.c.bf16 %v1311, %v1312
      %v2526 = vpack.c.bf16 %v1309, %v1310
      %v2527 = vpack.c.bf16 %v1307, %v1308
      %v2528 = vpack.c.bf16 %v1305, %v1306
      %s2529 = scalar_lea.vmem %s5, 12
      %v2530 = vld [vmem:[%s2529] sm:$0xf]
      %v2532 = vsel %vm992, %v2502, 0
      %v2535 = vsel %vm992, %v2503, 0
      %v2538 = vsel %vm992, %v2504, 0
      %v2541 = vsel %vm992, %v2505, 0
      %v2544 = vsel %vm992, %v2506, 0
      %v2547 = vsel %vm992, %v2507, 0
      %v2550 = vsel %vm992, %v2508, 0
      %v2553 = vsel %vm992, %v2509, 0
      %v2556 = vsel %vm992, %v2510, 0
      %v2559 = vsel %vm992, %v2511, 0
      %v2562 = vsel %vm992, %v2512, 0
      %v2565 = vsel %vm992, %v2513, 0
      %v2568 = vsel %vm992, %v2514, 0
      %v2571 = vsel %vm992, %v2515, 0
      %v2574 = vsel %vm992, %v2516, 0
      %v2577 = vsel %vm992, %v2517, 0
      %v2580 = vsel %vm992, %v2518, 0
      %v2583 = vsel %vm992, %v2519, 0
      %v2586 = vsel %vm992, %v2520, 0
      %v2589 = vsel %vm992, %v2521, 0
      %v2592 = vsel %vm992, %v2522, 0
      %v2595 = vsel %vm992, %v2523, 0
      %v2598 = vsel %vm992, %v2524, 0
      %v2601 = vsel %vm992, %v2525, 0
      %v2604 = vsel %vm992, %v2526, 0
      %v2607 = vsel %vm992, %v2527, 0
      %v2610 = vsel %vm992, %v2528, 0
      %v2613 = vsel %vm1497, %v2530, 0
      %2615 = vmatprep.subr.bf16.mxu0 0
      %2616 = vmatpush1.bf16.msra.mxu0 0
      %2617 = vmatprep.subr.bf16.mxu0 0
      %2618 = vmatpush1.bf16.msra.mxu0 0
      %2619 = vmatprep.subr.bf16.mxu0 0
      %2620 = vmatpush1.bf16.msra.mxu0 0
      %2621 = vmatprep.subr.bf16.mxu0 0
      %2622 = vmatpush1.bf16.msra.mxu0 0
      %2623 = vmatprep.subr.bf16.mxu0 0
      %2624 = vmatpush1.bf16.msra.mxu0 0
      %2625 = vmatprep.subr.bf16.mxu0 0
      %2626 = vmatpush1.bf16.msra.mxu0 0
      %2627 = vmatprep.subr.bf16.mxu0 0
      %2628 = vmatpush1.bf16.msra.mxu0 0
      %2629 = vmatprep.subr.bf16.mxu0 0
      %2630 = vmatpush1.bf16.msra.mxu0 %v2613
      %2631 = vmatprep.subr.bf16.mxu0 0
      %2632 = vmatpush2.bf16.msra.mxu0 0
      %2633 = vmatprep.subr.bf16.mxu0 0
      %2634 = vmatpush2.bf16.msra.mxu0 0
      %2635 = vmatprep.subr.bf16.mxu0 0
      %2636 = vmatpush2.bf16.msra.mxu0 0
      %2637 = vmatprep.subr.bf16.mxu0 0
      %2638 = vmatpush2.bf16.msra.mxu0 0
      %2639 = vmatprep.subr.bf16.mxu0 0
      %2640 = vmatpush2.bf16.msra.mxu0 0
      %2641 = vmatprep.subr.bf16.mxu0 0
      %2642 = vmatpush2.bf16.msra.mxu0 0
      %2643 = vmatprep.subr.bf16.mxu0 0
      %2644 = vmatpush2.bf16.msra.mxu0 0
      %2645 = vmatprep.subr.bf16.mxu0 0
      %2646 = vmatpush2.bf16.msra.mxu0 0
      %2647 = vmatprep.mubr.bf16.mxu0 0
      %2648 = vmatmul.mubr.bf16.gmra.mxu0 %v2532
      %v2649 = vpop.f32.mrf.mxu0
      %v2650 = vpop.f32.mrf.mxu0
      %v2651 = vpop.f32.mrf.mxu0
      %v2652 = vpop.f32.mrf.mxu0
      %2653 = vmatprep.mubr.bf16.mxu0 0
      %2654 = vmatmul.mubr.bf16.gmra.mxu0 %v2535
      %v2655 = vpop.f32.mrf.mxu0
      %v2656 = vpop.f32.mrf.mxu0
      %v2657 = vpop.f32.mrf.mxu0
      %v2658 = vadd.f32 0.0, %v2657
      %v2659 = vpop.f32.mrf.mxu0
      %2660 = vmatprep.mubr.bf16.mxu0 0
      %2661 = vmatmul.mubr.bf16.gmra.mxu0 %v2538
      %v2662 = vpop.f32.mrf.mxu0
      %v2663 = vadd.f32 0.0, %v2662
      %v2664 = vpop.f32.mrf.mxu0
      %v2665 = vpop.f32.mrf.mxu0
      %v2666 = vpop.f32.mrf.mxu0
      %2667 = vmatprep.mubr.bf16.mxu0 0
      %2668 = vmatmul.mubr.bf16.gmra.mxu0 %v2541
      %v2669 = vpop.f32.mrf.mxu0
      %v2670 = vadd.f32 0.0, %v2669
      %v2671 = vpop.f32.mrf.mxu0
      %v2672 = vpop.f32.mrf.mxu0
      %v2673 = vadd.f32 0.0, %v2672
      %v2674 = vpop.f32.mrf.mxu0
      %2675 = vmatprep.mubr.bf16.mxu0 0
      %2676 = vmatmul.mubr.bf16.gmra.mxu0 %v2544
      %v2677 = vpop.f32.mrf.mxu0
      %v2678 = vpop.f32.mrf.mxu0
      %v2679 = vpop.f32.mrf.mxu0
      %v2680 = vadd.f32 0.0, %v2679
      %v2681 = vpop.f32.mrf.mxu0
      %2682 = vmatprep.mubr.bf16.mxu0 0
      %2683 = vmatmul.mubr.bf16.gmra.mxu0 %v2547
      %v2684 = vpop.f32.mrf.mxu0
      %v2685 = vadd.f32 0.0, %v2684
      %v2686 = vpop.f32.mrf.mxu0
      %v2687 = vpop.f32.mrf.mxu0
      %v2688 = vpop.f32.mrf.mxu0
      %2689 = vmatprep.mubr.bf16.mxu0 0
      %2690 = vmatmul.mubr.bf16.gmra.mxu0 %v2550
      %v2691 = vpop.f32.mrf.mxu0
      %v2692 = vadd.f32 0.0, %v2691
      %v2693 = vpop.f32.mrf.mxu0
      %v2694 = vpop.f32.mrf.mxu0
      %v2695 = vadd.f32 0.0, %v2694
      %v2696 = vpop.f32.mrf.mxu0
      %2697 = vmatprep.mubr.bf16.mxu0 0
      %2698 = vmatmul.mubr.bf16.gmra.mxu0 %v2553
      %v2699 = vpop.f32.mrf.mxu0
      %v2700 = vpop.f32.mrf.mxu0
      %v2701 = vpop.f32.mrf.mxu0
      %v2702 = vadd.f32 0.0, %v2701
      %v2703 = vpop.f32.mrf.mxu0
      %2704 = vmatprep.mubr.bf16.mxu0 0
      %2705 = vmatmul.mubr.bf16.gmra.mxu0 %v2556
      %v2706 = vpop.f32.mrf.mxu0
      %v2707 = vadd.f32 0.0, %v2706
      %v2708 = vpop.f32.mrf.mxu0
      %v2709 = vpop.f32.mrf.mxu0
      %v2710 = vpop.f32.mrf.mxu0
      %2711 = vmatprep.mubr.bf16.mxu0 0
      %2712 = vmatmul.mubr.bf16.gmra.mxu0 %v2559
      %v2713 = vpop.f32.mrf.mxu0
      %v2714 = vadd.f32 0.0, %v2713
      %v2715 = vpop.f32.mrf.mxu0
      %v2716 = vpop.f32.mrf.mxu0
      %v2717 = vadd.f32 0.0, %v2716
      %v2718 = vpop.f32.mrf.mxu0
      %2719 = vmatprep.mubr.bf16.mxu0 0
      %2720 = vmatmul.mubr.bf16.gmra.mxu0 %v2562
      %v2721 = vpop.f32.mrf.mxu0
      %v2722 = vpop.f32.mrf.mxu0
      %v2723 = vpop.f32.mrf.mxu0
      %v2724 = vadd.f32 0.0, %v2723
      %v2725 = vpop.f32.mrf.mxu0
      %2726 = vmatprep.mubr.bf16.mxu0 0
      %2727 = vmatmul.mubr.bf16.gmra.mxu0 %v2565
      %v2728 = vpop.f32.mrf.mxu0
      %v2729 = vadd.f32 0.0, %v2728
      %v2730 = vpop.f32.mrf.mxu0
      %v2731 = vpop.f32.mrf.mxu0
      %v2732 = vpop.f32.mrf.mxu0
      %2733 = vmatprep.mubr.bf16.mxu0 0
      %2734 = vmatmul.mubr.bf16.gmra.mxu0 %v2568
      %v2735 = vpop.f32.mrf.mxu0
      %v2736 = vadd.f32 0.0, %v2735
      %v2737 = vpop.f32.mrf.mxu0
      %v2738 = vpop.f32.mrf.mxu0
      %v2739 = vadd.f32 0.0, %v2738
      %v2740 = vpop.f32.mrf.mxu0
      %2741 = vmatprep.mubr.bf16.mxu0 0
      %2742 = vmatmul.mubr.bf16.gmra.mxu0 %v2571
      %v2743 = vpop.f32.mrf.mxu0
      %v2744 = vpop.f32.mrf.mxu0
      %v2745 = vpop.f32.mrf.mxu0
      %v2746 = vadd.f32 0.0, %v2745
      %v2747 = vpop.f32.mrf.mxu0
      %2748 = vmatprep.mubr.bf16.mxu0 0
      %2749 = vmatmul.mubr.bf16.gmra.mxu0 %v2574
      %v2750 = vpop.f32.mrf.mxu0
      %v2751 = vadd.f32 0.0, %v2750
      %v2752 = vpop.f32.mrf.mxu0
      %v2753 = vpop.f32.mrf.mxu0
      %v2754 = vpop.f32.mrf.mxu0
      %2755 = vmatprep.mubr.bf16.mxu0 0
      %2756 = vmatmul.mubr.bf16.gmra.mxu0 %v2577
      %v2757 = vpop.f32.mrf.mxu0
      %v2758 = vadd.f32 0.0, %v2757
      %v2759 = vpop.f32.mrf.mxu0
      %v2760 = vpop.f32.mrf.mxu0
      %v2761 = vadd.f32 0.0, %v2760
      %v2762 = vpop.f32.mrf.mxu0
      %2763 = vmatprep.mubr.bf16.mxu0 0
      %2764 = vmatmul.mubr.bf16.gmra.mxu0 %v2580
      %v2765 = vpop.f32.mrf.mxu0
      %v2766 = vpop.f32.mrf.mxu0
      %v2767 = vpop.f32.mrf.mxu0
      %v2768 = vadd.f32 0.0, %v2767
      %v2769 = vpop.f32.mrf.mxu0
      %2770 = vmatprep.mubr.bf16.mxu0 0
      %2771 = vmatmul.mubr.bf16.gmra.mxu0 %v2583
      %v2772 = vpop.f32.mrf.mxu0
      %v2773 = vadd.f32 0.0, %v2772
      %v2774 = vpop.f32.mrf.mxu0
      %v2775 = vpop.f32.mrf.mxu0
      %v2776 = vpop.f32.mrf.mxu0
      %2777 = vmatprep.mubr.bf16.mxu0 0
      %2778 = vmatmul.mubr.bf16.gmra.mxu0 %v2586
      %v2779 = vpop.f32.mrf.mxu0
      %v2780 = vadd.f32 0.0, %v2779
      %v2781 = vpop.f32.mrf.mxu0
      %v2782 = vpop.f32.mrf.mxu0
      %v2783 = vadd.f32 0.0, %v2782
      %v2784 = vpop.f32.mrf.mxu0
      %2785 = vmatprep.mubr.bf16.mxu0 0
      %2786 = vmatmul.mubr.bf16.gmra.mxu0 %v2589
      %v2787 = vpop.f32.mrf.mxu0
      %v2788 = vpop.f32.mrf.mxu0
      %v2789 = vpop.f32.mrf.mxu0
      %v2790 = vadd.f32 0.0, %v2789
      %v2791 = vpop.f32.mrf.mxu0
      %2792 = vmatprep.mubr.bf16.mxu0 0
      %2793 = vmatmul.mubr.bf16.gmra.mxu0 %v2592
      %v2794 = vpop.f32.mrf.mxu0
      %v2795 = vadd.f32 0.0, %v2794
      %v2796 = vpop.f32.mrf.mxu0
      %v2797 = vpop.f32.mrf.mxu0
      %v2798 = vpop.f32.mrf.mxu0
      %2799 = vmatprep.mubr.bf16.mxu0 0
      %2800 = vmatmul.mubr.bf16.gmra.mxu0 %v2595
      %v2801 = vpop.f32.mrf.mxu0
      %v2802 = vadd.f32 0.0, %v2801
      %v2803 = vpop.f32.mrf.mxu0
      %v2804 = vpop.f32.mrf.mxu0
      %v2805 = vadd.f32 0.0, %v2804
      %v2806 = vpop.f32.mrf.mxu0
      %2807 = vmatprep.mubr.bf16.mxu0 0
      %2808 = vmatmul.mubr.bf16.gmra.mxu0 %v2598
      %v2809 = vpop.f32.mrf.mxu0
      %v2810 = vpop.f32.mrf.mxu0
      %v2811 = vpop.f32.mrf.mxu0
      %v2812 = vadd.f32 0.0, %v2811
      %v2813 = vpop.f32.mrf.mxu0
      %2814 = vmatprep.mubr.bf16.mxu0 0
      %2815 = vmatmul.mubr.bf16.gmra.mxu0 %v2601
      %v2816 = vpop.f32.mrf.mxu0
      %v2817 = vadd.f32 0.0, %v2816
      %v2818 = vpop.f32.mrf.mxu0
      %v2819 = vpop.f32.mrf.mxu0
      %v2820 = vpop.f32.mrf.mxu0
      %2821 = vmatprep.mubr.bf16.mxu0 0
      %2822 = vmatmul.mubr.bf16.gmra.mxu0 %v2604
      %v2823 = vpop.f32.mrf.mxu0
      %v2824 = vadd.f32 0.0, %v2823
      %v2825 = vpop.f32.mrf.mxu0
      %v2826 = vpop.f32.mrf.mxu0
      %v2827 = vadd.f32 0.0, %v2826
      %v2828 = vpop.f32.mrf.mxu0
      %2829 = vmatprep.mubr.bf16.mxu0 0
      %2830 = vmatmul.mubr.bf16.gmra.mxu0 %v2607
      %v2831 = vpop.f32.mrf.mxu0
      %v2832 = vpop.f32.mrf.mxu0
      %v2833 = vpop.f32.mrf.mxu0
      %v2834 = vpop.f32.mrf.mxu0
      %2835 = vmatprep.mubr.bf16.mxu0 0
      %2836 = vmatmul.mubr.bf16.gmra.mxu0 %v2610
      %v2837 = vpop.f32.mrf.mxu0
      %v2838 = vpop.f32.mrf.mxu0
      %v2839 = vpop.f32.mrf.mxu0
      %v2840 = vpop.f32.mrf.mxu0
      %2841 = vdwg.mxu0
      %v2842 = vadd.f32 %v2470, %v2658
      %v2843 = vadd.f32 %v2471, %v2663
      %v2844 = vadd.f32 %v2472, %v2670
      %v2845 = vadd.f32 %v2473, %v2673
      %v2846 = vadd.f32 %v2474, %v2680
      %v2847 = vadd.f32 %v2475, %v2685
      %v2848 = vadd.f32 %v2476, %v2692
      %v2849 = vadd.f32 %v2477, %v2695
      %v2850 = vadd.f32 %v2478, %v2702
      %v2851 = vadd.f32 %v2479, %v2707
      %v2852 = vadd.f32 %v2480, %v2714
      %v2853 = vadd.f32 %v2481, %v2717
      %v2854 = vadd.f32 %v2482, %v2724
      %v2855 = vadd.f32 %v2483, %v2729
      %v2856 = vadd.f32 %v2484, %v2736
      %v2857 = vadd.f32 %v2485, %v2739
      %v2858 = vadd.f32 %v2486, %v2746
      %v2859 = vadd.f32 %v2487, %v2751
      %v2860 = vadd.f32 %v2488, %v2758
      %v2861 = vadd.f32 %v2489, %v2761
      %v2862 = vadd.f32 %v2490, %v2768
      %v2863 = vadd.f32 %v2491, %v2773
      %v2864 = vadd.f32 %v2492, %v2780
      %v2865 = vadd.f32 %v2493, %v2783
      %v2866 = vadd.f32 %v2494, %v2790
      %v2867 = vadd.f32 %v2495, %v2795
      %v2868 = vadd.f32 %v2496, %v2802
      %v2869 = vadd.f32 %v2497, %v2805
      %v2870 = vadd.f32 %v2498, %v2812
      %v2871 = vadd.f32 %v2499, %v2817
      %v2872 = vadd.f32 %v2500, %v2824
      %v2873 = vadd.f32 %v2501, %v2827
      %v2874 = vpack.c.bf16 %v1233, %v1232
      %v2875 = vpack.c.bf16 %v1234, 0.0
      %v2876 = vpack.c.bf16 0.0, %v1235
      %v2877 = vpack.c.bf16 %v1237, %v1236
      %v2878 = vpack.c.bf16 %v1238, 0.0
      %v2879 = vpack.c.bf16 0.0, %v1239
      %v2880 = vpack.c.bf16 %v1241, %v1240
      %v2881 = vpack.c.bf16 %v1242, 0.0
      %v2882 = vpack.c.bf16 0.0, %v1243
      %v2883 = vpack.c.bf16 %v1245, %v1244
      %v2884 = vpack.c.bf16 %v1246, 0.0
      %v2885 = vpack.c.bf16 0.0, %v1247
      %v2886 = vpack.c.bf16 %v1249, %v1248
      %v2887 = vpack.c.bf16 %v1250, 0.0
      %v2888 = vpack.c.bf16 0.0, %v1251
      %v2889 = vpack.c.bf16 %v1253, %v1252
      %v2890 = vpack.c.bf16 %v1254, 0.0
      %v2891 = vpack.c.bf16 0.0, %v1255
      %v2892 = vpack.c.bf16 %v1257, %v1256
      %v2893 = vpack.c.bf16 %v1258, 0.0
      %v2894 = vpack.c.bf16 0.0, %v1259
      %v2895 = vpack.c.bf16 %v1261, %v1260
      %v2896 = vpack.c.bf16 %v1262, 0.0
      %v2897 = vpack.c.bf16 0.0, %v1263
      %v2898 = vpack.c.bf16 %v1265, %v1264
      %v2899 = vpack.c.bf16 %v1266, 0.0
      %v2900 = vpack.c.bf16 0.0, %v1267
      %s2901 = scalar_lea.vmem %s5, 16
      %v2902 = vld [vmem:[%s2901] sm:$0xf]
      %v2904 = vsel %vm992, %v2874, 0
      %v2907 = vsel %vm992, %v2875, 0
      %v2910 = vsel %vm992, %v2876, 0
      %v2913 = vsel %vm992, %v2877, 0
      %v2916 = vsel %vm992, %v2878, 0
      %v2919 = vsel %vm992, %v2879, 0
      %v2922 = vsel %vm992, %v2880, 0
      %v2925 = vsel %vm992, %v2881, 0
      %v2928 = vsel %vm992, %v2882, 0
      %v2931 = vsel %vm992, %v2883, 0
      %v2934 = vsel %vm992, %v2884, 0
      %v2937 = vsel %vm992, %v2885, 0
      %v2940 = vsel %vm992, %v2886, 0
      %v2943 = vsel %vm992, %v2887, 0
      %v2946 = vsel %vm992, %v2888, 0
      %v2949 = vsel %vm992, %v2889, 0
      %v2952 = vsel %vm992, %v2890, 0
      %v2955 = vsel %vm992, %v2891, 0
      %v2958 = vsel %vm992, %v2892, 0
      %v2961 = vsel %vm992, %v2893, 0
      %v2964 = vsel %vm992, %v2894, 0
      %v2967 = vsel %vm992, %v2895, 0
      %v2970 = vsel %vm992, %v2896, 0
      %v2973 = vsel %vm992, %v2897, 0
      %v2976 = vsel %vm992, %v2898, 0
      %v2979 = vsel %vm992, %v2899, 0
      %v2982 = vsel %vm992, %v2900, 0
      %v2985 = vsel %vm1497, %v2902, 0
      %2987 = vmatprep.subr.bf16.mxu0 0
      %2988 = vmatpush1.bf16.msra.mxu0 0
      %2989 = vmatprep.subr.bf16.mxu0 0
      %2990 = vmatpush1.bf16.msra.mxu0 0
      %2991 = vmatprep.subr.bf16.mxu0 0
      %2992 = vmatpush1.bf16.msra.mxu0 0
      %2993 = vmatprep.subr.bf16.mxu0 0
      %2994 = vmatpush1.bf16.msra.mxu0 0
      %2995 = vmatprep.subr.bf16.mxu0 0
      %2996 = vmatpush1.bf16.msra.mxu0 0
      %2997 = vmatprep.subr.bf16.mxu0 0
      %2998 = vmatpush1.bf16.msra.mxu0 0
      %2999 = vmatprep.subr.bf16.mxu0 0
      %3000 = vmatpush1.bf16.msra.mxu0 0
      %3001 = vmatprep.subr.bf16.mxu0 0
      %3002 = vmatpush1.bf16.msra.mxu0 %v2985
      %3003 = vmatprep.subr.bf16.mxu0 0
      %3004 = vmatpush2.bf16.msra.mxu0 0
      %3005 = vmatprep.subr.bf16.mxu0 0
      %3006 = vmatpush2.bf16.msra.mxu0 0
      %3007 = vmatprep.subr.bf16.mxu0 0
      %3008 = vmatpush2.bf16.msra.mxu0 0
      %3009 = vmatprep.subr.bf16.mxu0 0
      %3010 = vmatpush2.bf16.msra.mxu0 0
      %3011 = vmatprep.subr.bf16.mxu0 0
      %3012 = vmatpush2.bf16.msra.mxu0 0
      %3013 = vmatprep.subr.bf16.mxu0 0
      %3014 = vmatpush2.bf16.msra.mxu0 0
      %3015 = vmatprep.subr.bf16.mxu0 0
      %3016 = vmatpush2.bf16.msra.mxu0 0
      %3017 = vmatprep.subr.bf16.mxu0 0
      %3018 = vmatpush2.bf16.msra.mxu0 0
      %3019 = vmatprep.mubr.bf16.mxu0 0
      %3020 = vmatmul.mubr.bf16.gmra.mxu0 %v2904
      %v3021 = vpop.f32.mrf.mxu0
      %v3022 = vpop.f32.mrf.mxu0
      %v3023 = vpop.f32.mrf.mxu0
      %v3024 = vpop.f32.mrf.mxu0
      %3025 = vmatprep.mubr.bf16.mxu0 0
      %3026 = vmatmul.mubr.bf16.gmra.mxu0 %v2907
      %v3027 = vpop.f32.mrf.mxu0
      %v3028 = vpop.f32.mrf.mxu0
      %v3029 = vpop.f32.mrf.mxu0
      %v3030 = vadd.f32 0.0, %v3029
      %v3031 = vpop.f32.mrf.mxu0
      %3032 = vmatprep.mubr.bf16.mxu0 0
      %3033 = vmatmul.mubr.bf16.gmra.mxu0 %v2910
      %v3034 = vpop.f32.mrf.mxu0
      %v3035 = vadd.f32 0.0, %v3034
      %v3036 = vpop.f32.mrf.mxu0
      %v3037 = vpop.f32.mrf.mxu0
      %v3038 = vpop.f32.mrf.mxu0
      %3039 = vmatprep.mubr.bf16.mxu0 0
      %3040 = vmatmul.mubr.bf16.gmra.mxu0 %v2913
      %v3041 = vpop.f32.mrf.mxu0
      %v3042 = vadd.f32 0.0, %v3041
      %v3043 = vpop.f32.mrf.mxu0
      %v3044 = vpop.f32.mrf.mxu0
      %v3045 = vadd.f32 0.0, %v3044
      %v3046 = vpop.f32.mrf.mxu0
      %3047 = vmatprep.mubr.bf16.mxu0 0
      %3048 = vmatmul.mubr.bf16.gmra.mxu0 %v2916
      %v3049 = vpop.f32.mrf.mxu0
      %v3050 = vpop.f32.mrf.mxu0
      %v3051 = vpop.f32.mrf.mxu0
      %v3052 = vadd.f32 0.0, %v3051
      %v3053 = vpop.f32.mrf.mxu0
      %3054 = vmatprep.mubr.bf16.mxu0 0
      %3055 = vmatmul.mubr.bf16.gmra.mxu0 %v2919
      %v3056 = vpop.f32.mrf.mxu0
      %v3057 = vadd.f32 0.0, %v3056
      %v3058 = vpop.f32.mrf.mxu0
      %v3059 = vpop.f32.mrf.mxu0
      %v3060 = vpop.f32.mrf.mxu0
      %3061 = vmatprep.mubr.bf16.mxu0 0
      %3062 = vmatmul.mubr.bf16.gmra.mxu0 %v2922
      %v3063 = vpop.f32.mrf.mxu0
      %v3064 = vadd.f32 0.0, %v3063
      %v3065 = vpop.f32.mrf.mxu0
      %v3066 = vpop.f32.mrf.mxu0
      %v3067 = vadd.f32 0.0, %v3066
      %v3068 = vpop.f32.mrf.mxu0
      %3069 = vmatprep.mubr.bf16.mxu0 0
      %3070 = vmatmul.mubr.bf16.gmra.mxu0 %v2925
      %v3071 = vpop.f32.mrf.mxu0
      %v3072 = vpop.f32.mrf.mxu0
      %v3073 = vpop.f32.mrf.mxu0
      %v3074 = vadd.f32 0.0, %v3073
      %v3075 = vpop.f32.mrf.mxu0
      %3076 = vmatprep.mubr.bf16.mxu0 0
      %3077 = vmatmul.mubr.bf16.gmra.mxu0 %v2928
      %v3078 = vpop.f32.mrf.mxu0
      %v3079 = vadd.f32 0.0, %v3078
      %v3080 = vpop.f32.mrf.mxu0
      %v3081 = vpop.f32.mrf.mxu0
      %v3082 = vpop.f32.mrf.mxu0
      %3083 = vmatprep.mubr.bf16.mxu0 0
      %3084 = vmatmul.mubr.bf16.gmra.mxu0 %v2931
      %v3085 = vpop.f32.mrf.mxu0
      %v3086 = vadd.f32 0.0, %v3085
      %v3087 = vpop.f32.mrf.mxu0
      %v3088 = vpop.f32.mrf.mxu0
      %v3089 = vadd.f32 0.0, %v3088
      %v3090 = vpop.f32.mrf.mxu0
      %3091 = vmatprep.mubr.bf16.mxu0 0
      %3092 = vmatmul.mubr.bf16.gmra.mxu0 %v2934
      %v3093 = vpop.f32.mrf.mxu0
      %v3094 = vpop.f32.mrf.mxu0
      %v3095 = vpop.f32.mrf.mxu0
      %v3096 = vadd.f32 0.0, %v3095
      %v3097 = vpop.f32.mrf.mxu0
      %3098 = vmatprep.mubr.bf16.mxu0 0
      %3099 = vmatmul.mubr.bf16.gmra.mxu0 %v2937
      %v3100 = vpop.f32.mrf.mxu0
      %v3101 = vadd.f32 0.0, %v3100
      %v3102 = vpop.f32.mrf.mxu0
      %v3103 = vpop.f32.mrf.mxu0
      %v3104 = vpop.f32.mrf.mxu0
      %3105 = vmatprep.mubr.bf16.mxu0 0
      %3106 = vmatmul.mubr.bf16.gmra.mxu0 %v2940
      %v3107 = vpop.f32.mrf.mxu0
      %v3108 = vadd.f32 0.0, %v3107
      %v3109 = vpop.f32.mrf.mxu0
      %v3110 = vpop.f32.mrf.mxu0
      %v3111 = vadd.f32 0.0, %v3110
      %v3112 = vpop.f32.mrf.mxu0
      %3113 = vmatprep.mubr.bf16.mxu0 0
      %3114 = vmatmul.mubr.bf16.gmra.mxu0 %v2943
      %v3115 = vpop.f32.mrf.mxu0
      %v3116 = vpop.f32.mrf.mxu0
      %v3117 = vpop.f32.mrf.mxu0
      %v3118 = vadd.f32 0.0, %v3117
      %v3119 = vpop.f32.mrf.mxu0
      %3120 = vmatprep.mubr.bf16.mxu0 0
      %3121 = vmatmul.mubr.bf16.gmra.mxu0 %v2946
      %v3122 = vpop.f32.mrf.mxu0
      %v3123 = vadd.f32 0.0, %v3122
      %v3124 = vpop.f32.mrf.mxu0
      %v3125 = vpop.f32.mrf.mxu0
      %v3126 = vpop.f32.mrf.mxu0
      %3127 = vmatprep.mubr.bf16.mxu0 0
      %3128 = vmatmul.mubr.bf16.gmra.mxu0 %v2949
      %v3129 = vpop.f32.mrf.mxu0
      %v3130 = vadd.f32 0.0, %v3129
      %v3131 = vpop.f32.mrf.mxu0
      %v3132 = vpop.f32.mrf.mxu0
      %v3133 = vadd.f32 0.0, %v3132
      %v3134 = vpop.f32.mrf.mxu0
      %3135 = vmatprep.mubr.bf16.mxu0 0
      %3136 = vmatmul.mubr.bf16.gmra.mxu0 %v2952
      %v3137 = vpop.f32.mrf.mxu0
      %v3138 = vpop.f32.mrf.mxu0
      %v3139 = vpop.f32.mrf.mxu0
      %v3140 = vadd.f32 0.0, %v3139
      %v3141 = vpop.f32.mrf.mxu0
      %3142 = vmatprep.mubr.bf16.mxu0 0
      %3143 = vmatmul.mubr.bf16.gmra.mxu0 %v2955
      %v3144 = vpop.f32.mrf.mxu0
      %v3145 = vadd.f32 0.0, %v3144
      %v3146 = vpop.f32.mrf.mxu0
      %v3147 = vpop.f32.mrf.mxu0
      %v3148 = vpop.f32.mrf.mxu0
      %3149 = vmatprep.mubr.bf16.mxu0 0
      %3150 = vmatmul.mubr.bf16.gmra.mxu0 %v2958
      %v3151 = vpop.f32.mrf.mxu0
      %v3152 = vadd.f32 0.0, %v3151
      %v3153 = vpop.f32.mrf.mxu0
      %v3154 = vpop.f32.mrf.mxu0
      %v3155 = vadd.f32 0.0, %v3154
      %v3156 = vpop.f32.mrf.mxu0
      %3157 = vmatprep.mubr.bf16.mxu0 0
      %3158 = vmatmul.mubr.bf16.gmra.mxu0 %v2961
      %v3159 = vpop.f32.mrf.mxu0
      %v3160 = vpop.f32.mrf.mxu0
      %v3161 = vpop.f32.mrf.mxu0
      %v3162 = vadd.f32 0.0, %v3161
      %v3163 = vpop.f32.mrf.mxu0
      %3164 = vmatprep.mubr.bf16.mxu0 0
      %3165 = vmatmul.mubr.bf16.gmra.mxu0 %v2964
      %v3166 = vpop.f32.mrf.mxu0
      %v3167 = vadd.f32 0.0, %v3166
      %v3168 = vpop.f32.mrf.mxu0
      %v3169 = vpop.f32.mrf.mxu0
      %v3170 = vpop.f32.mrf.mxu0
      %3171 = vmatprep.mubr.bf16.mxu0 0
      %3172 = vmatmul.mubr.bf16.gmra.mxu0 %v2967
      %v3173 = vpop.f32.mrf.mxu0
      %v3174 = vadd.f32 0.0, %v3173
      %v3175 = vpop.f32.mrf.mxu0
      %v3176 = vpop.f32.mrf.mxu0
      %v3177 = vadd.f32 0.0, %v3176
      %v3178 = vpop.f32.mrf.mxu0
      %3179 = vmatprep.mubr.bf16.mxu0 0
      %3180 = vmatmul.mubr.bf16.gmra.mxu0 %v2970
      %v3181 = vpop.f32.mrf.mxu0
      %v3182 = vpop.f32.mrf.mxu0
      %v3183 = vpop.f32.mrf.mxu0
      %v3184 = vadd.f32 0.0, %v3183
      %v3185 = vpop.f32.mrf.mxu0
      %3186 = vmatprep.mubr.bf16.mxu0 0
      %3187 = vmatmul.mubr.bf16.gmra.mxu0 %v2973
      %v3188 = vpop.f32.mrf.mxu0
      %v3189 = vadd.f32 0.0, %v3188
      %v3190 = vpop.f32.mrf.mxu0
      %v3191 = vpop.f32.mrf.mxu0
      %v3192 = vpop.f32.mrf.mxu0
      %3193 = vmatprep.mubr.bf16.mxu0 0
      %3194 = vmatmul.mubr.bf16.gmra.mxu0 %v2976
      %v3195 = vpop.f32.mrf.mxu0
      %v3196 = vadd.f32 0.0, %v3195
      %v3197 = vpop.f32.mrf.mxu0
      %v3198 = vpop.f32.mrf.mxu0
      %v3199 = vadd.f32 0.0, %v3198
      %v3200 = vpop.f32.mrf.mxu0
      %3201 = vmatprep.mubr.bf16.mxu0 0
      %3202 = vmatmul.mubr.bf16.gmra.mxu0 %v2979
      %v3203 = vpop.f32.mrf.mxu0
      %v3204 = vpop.f32.mrf.mxu0
      %v3205 = vpop.f32.mrf.mxu0
      %v3206 = vpop.f32.mrf.mxu0
      %3207 = vmatprep.mubr.bf16.mxu0 0
      %3208 = vmatmul.mubr.bf16.gmra.mxu0 %v2982
      %v3209 = vpop.f32.mrf.mxu0
      %v3210 = vpop.f32.mrf.mxu0
      %v3211 = vpop.f32.mrf.mxu0
      %v3212 = vpop.f32.mrf.mxu0
      %3213 = vdwg.mxu0
      %v3214 = vadd.f32 %v2842, %v3030
      %v3215 = vadd.f32 %v2843, %v3035
      %v3216 = vadd.f32 %v2844, %v3042
      %v3217 = vadd.f32 %v2845, %v3045
      %v3218 = vadd.f32 %v2846, %v3052
      %v3219 = vadd.f32 %v2847, %v3057
      %v3220 = vadd.f32 %v2848, %v3064
      %v3221 = vadd.f32 %v2849, %v3067
      %v3222 = vadd.f32 %v2850, %v3074
      %v3223 = vadd.f32 %v2851, %v3079
      %v3224 = vadd.f32 %v2852, %v3086
      %v3225 = vadd.f32 %v2853, %v3089
      %v3226 = vadd.f32 %v2854, %v3096
      %v3227 = vadd.f32 %v2855, %v3101
      %v3228 = vadd.f32 %v2856, %v3108
      %v3229 = vadd.f32 %v2857, %v3111
      %v3230 = vadd.f32 %v2858, %v3118
      %v3231 = vadd.f32 %v2859, %v3123
      %v3232 = vadd.f32 %v2860, %v3130
      %v3233 = vadd.f32 %v2861, %v3133
      %v3234 = vadd.f32 %v2862, %v3140
      %v3235 = vadd.f32 %v2863, %v3145
      %v3236 = vadd.f32 %v2864, %v3152
      %v3237 = vadd.f32 %v2865, %v3155
      %v3238 = vadd.f32 %v2866, %v3162
      %v3239 = vadd.f32 %v2867, %v3167
      %v3240 = vadd.f32 %v2868, %v3174
      %v3241 = vadd.f32 %v2869, %v3177
      %v3242 = vadd.f32 %v2870, %v3184
      %v3243 = vadd.f32 %v2871, %v3189
      %v3244 = vadd.f32 %v2872, %v3196
      %v3245 = vadd.f32 %v2873, %v3199
      %v3246 = vpack.c.bf16 %v2127, %v2128
      %v3247 = vpack.c.bf16 %v2125, %v2126
      %v3248 = vpack.c.bf16 %v2123, %v2124
      %v3249 = vpack.c.bf16 %v2121, %v2122
      %v3250 = vpack.c.bf16 %v2119, %v2120
      %v3251 = vpack.c.bf16 %v2117, %v2118
      %v3252 = vpack.c.bf16 %v2115, %v2116
      %v3253 = vpack.c.bf16 %v2113, %v2114
      %v3254 = vpack.c.bf16 %v2111, %v2112
      %v3255 = vpack.c.bf16 %v2109, %v2110
      %v3256 = vpack.c.bf16 %v2107, %v2108
      %v3257 = vpack.c.bf16 %v2105, %v2106
      %v3258 = vpack.c.bf16 %v2103, %v2104
      %v3259 = vpack.c.bf16 %v2101, %v2102
      %v3260 = vpack.c.bf16 %v2099, %v2100
      %v3261 = vpack.c.bf16 %v2097, %v2098
      %v3262 = vpack.c.bf16 %v2095, %v2096
      %v3263 = vpack.c.bf16 %v2093, %v2094
      %v3264 = vpack.c.bf16 %v2091, %v2092
      %v3265 = vpack.c.bf16 %v2089, %v2090
      %v3266 = vpack.c.bf16 %v2087, %v2088
      %v3267 = vpack.c.bf16 %v2085, %v2086
      %v3268 = vpack.c.bf16 %v2083, %v2084
      %v3269 = vpack.c.bf16 %v2081, %v2082
      %v3270 = vpack.c.bf16 %v2079, %v2080
      %v3271 = vpack.c.bf16 %v2077, %v2078
      %v3272 = vpack.c.bf16 %v2129, %v2076
      %s3273 = scalar_lea.vmem %s5, 20
      %v3274 = vld [vmem:[%s3273] sm:$0xf]
      %v3276 = vsel %vm992, %v3246, 0
      %v3279 = vsel %vm992, %v3247, 0
      %v3282 = vsel %vm992, %v3248, 0
      %v3285 = vsel %vm992, %v3249, 0
      %v3288 = vsel %vm992, %v3250, 0
      %v3291 = vsel %vm992, %v3251, 0
      %v3294 = vsel %vm992, %v3252, 0
      %v3297 = vsel %vm992, %v3253, 0
      %v3300 = vsel %vm992, %v3254, 0
      %v3303 = vsel %vm992, %v3255, 0
      %v3306 = vsel %vm992, %v3256, 0
      %v3309 = vsel %vm992, %v3257, 0
      %v3312 = vsel %vm992, %v3258, 0
      %v3315 = vsel %vm992, %v3259, 0
      %v3318 = vsel %vm992, %v3260, 0
      %v3321 = vsel %vm992, %v3261, 0
      %v3324 = vsel %vm992, %v3262, 0
      %v3327 = vsel %vm992, %v3263, 0
      %v3330 = vsel %vm992, %v3264, 0
      %v3333 = vsel %vm992, %v3265, 0
      %v3336 = vsel %vm992, %v3266, 0
      %v3339 = vsel %vm992, %v3267, 0
      %v3342 = vsel %vm992, %v3268, 0
      %v3345 = vsel %vm992, %v3269, 0
      %v3348 = vsel %vm992, %v3270, 0
      %v3351 = vsel %vm992, %v3271, 0
      %v3354 = vsel %vm992, %v3272, 0
      %v3357 = vsel %vm1497, %v3274, 0
      %3359 = vmatprep.subr.bf16.mxu0 0
      %3360 = vmatpush1.bf16.msra.mxu0 0
      %3361 = vmatprep.subr.bf16.mxu0 0
      %3362 = vmatpush1.bf16.msra.mxu0 0
      %3363 = vmatprep.subr.bf16.mxu0 0
      %3364 = vmatpush1.bf16.msra.mxu0 0
      %3365 = vmatprep.subr.bf16.mxu0 0
      %3366 = vmatpush1.bf16.msra.mxu0 0
      %3367 = vmatprep.subr.bf16.mxu0 0
      %3368 = vmatpush1.bf16.msra.mxu0 0
      %3369 = vmatprep.subr.bf16.mxu0 0
      %3370 = vmatpush1.bf16.msra.mxu0 0
      %3371 = vmatprep.subr.bf16.mxu0 0
      %3372 = vmatpush1.bf16.msra.mxu0 0
      %3373 = vmatprep.subr.bf16.mxu0 0
      %3374 = vmatpush1.bf16.msra.mxu0 %v3357
      %3375 = vmatprep.subr.bf16.mxu0 0
      %3376 = vmatpush2.bf16.msra.mxu0 0
      %3377 = vmatprep.subr.bf16.mxu0 0
      %3378 = vmatpush2.bf16.msra.mxu0 0
      %3379 = vmatprep.subr.bf16.mxu0 0
      %3380 = vmatpush2.bf16.msra.mxu0 0
      %3381 = vmatprep.subr.bf16.mxu0 0
      %3382 = vmatpush2.bf16.msra.mxu0 0
      %3383 = vmatprep.subr.bf16.mxu0 0
      %3384 = vmatpush2.bf16.msra.mxu0 0
      %3385 = vmatprep.subr.bf16.mxu0 0
      %3386 = vmatpush2.bf16.msra.mxu0 0
      %3387 = vmatprep.subr.bf16.mxu0 0
      %3388 = vmatpush2.bf16.msra.mxu0 0
      %3389 = vmatprep.subr.bf16.mxu0 0
      %3390 = vmatpush2.bf16.msra.mxu0 0
      %3391 = vmatprep.mubr.bf16.mxu0 0
      %3392 = vmatmul.mubr.bf16.gmra.mxu0 %v3276
      %v3393 = vpop.f32.mrf.mxu0
      %v3394 = vpop.f32.mrf.mxu0
      %v3395 = vpop.f32.mrf.mxu0
      %v3396 = vpop.f32.mrf.mxu0
      %3397 = vmatprep.mubr.bf16.mxu0 0
      %3398 = vmatmul.mubr.bf16.gmra.mxu0 %v3279
      %v3399 = vpop.f32.mrf.mxu0
      %v3400 = vpop.f32.mrf.mxu0
      %v3401 = vpop.f32.mrf.mxu0
      %v3402 = vadd.f32 0.0, %v3401
      %v3403 = vpop.f32.mrf.mxu0
      %3404 = vmatprep.mubr.bf16.mxu0 0
      %3405 = vmatmul.mubr.bf16.gmra.mxu0 %v3282
      %v3406 = vpop.f32.mrf.mxu0
      %v3407 = vadd.f32 0.0, %v3406
      %v3408 = vpop.f32.mrf.mxu0
      %v3409 = vpop.f32.mrf.mxu0
      %v3410 = vpop.f32.mrf.mxu0
      %3411 = vmatprep.mubr.bf16.mxu0 0
      %3412 = vmatmul.mubr.bf16.gmra.mxu0 %v3285
      %v3413 = vpop.f32.mrf.mxu0
      %v3414 = vadd.f32 0.0, %v3413
      %v3415 = vpop.f32.mrf.mxu0
      %v3416 = vpop.f32.mrf.mxu0
      %v3417 = vadd.f32 0.0, %v3416
      %v3418 = vpop.f32.mrf.mxu0
      %3419 = vmatprep.mubr.bf16.mxu0 0
      %3420 = vmatmul.mubr.bf16.gmra.mxu0 %v3288
      %v3421 = vpop.f32.mrf.mxu0
      %v3422 = vpop.f32.mrf.mxu0
      %v3423 = vpop.f32.mrf.mxu0
      %v3424 = vadd.f32 0.0, %v3423
      %v3425 = vpop.f32.mrf.mxu0
      %3426 = vmatprep.mubr.bf16.mxu0 0
      %3427 = vmatmul.mubr.bf16.gmra.mxu0 %v3291
      %v3428 = vpop.f32.mrf.mxu0
      %v3429 = vadd.f32 0.0, %v3428
      %v3430 = vpop.f32.mrf.mxu0
      %v3431 = vpop.f32.mrf.mxu0
      %v3432 = vpop.f32.mrf.mxu0
      %3433 = vmatprep.mubr.bf16.mxu0 0
      %3434 = vmatmul.mubr.bf16.gmra.mxu0 %v3294
      %v3435 = vpop.f32.mrf.mxu0
      %v3436 = vadd.f32 0.0, %v3435
      %v3437 = vpop.f32.mrf.mxu0
      %v3438 = vpop.f32.mrf.mxu0
      %v3439 = vadd.f32 0.0, %v3438
      %v3440 = vpop.f32.mrf.mxu0
      %3441 = vmatprep.mubr.bf16.mxu0 0
      %3442 = vmatmul.mubr.bf16.gmra.mxu0 %v3297
      %v3443 = vpop.f32.mrf.mxu0
      %v3444 = vpop.f32.mrf.mxu0
      %v3445 = vpop.f32.mrf.mxu0
      %v3446 = vadd.f32 0.0, %v3445
      %v3447 = vpop.f32.mrf.mxu0
      %3448 = vmatprep.mubr.bf16.mxu0 0
      %3449 = vmatmul.mubr.bf16.gmra.mxu0 %v3300
      %v3450 = vpop.f32.mrf.mxu0
      %v3451 = vadd.f32 0.0, %v3450
      %v3452 = vpop.f32.mrf.mxu0
      %v3453 = vpop.f32.mrf.mxu0
      %v3454 = vpop.f32.mrf.mxu0
      %3455 = vmatprep.mubr.bf16.mxu0 0
      %3456 = vmatmul.mubr.bf16.gmra.mxu0 %v3303
      %v3457 = vpop.f32.mrf.mxu0
      %v3458 = vadd.f32 0.0, %v3457
      %v3459 = vpop.f32.mrf.mxu0
      %v3460 = vpop.f32.mrf.mxu0
      %v3461 = vadd.f32 0.0, %v3460
      %v3462 = vpop.f32.mrf.mxu0
      %3463 = vmatprep.mubr.bf16.mxu0 0
      %3464 = vmatmul.mubr.bf16.gmra.mxu0 %v3306
      %v3465 = vpop.f32.mrf.mxu0
      %v3466 = vpop.f32.mrf.mxu0
      %v3467 = vpop.f32.mrf.mxu0
      %v3468 = vadd.f32 0.0, %v3467
      %v3469 = vpop.f32.mrf.mxu0
      %3470 = vmatprep.mubr.bf16.mxu0 0
      %3471 = vmatmul.mubr.bf16.gmra.mxu0 %v3309
      %v3472 = vpop.f32.mrf.mxu0
      %v3473 = vadd.f32 0.0, %v3472
      %v3474 = vpop.f32.mrf.mxu0
      %v3475 = vpop.f32.mrf.mxu0
      %v3476 = vpop.f32.mrf.mxu0
      %3477 = vmatprep.mubr.bf16.mxu0 0
      %3478 = vmatmul.mubr.bf16.gmra.mxu0 %v3312
      %v3479 = vpop.f32.mrf.mxu0
      %v3480 = vadd.f32 0.0, %v3479
      %v3481 = vpop.f32.mrf.mxu0
      %v3482 = vpop.f32.mrf.mxu0
      %v3483 = vadd.f32 0.0, %v3482
      %v3484 = vpop.f32.mrf.mxu0
      %3485 = vmatprep.mubr.bf16.mxu0 0
      %3486 = vmatmul.mubr.bf16.gmra.mxu0 %v3315
      %v3487 = vpop.f32.mrf.mxu0
      %v3488 = vpop.f32.mrf.mxu0
      %v3489 = vpop.f32.mrf.mxu0
      %v3490 = vadd.f32 0.0, %v3489
      %v3491 = vpop.f32.mrf.mxu0
      %3492 = vmatprep.mubr.bf16.mxu0 0
      %3493 = vmatmul.mubr.bf16.gmra.mxu0 %v3318
      %v3494 = vpop.f32.mrf.mxu0
      %v3495 = vadd.f32 0.0, %v3494
      %v3496 = vpop.f32.mrf.mxu0
      %v3497 = vpop.f32.mrf.mxu0
      %v3498 = vpop.f32.mrf.mxu0
      %3499 = vmatprep.mubr.bf16.mxu0 0
      %3500 = vmatmul.mubr.bf16.gmra.mxu0 %v3321
      %v3501 = vpop.f32.mrf.mxu0
      %v3502 = vadd.f32 0.0, %v3501
      %v3503 = vpop.f32.mrf.mxu0
      %v3504 = vpop.f32.mrf.mxu0
      %v3505 = vadd.f32 0.0, %v3504
      %v3506 = vpop.f32.mrf.mxu0
      %3507 = vmatprep.mubr.bf16.mxu0 0
      %3508 = vmatmul.mubr.bf16.gmra.mxu0 %v3324
      %v3509 = vpop.f32.mrf.mxu0
      %v3510 = vpop.f32.mrf.mxu0
      %v3511 = vpop.f32.mrf.mxu0
      %v3512 = vadd.f32 0.0, %v3511
      %v3513 = vpop.f32.mrf.mxu0
      %3514 = vmatprep.mubr.bf16.mxu0 0
      %3515 = vmatmul.mubr.bf16.gmra.mxu0 %v3327
      %v3516 = vpop.f32.mrf.mxu0
      %v3517 = vadd.f32 0.0, %v3516
      %v3518 = vpop.f32.mrf.mxu0
      %v3519 = vpop.f32.mrf.mxu0
      %v3520 = vpop.f32.mrf.mxu0
      %3521 = vmatprep.mubr.bf16.mxu0 0
      %3522 = vmatmul.mubr.bf16.gmra.mxu0 %v3330
      %v3523 = vpop.f32.mrf.mxu0
      %v3524 = vadd.f32 0.0, %v3523
      %v3525 = vpop.f32.mrf.mxu0
      %v3526 = vpop.f32.mrf.mxu0
      %v3527 = vadd.f32 0.0, %v3526
      %v3528 = vpop.f32.mrf.mxu0
      %3529 = vmatprep.mubr.bf16.mxu0 0
      %3530 = vmatmul.mubr.bf16.gmra.mxu0 %v3333
      %v3531 = vpop.f32.mrf.mxu0
      %v3532 = vpop.f32.mrf.mxu0
      %v3533 = vpop.f32.mrf.mxu0
      %v3534 = vadd.f32 0.0, %v3533
      %v3535 = vpop.f32.mrf.mxu0
      %3536 = vmatprep.mubr.bf16.mxu0 0
      %3537 = vmatmul.mubr.bf16.gmra.mxu0 %v3336
      %v3538 = vpop.f32.mrf.mxu0
      %v3539 = vadd.f32 0.0, %v3538
      %v3540 = vpop.f32.mrf.mxu0
      %v3541 = vpop.f32.mrf.mxu0
      %v3542 = vpop.f32.mrf.mxu0
      %3543 = vmatprep.mubr.bf16.mxu0 0
      %3544 = vmatmul.mubr.bf16.gmra.mxu0 %v3339
      %v3545 = vpop.f32.mrf.mxu0
      %v3546 = vadd.f32 0.0, %v3545
      %v3547 = vpop.f32.mrf.mxu0
      %v3548 = vpop.f32.mrf.mxu0
      %v3549 = vadd.f32 0.0, %v3548
      %v3550 = vpop.f32.mrf.mxu0
      %3551 = vmatprep.mubr.bf16.mxu0 0
      %3552 = vmatmul.mubr.bf16.gmra.mxu0 %v3342
      %v3553 = vpop.f32.mrf.mxu0
      %v3554 = vpop.f32.mrf.mxu0
      %v3555 = vpop.f32.mrf.mxu0
      %v3556 = vadd.f32 0.0, %v3555
      %v3557 = vpop.f32.mrf.mxu0
      %3558 = vmatprep.mubr.bf16.mxu0 0
      %3559 = vmatmul.mubr.bf16.gmra.mxu0 %v3345
      %v3560 = vpop.f32.mrf.mxu0
      %v3561 = vadd.f32 0.0, %v3560
      %v3562 = vpop.f32.mrf.mxu0
      %v3563 = vpop.f32.mrf.mxu0
      %v3564 = vpop.f32.mrf.mxu0
      %3565 = vmatprep.mubr.bf16.mxu0 0
      %3566 = vmatmul.mubr.bf16.gmra.mxu0 %v3348
      %v3567 = vpop.f32.mrf.mxu0
      %v3568 = vadd.f32 0.0, %v3567
      %v3569 = vpop.f32.mrf.mxu0
      %v3570 = vpop.f32.mrf.mxu0
      %v3571 = vadd.f32 0.0, %v3570
      %v3572 = vpop.f32.mrf.mxu0
      %3573 = vmatprep.mubr.bf16.mxu0 0
      %3574 = vmatmul.mubr.bf16.gmra.mxu0 %v3351
      %v3575 = vpop.f32.mrf.mxu0
      %v3576 = vpop.f32.mrf.mxu0
      %v3577 = vpop.f32.mrf.mxu0
      %v3578 = vpop.f32.mrf.mxu0
      %3579 = vmatprep.mubr.bf16.mxu0 0
      %3580 = vmatmul.mubr.bf16.gmra.mxu0 %v3354
      %v3581 = vpop.f32.mrf.mxu0
      %v3582 = vpop.f32.mrf.mxu0
      %v3583 = vpop.f32.mrf.mxu0
      %v3584 = vpop.f32.mrf.mxu0
      %3585 = vdwg.mxu0
      %v3586 = vadd.f32 %v3214, %v3402
      %v3587 = vadd.f32 %v3215, %v3407
      %v3588 = vadd.f32 %v3216, %v3414
      %v3589 = vadd.f32 %v3217, %v3417
      %v3590 = vadd.f32 %v3218, %v3424
      %v3591 = vadd.f32 %v3219, %v3429
      %v3592 = vadd.f32 %v3220, %v3436
      %v3593 = vadd.f32 %v3221, %v3439
      %v3594 = vadd.f32 %v3222, %v3446
      %v3595 = vadd.f32 %v3223, %v3451
      %v3596 = vadd.f32 %v3224, %v3458
      %v3597 = vadd.f32 %v3225, %v3461
      %v3598 = vadd.f32 %v3226, %v3468
      %v3599 = vadd.f32 %v3227, %v3473
      %v3600 = vadd.f32 %v3228, %v3480
      %v3601 = vadd.f32 %v3229, %v3483
      %v3602 = vadd.f32 %v3230, %v3490
      %v3603 = vadd.f32 %v3231, %v3495
      %v3604 = vadd.f32 %v3232, %v3502
      %v3605 = vadd.f32 %v3233, %v3505
      %v3606 = vadd.f32 %v3234, %v3512
      %v3607 = vadd.f32 %v3235, %v3517
      %v3608 = vadd.f32 %v3236, %v3524
      %v3609 = vadd.f32 %v3237, %v3527
      %v3610 = vadd.f32 %v3238, %v3534
      %v3611 = vadd.f32 %v3239, %v3539
      %v3612 = vadd.f32 %v3240, %v3546
      %v3613 = vadd.f32 %v3241, %v3549
      %v3614 = vadd.f32 %v3242, %v3556
      %v3615 = vadd.f32 %v3243, %v3561
      %v3616 = vadd.f32 %v3244, %v3568
      %v3617 = vadd.f32 %v3245, %v3571
      %s3618 = scalar_lea.vmem %s5, 24
      %v3619 = vld [vmem:[%s3618] sm:$0xf]
      %v3621 = vsel %vm1497, %v3619, 0
      %3623 = vmatprep.subr.bf16.mxu0 0
      %3624 = vmatpush1.bf16.msra.mxu0 0
      %3625 = vmatprep.subr.bf16.mxu0 0
      %3626 = vmatpush1.bf16.msra.mxu0 0
      %3627 = vmatprep.subr.bf16.mxu0 0
      %3628 = vmatpush1.bf16.msra.mxu0 0
      %3629 = vmatprep.subr.bf16.mxu0 0
      %3630 = vmatpush1.bf16.msra.mxu0 0
      %3631 = vmatprep.subr.bf16.mxu0 0
      %3632 = vmatpush1.bf16.msra.mxu0 0
      %3633 = vmatprep.subr.bf16.mxu0 0
      %3634 = vmatpush1.bf16.msra.mxu0 0
      %3635 = vmatprep.subr.bf16.mxu0 0
      %3636 = vmatpush1.bf16.msra.mxu0 0
      %3637 = vmatprep.subr.bf16.mxu0 0
      %3638 = vmatpush1.bf16.msra.mxu0 %v3621
      %3639 = vmatprep.subr.bf16.mxu0 0
      %3640 = vmatpush2.bf16.msra.mxu0 0
      %3641 = vmatprep.subr.bf16.mxu0 0
      %3642 = vmatpush2.bf16.msra.mxu0 0
      %3643 = vmatprep.subr.bf16.mxu0 0
      %3644 = vmatpush2.bf16.msra.mxu0 0
      %3645 = vmatprep.subr.bf16.mxu0 0
      %3646 = vmatpush2.bf16.msra.mxu0 0
      %3647 = vmatprep.subr.bf16.mxu0 0
      %3648 = vmatpush2.bf16.msra.mxu0 0
      %3649 = vmatprep.subr.bf16.mxu0 0
      %3650 = vmatpush2.bf16.msra.mxu0 0
      %3651 = vmatprep.subr.bf16.mxu0 0
      %3652 = vmatpush2.bf16.msra.mxu0 0
      %3653 = vmatprep.subr.bf16.mxu0 0
      %3654 = vmatpush2.bf16.msra.mxu0 0
      %3655 = vmatprep.mubr.bf16.mxu0 0
      %3656 = vmatmul.mubr.bf16.gmra.mxu0 %v1738
      %v3657 = vpop.f32.mrf.mxu0
      %v3658 = vpop.f32.mrf.mxu0
      %v3659 = vpop.f32.mrf.mxu0
      %v3660 = vpop.f32.mrf.mxu0
      %3661 = vmatprep.mubr.bf16.mxu0 0
      %3662 = vmatmul.mubr.bf16.gmra.mxu0 %v1741
      %v3663 = vpop.f32.mrf.mxu0
      %v3664 = vpop.f32.mrf.mxu0
      %v3665 = vpop.f32.mrf.mxu0
      %v3666 = vadd.f32 0.0, %v3665
      %v3667 = vpop.f32.mrf.mxu0
      %3668 = vmatprep.mubr.bf16.mxu0 0
      %3669 = vmatmul.mubr.bf16.gmra.mxu0 %v1744
      %v3670 = vpop.f32.mrf.mxu0
      %v3671 = vadd.f32 0.0, %v3670
      %v3672 = vpop.f32.mrf.mxu0
      %v3673 = vpop.f32.mrf.mxu0
      %v3674 = vpop.f32.mrf.mxu0
      %3675 = vmatprep.mubr.bf16.mxu0 0
      %3676 = vmatmul.mubr.bf16.gmra.mxu0 %v1747
      %v3677 = vpop.f32.mrf.mxu0
      %v3678 = vadd.f32 0.0, %v3677
      %v3679 = vpop.f32.mrf.mxu0
      %v3680 = vpop.f32.mrf.mxu0
      %v3681 = vadd.f32 0.0, %v3680
      %v3682 = vpop.f32.mrf.mxu0
      %3683 = vmatprep.mubr.bf16.mxu0 0
      %3684 = vmatmul.mubr.bf16.gmra.mxu0 %v1750
      %v3685 = vpop.f32.mrf.mxu0
      %v3686 = vpop.f32.mrf.mxu0
      %v3687 = vpop.f32.mrf.mxu0
      %v3688 = vadd.f32 0.0, %v3687
      %v3689 = vpop.f32.mrf.mxu0
      %3690 = vmatprep.mubr.bf16.mxu0 0
      %3691 = vmatmul.mubr.bf16.gmra.mxu0 %v1753
      %v3692 = vpop.f32.mrf.mxu0
      %v3693 = vadd.f32 0.0, %v3692
      %v3694 = vpop.f32.mrf.mxu0
      %v3695 = vpop.f32.mrf.mxu0
      %v3696 = vpop.f32.mrf.mxu0
      %3697 = vmatprep.mubr.bf16.mxu0 0
      %3698 = vmatmul.mubr.bf16.gmra.mxu0 %v1756
      %v3699 = vpop.f32.mrf.mxu0
      %v3700 = vadd.f32 0.0, %v3699
      %v3701 = vpop.f32.mrf.mxu0
      %v3702 = vpop.f32.mrf.mxu0
      %v3703 = vadd.f32 0.0, %v3702
      %v3704 = vpop.f32.mrf.mxu0
      %3705 = vmatprep.mubr.bf16.mxu0 0
      %3706 = vmatmul.mubr.bf16.gmra.mxu0 %v1759
      %v3707 = vpop.f32.mrf.mxu0
      %v3708 = vpop.f32.mrf.mxu0
      %v3709 = vpop.f32.mrf.mxu0
      %v3710 = vadd.f32 0.0, %v3709
      %v3711 = vpop.f32.mrf.mxu0
      %3712 = vmatprep.mubr.bf16.mxu0 0
      %3713 = vmatmul.mubr.bf16.gmra.mxu0 %v1762
      %v3714 = vpop.f32.mrf.mxu0
      %v3715 = vadd.f32 0.0, %v3714
      %v3716 = vpop.f32.mrf.mxu0
      %v3717 = vpop.f32.mrf.mxu0
      %v3718 = vpop.f32.mrf.mxu0
      %3719 = vmatprep.mubr.bf16.mxu0 0
      %3720 = vmatmul.mubr.bf16.gmra.mxu0 %v1765
      %v3721 = vpop.f32.mrf.mxu0
      %v3722 = vadd.f32 0.0, %v3721
      %v3723 = vpop.f32.mrf.mxu0
      %v3724 = vpop.f32.mrf.mxu0
      %v3725 = vadd.f32 0.0, %v3724
      %v3726 = vpop.f32.mrf.mxu0
      %3727 = vmatprep.mubr.bf16.mxu0 0
      %3728 = vmatmul.mubr.bf16.gmra.mxu0 %v1768
      %v3729 = vpop.f32.mrf.mxu0
      %v3730 = vpop.f32.mrf.mxu0
      %v3731 = vpop.f32.mrf.mxu0
      %v3732 = vadd.f32 0.0, %v3731
      %v3733 = vpop.f32.mrf.mxu0
      %3734 = vmatprep.mubr.bf16.mxu0 0
      %3735 = vmatmul.mubr.bf16.gmra.mxu0 %v1771
      %v3736 = vpop.f32.mrf.mxu0
      %v3737 = vadd.f32 0.0, %v3736
      %v3738 = vpop.f32.mrf.mxu0
      %v3739 = vpop.f32.mrf.mxu0
      %v3740 = vpop.f32.mrf.mxu0
      %3741 = vmatprep.mubr.bf16.mxu0 0
      %3742 = vmatmul.mubr.bf16.gmra.mxu0 %v1774
      %v3743 = vpop.f32.mrf.mxu0
      %v3744 = vadd.f32 0.0, %v3743
      %v3745 = vpop.f32.mrf.mxu0
      %v3746 = vpop.f32.mrf.mxu0
      %v3747 = vadd.f32 0.0, %v3746
      %v3748 = vpop.f32.mrf.mxu0
      %3749 = vmatprep.mubr.bf16.mxu0 0
      %3750 = vmatmul.mubr.bf16.gmra.mxu0 %v1777
      %v3751 = vpop.f32.mrf.mxu0
      %v3752 = vpop.f32.mrf.mxu0
      %v3753 = vpop.f32.mrf.mxu0
      %v3754 = vadd.f32 0.0, %v3753
      %v3755 = vpop.f32.mrf.mxu0
      %3756 = vmatprep.mubr.bf16.mxu0 0
      %3757 = vmatmul.mubr.bf16.gmra.mxu0 %v1780
      %v3758 = vpop.f32.mrf.mxu0
      %v3759 = vadd.f32 0.0, %v3758
      %v3760 = vpop.f32.mrf.mxu0
      %v3761 = vpop.f32.mrf.mxu0
      %v3762 = vpop.f32.mrf.mxu0
      %3763 = vmatprep.mubr.bf16.mxu0 0
      %3764 = vmatmul.mubr.bf16.gmra.mxu0 %v1783
      %v3765 = vpop.f32.mrf.mxu0
      %v3766 = vadd.f32 0.0, %v3765
      %v3767 = vpop.f32.mrf.mxu0
      %v3768 = vpop.f32.mrf.mxu0
      %v3769 = vadd.f32 0.0, %v3768
      %v3770 = vpop.f32.mrf.mxu0
      %3771 = vmatprep.mubr.bf16.mxu0 0
      %3772 = vmatmul.mubr.bf16.gmra.mxu0 %v1786
      %v3773 = vpop.f32.mrf.mxu0
      %v3774 = vpop.f32.mrf.mxu0
      %v3775 = vpop.f32.mrf.mxu0
      %v3776 = vadd.f32 0.0, %v3775
      %v3777 = vpop.f32.mrf.mxu0
      %3778 = vmatprep.mubr.bf16.mxu0 0
      %3779 = vmatmul.mubr.bf16.gmra.mxu0 %v1789
      %v3780 = vpop.f32.mrf.mxu0
      %v3781 = vadd.f32 0.0, %v3780
      %v3782 = vpop.f32.mrf.mxu0
      %v3783 = vpop.f32.mrf.mxu0
      %v3784 = vpop.f32.mrf.mxu0
      %3785 = vmatprep.mubr.bf16.mxu0 0
      %3786 = vmatmul.mubr.bf16.gmra.mxu0 %v1792
      %v3787 = vpop.f32.mrf.mxu0
      %v3788 = vadd.f32 0.0, %v3787
      %v3789 = vpop.f32.mrf.mxu0
      %v3790 = vpop.f32.mrf.mxu0
      %v3791 = vadd.f32 0.0, %v3790
      %v3792 = vpop.f32.mrf.mxu0
      %3793 = vmatprep.mubr.bf16.mxu0 0
      %3794 = vmatmul.mubr.bf16.gmra.mxu0 %v1795
      %v3795 = vpop.f32.mrf.mxu0
      %v3796 = vpop.f32.mrf.mxu0
      %v3797 = vpop.f32.mrf.mxu0
      %v3798 = vadd.f32 0.0, %v3797
      %v3799 = vpop.f32.mrf.mxu0
      %3800 = vmatprep.mubr.bf16.mxu0 0
      %3801 = vmatmul.mubr.bf16.gmra.mxu0 %v1798
      %v3802 = vpop.f32.mrf.mxu0
      %v3803 = vadd.f32 0.0, %v3802
      %v3804 = vpop.f32.mrf.mxu0
      %v3805 = vpop.f32.mrf.mxu0
      %v3806 = vpop.f32.mrf.mxu0
      %3807 = vmatprep.mubr.bf16.mxu0 0
      %3808 = vmatmul.mubr.bf16.gmra.mxu0 %v1801
      %v3809 = vpop.f32.mrf.mxu0
      %v3810 = vadd.f32 0.0, %v3809
      %v3811 = vpop.f32.mrf.mxu0
      %v3812 = vpop.f32.mrf.mxu0
      %v3813 = vadd.f32 0.0, %v3812
      %v3814 = vpop.f32.mrf.mxu0
      %3815 = vmatprep.mubr.bf16.mxu0 0
      %3816 = vmatmul.mubr.bf16.gmra.mxu0 %v1804
      %v3817 = vpop.f32.mrf.mxu0
      %v3818 = vpop.f32.mrf.mxu0
      %v3819 = vpop.f32.mrf.mxu0
      %v3820 = vadd.f32 0.0, %v3819
      %v3821 = vpop.f32.mrf.mxu0
      %3822 = vmatprep.mubr.bf16.mxu0 0
      %3823 = vmatmul.mubr.bf16.gmra.mxu0 %v1807
      %v3824 = vpop.f32.mrf.mxu0
      %v3825 = vadd.f32 0.0, %v3824
      %v3826 = vpop.f32.mrf.mxu0
      %v3827 = vpop.f32.mrf.mxu0
      %v3828 = vpop.f32.mrf.mxu0
      %3829 = vmatprep.mubr.bf16.mxu0 0
      %3830 = vmatmul.mubr.bf16.gmra.mxu0 %v1729
      %v3831 = vpop.f32.mrf.mxu0
      %v3832 = vadd.f32 0.0, %v3831
      %v3833 = vpop.f32.mrf.mxu0
      %v3834 = vpop.f32.mrf.mxu0
      %v3835 = vadd.f32 0.0, %v3834
      %v3836 = vpop.f32.mrf.mxu0
      %3837 = vmatprep.mubr.bf16.mxu0 0
      %3838 = vmatmul.mubr.bf16.gmra.mxu0 %v1732
      %v3839 = vpop.f32.mrf.mxu0
      %v3840 = vpop.f32.mrf.mxu0
      %v3841 = vpop.f32.mrf.mxu0
      %v3842 = vpop.f32.mrf.mxu0
      %3843 = vmatprep.mubr.bf16.mxu0 0
      %3844 = vmatmul.mubr.bf16.gmra.mxu0 %v1735
      %v3845 = vpop.f32.mrf.mxu0
      %v3846 = vpop.f32.mrf.mxu0
      %v3847 = vpop.f32.mrf.mxu0
      %v3848 = vpop.f32.mrf.mxu0
      %3849 = vdwg.mxu0
      %v3850 = vadd.f32 %v3586, %v3666
      %v3851 = vadd.f32 %v3587, %v3671
      %v3852 = vadd.f32 %v3588, %v3678
      %v3853 = vadd.f32 %v3589, %v3681
      %v3854 = vadd.f32 %v3590, %v3688
      %v3855 = vadd.f32 %v3591, %v3693
      %v3856 = vadd.f32 %v3592, %v3700
      %v3857 = vadd.f32 %v3593, %v3703
      %v3858 = vadd.f32 %v3594, %v3710
      %v3859 = vadd.f32 %v3595, %v3715
      %v3860 = vadd.f32 %v3596, %v3722
      %v3861 = vadd.f32 %v3597, %v3725
      %v3862 = vadd.f32 %v3598, %v3732
      %v3863 = vadd.f32 %v3599, %v3737
      %v3864 = vadd.f32 %v3600, %v3744
      %v3865 = vadd.f32 %v3601, %v3747
      %v3866 = vadd.f32 %v3602, %v3754
      %v3867 = vadd.f32 %v3603, %v3759
      %v3868 = vadd.f32 %v3604, %v3766
      %v3869 = vadd.f32 %v3605, %v3769
      %v3870 = vadd.f32 %v3606, %v3776
      %v3871 = vadd.f32 %v3607, %v3781
      %v3872 = vadd.f32 %v3608, %v3788
      %v3873 = vadd.f32 %v3609, %v3791
      %v3874 = vadd.f32 %v3610, %v3798
      %v3875 = vadd.f32 %v3611, %v3803
      %v3876 = vadd.f32 %v3612, %v3810
      %v3877 = vadd.f32 %v3613, %v3813
      %v3878 = vadd.f32 %v3614, %v3820
      %v3879 = vadd.f32 %v3615, %v3825
      %v3880 = vadd.f32 %v3616, %v3832
      %v3881 = vadd.f32 %v3617, %v3835
      %s3882 = scalar_lea.vmem %s5, 28
      %v3883 = vld [vmem:[%s3882] sm:$0xf]
      %v3885 = vsel %vm1497, %v3883, 0
      %3887 = vmatprep.subr.bf16.mxu0 0
      %3888 = vmatpush1.bf16.msra.mxu0 0
      %3889 = vmatprep.subr.bf16.mxu0 0
      %3890 = vmatpush1.bf16.msra.mxu0 0
      %3891 = vmatprep.subr.bf16.mxu0 0
      %3892 = vmatpush1.bf16.msra.mxu0 0
      %3893 = vmatprep.subr.bf16.mxu0 0
      %3894 = vmatpush1.bf16.msra.mxu0 0
      %3895 = vmatprep.subr.bf16.mxu0 0
      %3896 = vmatpush1.bf16.msra.mxu0 0
      %3897 = vmatprep.subr.bf16.mxu0 0
      %3898 = vmatpush1.bf16.msra.mxu0 0
      %3899 = vmatprep.subr.bf16.mxu0 0
      %3900 = vmatpush1.bf16.msra.mxu0 0
      %3901 = vmatprep.subr.bf16.mxu0 0
      %3902 = vmatpush1.bf16.msra.mxu0 %v3885
      %3903 = vmatprep.subr.bf16.mxu0 0
      %3904 = vmatpush2.bf16.msra.mxu0 0
      %3905 = vmatprep.subr.bf16.mxu0 0
      %3906 = vmatpush2.bf16.msra.mxu0 0
      %3907 = vmatprep.subr.bf16.mxu0 0
      %3908 = vmatpush2.bf16.msra.mxu0 0
      %3909 = vmatprep.subr.bf16.mxu0 0
      %3910 = vmatpush2.bf16.msra.mxu0 0
      %3911 = vmatprep.subr.bf16.mxu0 0
      %3912 = vmatpush2.bf16.msra.mxu0 0
      %3913 = vmatprep.subr.bf16.mxu0 0
      %3914 = vmatpush2.bf16.msra.mxu0 0
      %3915 = vmatprep.subr.bf16.mxu0 0
      %3916 = vmatpush2.bf16.msra.mxu0 0
      %3917 = vmatprep.subr.bf16.mxu0 0
      %3918 = vmatpush2.bf16.msra.mxu0 0
      %3919 = vmatprep.mubr.bf16.mxu0 0
      %3920 = vmatmul.mubr.bf16.gmra.mxu0 %v1426
      %v3921 = vpop.f32.mrf.mxu0
      %v3922 = vpop.f32.mrf.mxu0
      %v3923 = vpop.f32.mrf.mxu0
      %v3924 = vpop.f32.mrf.mxu0
      %3925 = vmatprep.mubr.bf16.mxu0 0
      %3926 = vmatmul.mubr.bf16.gmra.mxu0 %v1429
      %v3927 = vpop.f32.mrf.mxu0
      %v3928 = vpop.f32.mrf.mxu0
      %v3929 = vpop.f32.mrf.mxu0
      %v3930 = vadd.f32 0.0, %v3929
      %v3931 = vpop.f32.mrf.mxu0
      %3932 = vmatprep.mubr.bf16.mxu0 0
      %3933 = vmatmul.mubr.bf16.gmra.mxu0 %v1432
      %v3934 = vpop.f32.mrf.mxu0
      %v3935 = vadd.f32 0.0, %v3934
      %v3936 = vpop.f32.mrf.mxu0
      %v3937 = vpop.f32.mrf.mxu0
      %v3938 = vpop.f32.mrf.mxu0
      %3939 = vmatprep.mubr.bf16.mxu0 0
      %3940 = vmatmul.mubr.bf16.gmra.mxu0 %v1435
      %v3941 = vpop.f32.mrf.mxu0
      %v3942 = vadd.f32 0.0, %v3941
      %v3943 = vpop.f32.mrf.mxu0
      %v3944 = vpop.f32.mrf.mxu0
      %v3945 = vadd.f32 0.0, %v3944
      %v3946 = vpop.f32.mrf.mxu0
      %3947 = vmatprep.mubr.bf16.mxu0 0
      %3948 = vmatmul.mubr.bf16.gmra.mxu0 %v1438
      %v3949 = vpop.f32.mrf.mxu0
      %v3950 = vpop.f32.mrf.mxu0
      %v3951 = vpop.f32.mrf.mxu0
      %v3952 = vadd.f32 0.0, %v3951
      %v3953 = vpop.f32.mrf.mxu0
      %3954 = vmatprep.mubr.bf16.mxu0 0
      %3955 = vmatmul.mubr.bf16.gmra.mxu0 %v1441
      %v3956 = vpop.f32.mrf.mxu0
      %v3957 = vadd.f32 0.0, %v3956
      %v3958 = vpop.f32.mrf.mxu0
      %v3959 = vpop.f32.mrf.mxu0
      %v3960 = vpop.f32.mrf.mxu0
      %3961 = vmatprep.mubr.bf16.mxu0 0
      %3962 = vmatmul.mubr.bf16.gmra.mxu0 %v1444
      %v3963 = vpop.f32.mrf.mxu0
      %v3964 = vadd.f32 0.0, %v3963
      %v3965 = vpop.f32.mrf.mxu0
      %v3966 = vpop.f32.mrf.mxu0
      %v3967 = vadd.f32 0.0, %v3966
      %v3968 = vpop.f32.mrf.mxu0
      %3969 = vmatprep.mubr.bf16.mxu0 0
      %3970 = vmatmul.mubr.bf16.gmra.mxu0 %v1447
      %v3971 = vpop.f32.mrf.mxu0
      %v3972 = vpop.f32.mrf.mxu0
      %v3973 = vpop.f32.mrf.mxu0
      %v3974 = vadd.f32 0.0, %v3973
      %v3975 = vpop.f32.mrf.mxu0
      %3976 = vmatprep.mubr.bf16.mxu0 0
      %3977 = vmatmul.mubr.bf16.gmra.mxu0 %v1450
      %v3978 = vpop.f32.mrf.mxu0
      %v3979 = vadd.f32 0.0, %v3978
      %v3980 = vpop.f32.mrf.mxu0
      %v3981 = vpop.f32.mrf.mxu0
      %v3982 = vpop.f32.mrf.mxu0
      %3983 = vmatprep.mubr.bf16.mxu0 0
      %3984 = vmatmul.mubr.bf16.gmra.mxu0 %v1453
      %v3985 = vpop.f32.mrf.mxu0
      %v3986 = vadd.f32 0.0, %v3985
      %v3987 = vpop.f32.mrf.mxu0
      %v3988 = vpop.f32.mrf.mxu0
      %v3989 = vadd.f32 0.0, %v3988
      %v3990 = vpop.f32.mrf.mxu0
      %3991 = vmatprep.mubr.bf16.mxu0 0
      %3992 = vmatmul.mubr.bf16.gmra.mxu0 %v1456
      %v3993 = vpop.f32.mrf.mxu0
      %v3994 = vpop.f32.mrf.mxu0
      %v3995 = vpop.f32.mrf.mxu0
      %v3996 = vadd.f32 0.0, %v3995
      %v3997 = vpop.f32.mrf.mxu0
      %3998 = vmatprep.mubr.bf16.mxu0 0
      %3999 = vmatmul.mubr.bf16.gmra.mxu0 %v1459
      %v4000 = vpop.f32.mrf.mxu0
      %v4001 = vadd.f32 0.0, %v4000
      %v4002 = vpop.f32.mrf.mxu0
      %v4003 = vpop.f32.mrf.mxu0
      %v4004 = vpop.f32.mrf.mxu0
      %4005 = vmatprep.mubr.bf16.mxu0 0
      %4006 = vmatmul.mubr.bf16.gmra.mxu0 %v1462
      %v4007 = vpop.f32.mrf.mxu0
      %v4008 = vadd.f32 0.0, %v4007
      %v4009 = vpop.f32.mrf.mxu0
      %v4010 = vpop.f32.mrf.mxu0
      %v4011 = vadd.f32 0.0, %v4010
      %v4012 = vpop.f32.mrf.mxu0
      %4013 = vmatprep.mubr.bf16.mxu0 0
      %4014 = vmatmul.mubr.bf16.gmra.mxu0 %v1465
      %v4015 = vpop.f32.mrf.mxu0
      %v4016 = vpop.f32.mrf.mxu0
      %v4017 = vpop.f32.mrf.mxu0
      %v4018 = vadd.f32 0.0, %v4017
      %v4019 = vpop.f32.mrf.mxu0
      %4020 = vmatprep.mubr.bf16.mxu0 0
      %4021 = vmatmul.mubr.bf16.gmra.mxu0 %v1468
      %v4022 = vpop.f32.mrf.mxu0
      %v4023 = vadd.f32 0.0, %v4022
      %v4024 = vpop.f32.mrf.mxu0
      %v4025 = vpop.f32.mrf.mxu0
      %v4026 = vpop.f32.mrf.mxu0
      %4027 = vmatprep.mubr.bf16.mxu0 0
      %4028 = vmatmul.mubr.bf16.gmra.mxu0 %v1471
      %v4029 = vpop.f32.mrf.mxu0
      %v4030 = vadd.f32 0.0, %v4029
      %v4031 = vpop.f32.mrf.mxu0
      %v4032 = vpop.f32.mrf.mxu0
      %v4033 = vadd.f32 0.0, %v4032
      %v4034 = vpop.f32.mrf.mxu0
      %4035 = vmatprep.mubr.bf16.mxu0 0
      %4036 = vmatmul.mubr.bf16.gmra.mxu0 %v1474
      %v4037 = vpop.f32.mrf.mxu0
      %v4038 = vpop.f32.mrf.mxu0
      %v4039 = vpop.f32.mrf.mxu0
      %v4040 = vadd.f32 0.0, %v4039
      %v4041 = vpop.f32.mrf.mxu0
      %4042 = vmatprep.mubr.bf16.mxu0 0
      %4043 = vmatmul.mubr.bf16.gmra.mxu0 %v1477
      %v4044 = vpop.f32.mrf.mxu0
      %v4045 = vadd.f32 0.0, %v4044
      %v4046 = vpop.f32.mrf.mxu0
      %v4047 = vpop.f32.mrf.mxu0
      %v4048 = vpop.f32.mrf.mxu0
      %4049 = vmatprep.mubr.bf16.mxu0 0
      %4050 = vmatmul.mubr.bf16.gmra.mxu0 %v1480
      %v4051 = vpop.f32.mrf.mxu0
      %v4052 = vadd.f32 0.0, %v4051
      %v4053 = vpop.f32.mrf.mxu0
      %v4054 = vpop.f32.mrf.mxu0
      %v4055 = vadd.f32 0.0, %v4054
      %v4056 = vpop.f32.mrf.mxu0
      %4057 = vmatprep.mubr.bf16.mxu0 0
      %4058 = vmatmul.mubr.bf16.gmra.mxu0 %v1483
      %v4059 = vpop.f32.mrf.mxu0
      %v4060 = vpop.f32.mrf.mxu0
      %v4061 = vpop.f32.mrf.mxu0
      %v4062 = vadd.f32 0.0, %v4061
      %v4063 = vpop.f32.mrf.mxu0
      %4064 = vmatprep.mubr.bf16.mxu0 0
      %4065 = vmatmul.mubr.bf16.gmra.mxu0 %v1486
      %v4066 = vpop.f32.mrf.mxu0
      %v4067 = vadd.f32 0.0, %v4066
      %v4068 = vpop.f32.mrf.mxu0
      %v4069 = vpop.f32.mrf.mxu0
      %v4070 = vpop.f32.mrf.mxu0
      %4071 = vmatprep.mubr.bf16.mxu0 0
      %4072 = vmatmul.mubr.bf16.gmra.mxu0 %v1489
      %v4073 = vpop.f32.mrf.mxu0
      %v4074 = vadd.f32 0.0, %v4073
      %v4075 = vpop.f32.mrf.mxu0
      %v4076 = vpop.f32.mrf.mxu0
      %v4077 = vadd.f32 0.0, %v4076
      %v4078 = vpop.f32.mrf.mxu0
      %4079 = vmatprep.mubr.bf16.mxu0 0
      %4080 = vmatmul.mubr.bf16.gmra.mxu0 %v1492
      %v4081 = vpop.f32.mrf.mxu0
      %v4082 = vpop.f32.mrf.mxu0
      %v4083 = vpop.f32.mrf.mxu0
      %v4084 = vadd.f32 0.0, %v4083
      %v4085 = vpop.f32.mrf.mxu0
      %4086 = vmatprep.mubr.bf16.mxu0 0
      %4087 = vmatmul.mubr.bf16.gmra.mxu0 %v1495
      %v4088 = vpop.f32.mrf.mxu0
      %v4089 = vadd.f32 0.0, %v4088
      %v4090 = vpop.f32.mrf.mxu0
      %v4091 = vpop.f32.mrf.mxu0
      %v4092 = vpop.f32.mrf.mxu0
      %4093 = vmatprep.mubr.bf16.mxu0 0
      %4094 = vmatmul.mubr.bf16.gmra.mxu0 %v1417
      %v4095 = vpop.f32.mrf.mxu0
      %v4096 = vadd.f32 0.0, %v4095
      %v4097 = vpop.f32.mrf.mxu0
      %v4098 = vpop.f32.mrf.mxu0
      %v4099 = vadd.f32 0.0, %v4098
      %v4100 = vpop.f32.mrf.mxu0
      %4101 = vmatprep.mubr.bf16.mxu0 0
      %4102 = vmatmul.mubr.bf16.gmra.mxu0 %v1420
      %v4103 = vpop.f32.mrf.mxu0
      %v4104 = vpop.f32.mrf.mxu0
      %v4105 = vpop.f32.mrf.mxu0
      %v4106 = vpop.f32.mrf.mxu0
      %4107 = vmatprep.mubr.bf16.mxu0 0
      %4108 = vmatmul.mubr.bf16.gmra.mxu0 %v1423
      %v4109 = vpop.f32.mrf.mxu0
      %v4110 = vpop.f32.mrf.mxu0
      %v4111 = vpop.f32.mrf.mxu0
      %v4112 = vpop.f32.mrf.mxu0
      %4113 = vdwg.mxu0
      %v4114 = vadd.f32 %v3850, %v3930
      %v4115 = vadd.f32 %v3851, %v3935
      %v4116 = vadd.f32 %v3852, %v3942
      %v4117 = vadd.f32 %v3853, %v3945
      %v4118 = vadd.f32 %v3854, %v3952
      %v4119 = vadd.f32 %v3855, %v3957
      %v4120 = vadd.f32 %v3856, %v3964
      %v4121 = vadd.f32 %v3857, %v3967
      %v4122 = vadd.f32 %v3858, %v3974
      %v4123 = vadd.f32 %v3859, %v3979
      %v4124 = vadd.f32 %v3860, %v3986
      %v4125 = vadd.f32 %v3861, %v3989
      %v4126 = vadd.f32 %v3862, %v3996
      %v4127 = vadd.f32 %v3863, %v4001
      %v4128 = vadd.f32 %v3864, %v4008
      %v4129 = vadd.f32 %v3865, %v4011
      %v4130 = vadd.f32 %v3866, %v4018
      %v4131 = vadd.f32 %v3867, %v4023
      %v4132 = vadd.f32 %v3868, %v4030
      %v4133 = vadd.f32 %v3869, %v4033
      %v4134 = vadd.f32 %v3870, %v4040
      %v4135 = vadd.f32 %v3871, %v4045
      %v4136 = vadd.f32 %v3872, %v4052
      %v4137 = vadd.f32 %v3873, %v4055
      %v4138 = vadd.f32 %v3874, %v4062
      %v4139 = vadd.f32 %v3875, %v4067
      %v4140 = vadd.f32 %v3876, %v4074
      %v4141 = vadd.f32 %v3877, %v4077
      %v4142 = vadd.f32 %v3878, %v4084
      %v4143 = vadd.f32 %v3879, %v4089
      %v4144 = vadd.f32 %v3880, %v4096
      %v4145 = vadd.f32 %v3881, %v4099
      %s4146 = scalar_lea.vmem %s5, 32
      %v4147 = vld [vmem:[%s4146] sm:$0xf]
      %v4149 = vsel %vm1497, %v4147, 0
      %4151 = vmatprep.subr.bf16.mxu0 0
      %4152 = vmatpush1.bf16.msra.mxu0 0
      %4153 = vmatprep.subr.bf16.mxu0 0
      %4154 = vmatpush1.bf16.msra.mxu0 0
      %4155 = vmatprep.subr.bf16.mxu0 0
      %4156 = vmatpush1.bf16.msra.mxu0 0
      %4157 = vmatprep.subr.bf16.mxu0 0
      %4158 = vmatpush1.bf16.msra.mxu0 0
      %4159 = vmatprep.subr.bf16.mxu0 0
      %4160 = vmatpush1.bf16.msra.mxu0 0
      %4161 = vmatprep.subr.bf16.mxu0 0
      %4162 = vmatpush1.bf16.msra.mxu0 0
      %4163 = vmatprep.subr.bf16.mxu0 0
      %4164 = vmatpush1.bf16.msra.mxu0 0
      %4165 = vmatprep.subr.bf16.mxu0 0
      %4166 = vmatpush1.bf16.msra.mxu0 %v4149
      %4167 = vmatprep.subr.bf16.mxu0 0
      %4168 = vmatpush2.bf16.msra.mxu0 0
      %4169 = vmatprep.subr.bf16.mxu0 0
      %4170 = vmatpush2.bf16.msra.mxu0 0
      %4171 = vmatprep.subr.bf16.mxu0 0
      %4172 = vmatpush2.bf16.msra.mxu0 0
      %4173 = vmatprep.subr.bf16.mxu0 0
      %4174 = vmatpush2.bf16.msra.mxu0 0
      %4175 = vmatprep.subr.bf16.mxu0 0
      %4176 = vmatpush2.bf16.msra.mxu0 0
      %4177 = vmatprep.subr.bf16.mxu0 0
      %4178 = vmatpush2.bf16.msra.mxu0 0
      %4179 = vmatprep.subr.bf16.mxu0 0
      %4180 = vmatpush2.bf16.msra.mxu0 0
      %4181 = vmatprep.subr.bf16.mxu0 0
      %4182 = vmatpush2.bf16.msra.mxu0 0
      %4183 = vmatprep.mubr.bf16.mxu0 0
      %4184 = vmatmul.mubr.bf16.gmra.mxu0 %v2169
      %v4185 = vpop.f32.mrf.mxu0
      %v4186 = vpop.f32.mrf.mxu0
      %v4187 = vpop.f32.mrf.mxu0
      %v4188 = vpop.f32.mrf.mxu0
      %4189 = vmatprep.mubr.bf16.mxu0 0
      %4190 = vmatmul.mubr.bf16.gmra.mxu0 %v2172
      %v4191 = vpop.f32.mrf.mxu0
      %v4192 = vpop.f32.mrf.mxu0
      %v4193 = vpop.f32.mrf.mxu0
      %v4194 = vadd.f32 0.0, %v4193
      %v4195 = vpop.f32.mrf.mxu0
      %4196 = vmatprep.mubr.bf16.mxu0 0
      %4197 = vmatmul.mubr.bf16.gmra.mxu0 %v2175
      %v4198 = vpop.f32.mrf.mxu0
      %v4199 = vadd.f32 0.0, %v4198
      %v4200 = vpop.f32.mrf.mxu0
      %v4201 = vpop.f32.mrf.mxu0
      %v4202 = vpop.f32.mrf.mxu0
      %4203 = vmatprep.mubr.bf16.mxu0 0
      %4204 = vmatmul.mubr.bf16.gmra.mxu0 %v2178
      %v4205 = vpop.f32.mrf.mxu0
      %v4206 = vadd.f32 0.0, %v4205
      %v4207 = vpop.f32.mrf.mxu0
      %v4208 = vpop.f32.mrf.mxu0
      %v4209 = vadd.f32 0.0, %v4208
      %v4210 = vpop.f32.mrf.mxu0
      %4211 = vmatprep.mubr.bf16.mxu0 0
      %4212 = vmatmul.mubr.bf16.gmra.mxu0 %v2181
      %v4213 = vpop.f32.mrf.mxu0
      %v4214 = vpop.f32.mrf.mxu0
      %v4215 = vpop.f32.mrf.mxu0
      %v4216 = vadd.f32 0.0, %v4215
      %v4217 = vpop.f32.mrf.mxu0
      %4218 = vmatprep.mubr.bf16.mxu0 0
      %4219 = vmatmul.mubr.bf16.gmra.mxu0 %v2184
      %v4220 = vpop.f32.mrf.mxu0
      %v4221 = vadd.f32 0.0, %v4220
      %v4222 = vpop.f32.mrf.mxu0
      %v4223 = vpop.f32.mrf.mxu0
      %v4224 = vpop.f32.mrf.mxu0
      %4225 = vmatprep.mubr.bf16.mxu0 0
      %4226 = vmatmul.mubr.bf16.gmra.mxu0 %v2187
      %v4227 = vpop.f32.mrf.mxu0
      %v4228 = vadd.f32 0.0, %v4227
      %v4229 = vpop.f32.mrf.mxu0
      %v4230 = vpop.f32.mrf.mxu0
      %v4231 = vadd.f32 0.0, %v4230
      %v4232 = vpop.f32.mrf.mxu0
      %4233 = vmatprep.mubr.bf16.mxu0 0
      %4234 = vmatmul.mubr.bf16.gmra.mxu0 %v2190
      %v4235 = vpop.f32.mrf.mxu0
      %v4236 = vpop.f32.mrf.mxu0
      %v4237 = vpop.f32.mrf.mxu0
      %v4238 = vadd.f32 0.0, %v4237
      %v4239 = vpop.f32.mrf.mxu0
      %4240 = vmatprep.mubr.bf16.mxu0 0
      %4241 = vmatmul.mubr.bf16.gmra.mxu0 %v2193
      %v4242 = vpop.f32.mrf.mxu0
      %v4243 = vadd.f32 0.0, %v4242
      %v4244 = vpop.f32.mrf.mxu0
      %v4245 = vpop.f32.mrf.mxu0
      %v4246 = vpop.f32.mrf.mxu0
      %4247 = vmatprep.mubr.bf16.mxu0 0
      %4248 = vmatmul.mubr.bf16.gmra.mxu0 %v2196
      %v4249 = vpop.f32.mrf.mxu0
      %v4250 = vadd.f32 0.0, %v4249
      %v4251 = vpop.f32.mrf.mxu0
      %v4252 = vpop.f32.mrf.mxu0
      %v4253 = vadd.f32 0.0, %v4252
      %v4254 = vpop.f32.mrf.mxu0
      %4255 = vmatprep.mubr.bf16.mxu0 0
      %4256 = vmatmul.mubr.bf16.gmra.mxu0 %v2199
      %v4257 = vpop.f32.mrf.mxu0
      %v4258 = vpop.f32.mrf.mxu0
      %v4259 = vpop.f32.mrf.mxu0
      %v4260 = vadd.f32 0.0, %v4259
      %v4261 = vpop.f32.mrf.mxu0
      %4262 = vmatprep.mubr.bf16.mxu0 0
      %4263 = vmatmul.mubr.bf16.gmra.mxu0 %v2202
      %v4264 = vpop.f32.mrf.mxu0
      %v4265 = vadd.f32 0.0, %v4264
      %v4266 = vpop.f32.mrf.mxu0
      %v4267 = vpop.f32.mrf.mxu0
      %v4268 = vpop.f32.mrf.mxu0
      %4269 = vmatprep.mubr.bf16.mxu0 0
      %4270 = vmatmul.mubr.bf16.gmra.mxu0 %v2205
      %v4271 = vpop.f32.mrf.mxu0
      %v4272 = vadd.f32 0.0, %v4271
      %v4273 = vpop.f32.mrf.mxu0
      %v4274 = vpop.f32.mrf.mxu0
      %v4275 = vadd.f32 0.0, %v4274
      %v4276 = vpop.f32.mrf.mxu0
      %4277 = vmatprep.mubr.bf16.mxu0 0
      %4278 = vmatmul.mubr.bf16.gmra.mxu0 %v2208
      %v4279 = vpop.f32.mrf.mxu0
      %v4280 = vpop.f32.mrf.mxu0
      %v4281 = vpop.f32.mrf.mxu0
      %v4282 = vadd.f32 0.0, %v4281
      %v4283 = vpop.f32.mrf.mxu0
      %4284 = vmatprep.mubr.bf16.mxu0 0
      %4285 = vmatmul.mubr.bf16.gmra.mxu0 %v2211
      %v4286 = vpop.f32.mrf.mxu0
      %v4287 = vadd.f32 0.0, %v4286
      %v4288 = vpop.f32.mrf.mxu0
      %v4289 = vpop.f32.mrf.mxu0
      %v4290 = vpop.f32.mrf.mxu0
      %4291 = vmatprep.mubr.bf16.mxu0 0
      %4292 = vmatmul.mubr.bf16.gmra.mxu0 %v2214
      %v4293 = vpop.f32.mrf.mxu0
      %v4294 = vadd.f32 0.0, %v4293
      %v4295 = vpop.f32.mrf.mxu0
      %v4296 = vpop.f32.mrf.mxu0
      %v4297 = vadd.f32 0.0, %v4296
      %v4298 = vpop.f32.mrf.mxu0
      %4299 = vmatprep.mubr.bf16.mxu0 0
      %4300 = vmatmul.mubr.bf16.gmra.mxu0 %v2217
      %v4301 = vpop.f32.mrf.mxu0
      %v4302 = vpop.f32.mrf.mxu0
      %v4303 = vpop.f32.mrf.mxu0
      %v4304 = vadd.f32 0.0, %v4303
      %v4305 = vpop.f32.mrf.mxu0
      %4306 = vmatprep.mubr.bf16.mxu0 0
      %4307 = vmatmul.mubr.bf16.gmra.mxu0 %v2220
      %v4308 = vpop.f32.mrf.mxu0
      %v4309 = vadd.f32 0.0, %v4308
      %v4310 = vpop.f32.mrf.mxu0
      %v4311 = vpop.f32.mrf.mxu0
      %v4312 = vpop.f32.mrf.mxu0
      %4313 = vmatprep.mubr.bf16.mxu0 0
      %4314 = vmatmul.mubr.bf16.gmra.mxu0 %v2223
      %v4315 = vpop.f32.mrf.mxu0
      %v4316 = vadd.f32 0.0, %v4315
      %v4317 = vpop.f32.mrf.mxu0
      %v4318 = vpop.f32.mrf.mxu0
      %v4319 = vadd.f32 0.0, %v4318
      %v4320 = vpop.f32.mrf.mxu0
      %4321 = vmatprep.mubr.bf16.mxu0 0
      %4322 = vmatmul.mubr.bf16.gmra.mxu0 %v2226
      %v4323 = vpop.f32.mrf.mxu0
      %v4324 = vpop.f32.mrf.mxu0
      %v4325 = vpop.f32.mrf.mxu0
      %v4326 = vadd.f32 0.0, %v4325
      %v4327 = vpop.f32.mrf.mxu0
      %4328 = vmatprep.mubr.bf16.mxu0 0
      %4329 = vmatmul.mubr.bf16.gmra.mxu0 %v2229
      %v4330 = vpop.f32.mrf.mxu0
      %v4331 = vadd.f32 0.0, %v4330
      %v4332 = vpop.f32.mrf.mxu0
      %v4333 = vpop.f32.mrf.mxu0
      %v4334 = vpop.f32.mrf.mxu0
      %4335 = vmatprep.mubr.bf16.mxu0 0
      %4336 = vmatmul.mubr.bf16.gmra.mxu0 %v2232
      %v4337 = vpop.f32.mrf.mxu0
      %v4338 = vadd.f32 0.0, %v4337
      %v4339 = vpop.f32.mrf.mxu0
      %v4340 = vpop.f32.mrf.mxu0
      %v4341 = vadd.f32 0.0, %v4340
      %v4342 = vpop.f32.mrf.mxu0
      %4343 = vmatprep.mubr.bf16.mxu0 0
      %4344 = vmatmul.mubr.bf16.gmra.mxu0 %v2235
      %v4345 = vpop.f32.mrf.mxu0
      %v4346 = vpop.f32.mrf.mxu0
      %v4347 = vpop.f32.mrf.mxu0
      %v4348 = vadd.f32 0.0, %v4347
      %v4349 = vpop.f32.mrf.mxu0
      %4350 = vmatprep.mubr.bf16.mxu0 0
      %4351 = vmatmul.mubr.bf16.gmra.mxu0 %v2238
      %v4352 = vpop.f32.mrf.mxu0
      %v4353 = vadd.f32 0.0, %v4352
      %v4354 = vpop.f32.mrf.mxu0
      %v4355 = vpop.f32.mrf.mxu0
      %v4356 = vpop.f32.mrf.mxu0
      %4357 = vmatprep.mubr.bf16.mxu0 0
      %4358 = vmatmul.mubr.bf16.gmra.mxu0 %v2160
      %v4359 = vpop.f32.mrf.mxu0
      %v4360 = vadd.f32 0.0, %v4359
      %v4361 = vpop.f32.mrf.mxu0
      %v4362 = vpop.f32.mrf.mxu0
      %v4363 = vadd.f32 0.0, %v4362
      %v4364 = vpop.f32.mrf.mxu0
      %4365 = vmatprep.mubr.bf16.mxu0 0
      %4366 = vmatmul.mubr.bf16.gmra.mxu0 %v2163
      %v4367 = vpop.f32.mrf.mxu0
      %v4368 = vpop.f32.mrf.mxu0
      %v4369 = vpop.f32.mrf.mxu0
      %v4370 = vpop.f32.mrf.mxu0
      %4371 = vmatprep.mubr.bf16.mxu0 0
      %4372 = vmatmul.mubr.bf16.gmra.mxu0 %v2166
      %v4373 = vpop.f32.mrf.mxu0
      %v4374 = vpop.f32.mrf.mxu0
      %v4375 = vpop.f32.mrf.mxu0
      %v4376 = vpop.f32.mrf.mxu0
      %4377 = vdwg.mxu0
      %v4378 = vadd.f32 %v4114, %v4194
      %v4379 = vadd.f32 %v4115, %v4199
      %v4380 = vadd.f32 %v4116, %v4206
      %v4381 = vadd.f32 %v4117, %v4209
      %v4382 = vadd.f32 %v4118, %v4216
      %v4383 = vadd.f32 %v4119, %v4221
      %v4384 = vadd.f32 %v4120, %v4228
      %v4385 = vadd.f32 %v4121, %v4231
      %v4386 = vadd.f32 %v4122, %v4238
      %v4387 = vadd.f32 %v4123, %v4243
      %v4388 = vadd.f32 %v4124, %v4250
      %v4389 = vadd.f32 %v4125, %v4253
      %v4390 = vadd.f32 %v4126, %v4260
      %v4391 = vadd.f32 %v4127, %v4265
      %v4392 = vadd.f32 %v4128, %v4272
      %v4393 = vadd.f32 %v4129, %v4275
      %v4394 = vadd.f32 %v4130, %v4282
      %v4395 = vadd.f32 %v4131, %v4287
      %v4396 = vadd.f32 %v4132, %v4294
      %v4397 = vadd.f32 %v4133, %v4297
      %v4398 = vadd.f32 %v4134, %v4304
      %v4399 = vadd.f32 %v4135, %v4309
      %v4400 = vadd.f32 %v4136, %v4316
      %v4401 = vadd.f32 %v4137, %v4319
      %v4402 = vadd.f32 %v4138, %v4326
      %v4403 = vadd.f32 %v4139, %v4331
      %v4404 = vadd.f32 %v4140, %v4338
      %v4405 = vadd.f32 %v4141, %v4341
      %v4406 = vadd.f32 %v4142, %v4348
      %v4407 = vadd.f32 %v4143, %v4353
      %v4408 = vadd.f32 %v4144, %v4360
      %v4409 = vadd.f32 %v4145, %v4363
      %v4410 = vld [vmem:[%s6] sm:$0x1]
      %v4412 = vlaneseq
      %v4413 = vshrl.u32 %v4412, 7
      %v4414 = vsub.s32 0, %v4413
      %v4415 = vrot.slane %v4410, %v4414
      %v4417 = vadd.f32 %v4378, %v4415
      %v4418 = vadd.f32 %v4379, %v4415
      %v4419 = vadd.f32 %v4380, %v4415
      %v4420 = vadd.f32 %v4381, %v4415
      %v4421 = vadd.f32 %v4382, %v4415
      %v4422 = vadd.f32 %v4383, %v4415
      %v4423 = vadd.f32 %v4384, %v4415
      %v4424 = vadd.f32 %v4385, %v4415
      %v4425 = vadd.f32 %v4386, %v4415
      %v4426 = vadd.f32 %v4387, %v4415
      %v4427 = vadd.f32 %v4388, %v4415
      %v4428 = vadd.f32 %v4389, %v4415
      %v4429 = vadd.f32 %v4390, %v4415
      %v4430 = vadd.f32 %v4391, %v4415
      %v4431 = vadd.f32 %v4392, %v4415
      %v4432 = vadd.f32 %v4393, %v4415
      %v4433 = vadd.f32 %v4394, %v4415
      %v4434 = vadd.f32 %v4395, %v4415
      %v4435 = vadd.f32 %v4396, %v4415
      %v4436 = vadd.f32 %v4397, %v4415
      %v4437 = vadd.f32 %v4398, %v4415
      %v4438 = vadd.f32 %v4399, %v4415
      %v4439 = vadd.f32 %v4400, %v4415
      %v4440 = vadd.f32 %v4401, %v4415
      %v4441 = vadd.f32 %v4402, %v4415
      %v4442 = vadd.f32 %v4403, %v4415
      %v4443 = vadd.f32 %v4404, %v4415
      %v4444 = vadd.f32 %v4405, %v4415
      %v4445 = vadd.f32 %v4406, %v4415
      %v4446 = vadd.f32 %v4407, %v4415
      %v4447 = vadd.f32 %v4408, %v4415
      %v4448 = vadd.f32 %v4409, %v4415
      %v4449 = vsub.f32 0.0, %v4417
      %v4450 = vsub.f32 0.0, %v4418
      %v4451 = vsub.f32 0.0, %v4419
      %v4452 = vsub.f32 0.0, %v4420
      %v4453 = vsub.f32 0.0, %v4421
      %v4454 = vsub.f32 0.0, %v4422
      %v4455 = vsub.f32 0.0, %v4423
      %v4456 = vsub.f32 0.0, %v4424
      %v4457 = vsub.f32 0.0, %v4425
      %v4458 = vsub.f32 0.0, %v4426
      %v4459 = vsub.f32 0.0, %v4427
      %v4460 = vsub.f32 0.0, %v4428
      %v4461 = vsub.f32 0.0, %v4429
      %v4462 = vsub.f32 0.0, %v4430
      %v4463 = vsub.f32 0.0, %v4431
      %v4464 = vsub.f32 0.0, %v4432
      %v4465 = vsub.f32 0.0, %v4433
      %v4466 = vsub.f32 0.0, %v4434
      %v4467 = vsub.f32 0.0, %v4435
      %v4468 = vsub.f32 0.0, %v4436
      %v4469 = vsub.f32 0.0, %v4437
      %v4470 = vsub.f32 0.0, %v4438
      %v4471 = vsub.f32 0.0, %v4439
      %v4472 = vsub.f32 0.0, %v4440
      %v4473 = vsub.f32 0.0, %v4441
      %v4474 = vsub.f32 0.0, %v4442
      %v4475 = vsub.f32 0.0, %v4443
      %v4476 = vsub.f32 0.0, %v4444
      %v4477 = vsub.f32 0.0, %v4445
      %v4478 = vsub.f32 0.0, %v4446
      %v4479 = vsub.f32 0.0, %v4447
      %v4480 = vsub.f32 0.0, %v4448
      %v4481 = vmul.f32 %v4449, 1.442695
      %v4482 = vpow.pop %v4481
      %v4483 = vmul.f32 %v4450, 1.442695
      %v4484 = vpow.pop %v4483
      %v4485 = vmul.f32 %v4451, 1.442695
      %v4486 = vpow.pop %v4485
      %v4487 = vmul.f32 %v4452, 1.442695
      %v4488 = vpow.pop %v4487
      %v4489 = vmul.f32 %v4453, 1.442695
      %v4490 = vpow.pop %v4489
      %v4491 = vmul.f32 %v4454, 1.442695
      %v4492 = vpow.pop %v4491
      %v4493 = vmul.f32 %v4455, 1.442695
      %v4494 = vpow.pop %v4493
      %v4495 = vmul.f32 %v4456, 1.442695
      %v4496 = vpow.pop %v4495
      %v4497 = vmul.f32 %v4457, 1.442695
      %v4498 = vpow.pop %v4497
      %v4499 = vmul.f32 %v4458, 1.442695
      %v4500 = vpow.pop %v4499
      %v4501 = vmul.f32 %v4459, 1.442695
      %v4502 = vpow.pop %v4501
      %v4503 = vmul.f32 %v4460, 1.442695
      %v4504 = vpow.pop %v4503
      %v4505 = vmul.f32 %v4461, 1.442695
      %v4506 = vpow.pop %v4505
      %v4507 = vmul.f32 %v4462, 1.442695
      %v4508 = vpow.pop %v4507
      %v4509 = vmul.f32 %v4463, 1.442695
      %v4510 = vpow.pop %v4509
      %v4511 = vmul.f32 %v4464, 1.442695
      %v4512 = vpow.pop %v4511
      %v4513 = vmul.f32 %v4465, 1.442695
      %v4514 = vpow.pop %v4513
      %v4515 = vmul.f32 %v4466, 1.442695
      %v4516 = vpow.pop %v4515
      %v4517 = vmul.f32 %v4467, 1.442695
      %v4518 = vpow.pop %v4517
      %v4519 = vmul.f32 %v4468, 1.442695
      %v4520 = vpow.pop %v4519
      %v4521 = vmul.f32 %v4469, 1.442695
      %v4522 = vpow.pop %v4521
      %v4523 = vmul.f32 %v4470, 1.442695
      %v4524 = vpow.pop %v4523
      %v4525 = vmul.f32 %v4471, 1.442695
      %v4526 = vpow.pop %v4525
      %v4527 = vmul.f32 %v4472, 1.442695
      %v4528 = vpow.pop %v4527
      %v4529 = vmul.f32 %v4473, 1.442695
      %v4530 = vpow.pop %v4529
      %v4531 = vmul.f32 %v4474, 1.442695
      %v4532 = vpow.pop %v4531
      %v4533 = vmul.f32 %v4475, 1.442695
      %v4534 = vpow.pop %v4533
      %v4535 = vmul.f32 %v4476, 1.442695
      %v4536 = vpow.pop %v4535
      %v4537 = vmul.f32 %v4477, 1.442695
      %v4538 = vpow.pop %v4537
      %v4539 = vmul.f32 %v4478, 1.442695
      %v4540 = vpow.pop %v4539
      %v4541 = vmul.f32 %v4479, 1.442695
      %v4542 = vpow.pop %v4541
      %v4543 = vmul.f32 %v4480, 1.442695
      %v4544 = vpow.pop %v4543
      %v4545 = vadd.f32 %v4482, 1.0
      %v4546 = vadd.f32 %v4484, 1.0
      %v4547 = vadd.f32 %v4486, 1.0
      %v4548 = vadd.f32 %v4488, 1.0
      %v4549 = vadd.f32 %v4490, 1.0
      %v4550 = vadd.f32 %v4492, 1.0
      %v4551 = vadd.f32 %v4494, 1.0
      %v4552 = vadd.f32 %v4496, 1.0
      %v4553 = vadd.f32 %v4498, 1.0
      %v4554 = vadd.f32 %v4500, 1.0
      %v4555 = vadd.f32 %v4502, 1.0
      %v4556 = vadd.f32 %v4504, 1.0
      %v4557 = vadd.f32 %v4506, 1.0
      %v4558 = vadd.f32 %v4508, 1.0
      %v4559 = vadd.f32 %v4510, 1.0
      %v4560 = vadd.f32 %v4512, 1.0
      %v4561 = vadd.f32 %v4514, 1.0
      %v4562 = vadd.f32 %v4516, 1.0
      %v4563 = vadd.f32 %v4518, 1.0
      %v4564 = vadd.f32 %v4520, 1.0
      %v4565 = vadd.f32 %v4522, 1.0
      %v4566 = vadd.f32 %v4524, 1.0
      %v4567 = vadd.f32 %v4526, 1.0
      %v4568 = vadd.f32 %v4528, 1.0
      %v4569 = vadd.f32 %v4530, 1.0
      %v4570 = vadd.f32 %v4532, 1.0
      %v4571 = vadd.f32 %v4534, 1.0
      %v4572 = vadd.f32 %v4536, 1.0
      %v4573 = vadd.f32 %v4538, 1.0
      %v4574 = vadd.f32 %v4540, 1.0
      %v4575 = vadd.f32 %v4542, 1.0
      %v4576 = vadd.f32 %v4544, 1.0
      %v4577 = vrcp.pop %v4545
      %v4578 = vrcp.pop %v4546
      %v4579 = vrcp.pop %v4547
      %v4580 = vrcp.pop %v4548
      %v4581 = vrcp.pop %v4549
      %v4582 = vrcp.pop %v4550
      %v4583 = vrcp.pop %v4551
      %v4584 = vrcp.pop %v4552
      %v4585 = vrcp.pop %v4553
      %v4586 = vrcp.pop %v4554
      %v4587 = vrcp.pop %v4555
      %v4588 = vrcp.pop %v4556
      %v4589 = vrcp.pop %v4557
      %v4590 = vrcp.pop %v4558
      %v4591 = vrcp.pop %v4559
      %v4592 = vrcp.pop %v4560
      %v4593 = vrcp.pop %v4561
      %v4594 = vrcp.pop %v4562
      %v4595 = vrcp.pop %v4563
      %v4596 = vrcp.pop %v4564
      %v4597 = vrcp.pop %v4565
      %v4598 = vrcp.pop %v4566
      %v4599 = vrcp.pop %v4567
      %v4600 = vrcp.pop %v4568
      %v4601 = vrcp.pop %v4569
      %v4602 = vrcp.pop %v4570
      %v4603 = vrcp.pop %v4571
      %v4604 = vrcp.pop %v4572
      %v4605 = vrcp.pop %v4573
      %v4606 = vrcp.pop %v4574
      %v4607 = vrcp.pop %v4575
      %v4608 = vrcp.pop %v4576
      %v4609 = vmul.f32 %v4417, %v4577
      %v4610 = vmul.f32 %v4418, %v4578
      %v4611 = vmul.f32 %v4419, %v4579
      %v4612 = vmul.f32 %v4420, %v4580
      %v4613 = vmul.f32 %v4421, %v4581
      %v4614 = vmul.f32 %v4422, %v4582
      %v4615 = vmul.f32 %v4423, %v4583
      %v4616 = vmul.f32 %v4424, %v4584
      %v4617 = vmul.f32 %v4425, %v4585
      %v4618 = vmul.f32 %v4426, %v4586
      %v4619 = vmul.f32 %v4427, %v4587
      %v4620 = vmul.f32 %v4428, %v4588
      %v4621 = vmul.f32 %v4429, %v4589
      %v4622 = vmul.f32 %v4430, %v4590
      %v4623 = vmul.f32 %v4431, %v4591
      %v4624 = vmul.f32 %v4432, %v4592
      %v4625 = vmul.f32 %v4433, %v4593
      %v4626 = vmul.f32 %v4434, %v4594
      %v4627 = vmul.f32 %v4435, %v4595
      %v4628 = vmul.f32 %v4436, %v4596
      %v4629 = vmul.f32 %v4437, %v4597
      %v4630 = vmul.f32 %v4438, %v4598
      %v4631 = vmul.f32 %v4439, %v4599
      %v4632 = vmul.f32 %v4440, %v4600
      %v4633 = vmul.f32 %v4441, %v4601
      %v4634 = vmul.f32 %v4442, %v4602
      %v4635 = vmul.f32 %v4443, %v4603
      %v4636 = vmul.f32 %v4444, %v4604
      %v4637 = vmul.f32 %v4445, %v4605
      %v4638 = vmul.f32 %v4446, %v4606
      %v4639 = vmul.f32 %v4447, %v4607
      %v4640 = vmul.f32 %v4448, %v4608
      %s4641 = scalar_lea.vmem [#allocation2], 16
      %v4642 = vld [vmem:[%s4641] sm:$0xff]
      %v4643 = vld [vmem:[%s4641 + $0x8] sm:$0xff]
      %v4644 = vld [vmem:[%s4641 + $0x10] sm:$0xff]
      %v4645 = vld [vmem:[%s4641 + $0x18] sm:$0xff]
      %v4646 = vld [vmem:[%s4641 + $0x20] sm:$0xff]
      %v4647 = vld [vmem:[%s4641 + $0x28] sm:$0xff]
      %v4648 = vld [vmem:[%s4641 + $0x30] sm:$0xff]
      %v4649 = vld [vmem:[%s4641 + $0x38] sm:$0xff]
      %v4650 = vld [vmem:[%s4641 + $0x40] sm:$0xff]
      %v4651 = vld [vmem:[%s4641 + $0x48] sm:$0xff]
      %v4652 = vld [vmem:[%s4641 + $0x50] sm:$0xff]
      %v4653 = vld [vmem:[%s4641 + $0x58] sm:$0xff]
      %v4654 = vld [vmem:[%s4641 + $0x60] sm:$0xff]
      %v4655 = vld [vmem:[%s4641 + $0x68] sm:$0xff]
      %v4656 = vld [vmem:[%s4641 + $0x70] sm:$0xff]
      %v4657 = vld [vmem:[%s4641 + $0x78] sm:$0xff]
      %v4658 = vld [vmem:[%s4641 + $0x80] sm:$0xff]
      %v4659 = vld [vmem:[%s4641 + $0x88] sm:$0xff]
      %v4660 = vld [vmem:[%s4641 + $0x90] sm:$0xff]
      %v4661 = vld [vmem:[%s4641 + $0x98] sm:$0xff]
      %v4662 = vld [vmem:[%s4641 + $0xa0] sm:$0xff]
      %v4663 = vld [vmem:[%s4641 + $0xa8] sm:$0xff]
      %v4664 = vld [vmem:[%s4641 + $0xb0] sm:$0xff]
      %v4665 = vld [vmem:[%s4641 + $0xb8] sm:$0xff]
      %v4666 = vld [vmem:[%s4641 + $0xc0] sm:$0xff]
      %v4667 = vld [vmem:[%s4641 + $0xc8] sm:$0xff]
      %v4668 = vld [vmem:[%s4641 + $0xd0] sm:$0xff]
      %v4669 = vld [vmem:[%s4641 + $0xd8] sm:$0xff]
      %v4670 = vld [vmem:[%s4641 + $0xe0] sm:$0xff]
      %v4671 = vld [vmem:[%s4641 + $0xe8] sm:$0xff]
      %v4672 = vld [vmem:[%s4641 + $0xf0] sm:$0xff]
      %v4673 = vld [vmem:[%s4641 + $0xf8] sm:$0xff]
      %v4674 = vadd.f32 %v4609, %v4642
      %v4675 = vadd.f32 %v4610, %v4643
      %v4676 = vadd.f32 %v4611, %v4644
      %v4677 = vadd.f32 %v4612, %v4645
      %v4678 = vadd.f32 %v4613, %v4646
      %v4679 = vadd.f32 %v4614, %v4647
      %v4680 = vadd.f32 %v4615, %v4648
      %v4681 = vadd.f32 %v4616, %v4649
      %v4682 = vadd.f32 %v4617, %v4650
      %v4683 = vadd.f32 %v4618, %v4651
      %v4684 = vadd.f32 %v4619, %v4652
      %v4685 = vadd.f32 %v4620, %v4653
      %v4686 = vadd.f32 %v4621, %v4654
      %v4687 = vadd.f32 %v4622, %v4655
      %v4688 = vadd.f32 %v4623, %v4656
      %v4689 = vadd.f32 %v4624, %v4657
      %v4690 = vadd.f32 %v4625, %v4658
      %v4691 = vadd.f32 %v4626, %v4659
      %v4692 = vadd.f32 %v4627, %v4660
      %v4693 = vadd.f32 %v4628, %v4661
      %v4694 = vadd.f32 %v4629, %v4662
      %v4695 = vadd.f32 %v4630, %v4663
      %v4696 = vadd.f32 %v4631, %v4664
      %v4697 = vadd.f32 %v4632, %v4665
      %v4698 = vadd.f32 %v4633, %v4666
      %v4699 = vadd.f32 %v4634, %v4667
      %v4700 = vadd.f32 %v4635, %v4668
      %v4701 = vadd.f32 %v4636, %v4669
      %v4702 = vadd.f32 %v4637, %v4670
      %v4703 = vadd.f32 %v4638, %v4671
      %v4704 = vadd.f32 %v4639, %v4672
      %v4705 = vadd.f32 %v4640, %v4673
      %4706 = vst.msk [vmem:[%s473] sm:$0xff] %vm992, %v4674
      %4707 = vst.msk [vmem:[%s473 + $0x8] sm:$0xff] %vm992, %v4675
      %4708 = vst.msk [vmem:[%s473 + $0x10] sm:$0xff] %vm992, %v4676
      %4709 = vst.msk [vmem:[%s473 + $0x18] sm:$0xff] %vm992, %v4677
      %4710 = vst.msk [vmem:[%s473 + $0x20] sm:$0xff] %vm992, %v4678
      %4711 = vst.msk [vmem:[%s473 + $0x28] sm:$0xff] %vm992, %v4679
      %4712 = vst.msk [vmem:[%s473 + $0x30] sm:$0xff] %vm992, %v4680
      %4713 = vst.msk [vmem:[%s473 + $0x38] sm:$0xff] %vm992, %v4681
      %4714 = vst.msk [vmem:[%s473 + $0x40] sm:$0xff] %vm992, %v4682
      %4715 = vst.msk [vmem:[%s473 + $0x48] sm:$0xff] %vm992, %v4683
      %4716 = vst.msk [vmem:[%s473 + $0x50] sm:$0xff] %vm992, %v4684
      %4717 = vst.msk [vmem:[%s473 + $0x58] sm:$0xff] %vm992, %v4685
      %4718 = vst.msk [vmem:[%s473 + $0x60] sm:$0xff] %vm992, %v4686
      %4719 = vst.msk [vmem:[%s473 + $0x68] sm:$0xff] %vm992, %v4687
      %4720 = vst.msk [vmem:[%s473 + $0x70] sm:$0xff] %vm992, %v4688
      %4721 = vst.msk [vmem:[%s473 + $0x78] sm:$0xff] %vm992, %v4689
      %4722 = vst.msk [vmem:[%s473 + $0x80] sm:$0xff] %vm992, %v4690
      %4723 = vst.msk [vmem:[%s473 + $0x88] sm:$0xff] %vm992, %v4691
      %4724 = vst.msk [vmem:[%s473 + $0x90] sm:$0xff] %vm992, %v4692
      %4725 = vst.msk [vmem:[%s473 + $0x98] sm:$0xff] %vm992, %v4693
      %4726 = vst.msk [vmem:[%s473 + $0xa0] sm:$0xff] %vm992, %v4694
      %4727 = vst.msk [vmem:[%s473 + $0xa8] sm:$0xff] %vm992, %v4695
      %4728 = vst.msk [vmem:[%s473 + $0xb0] sm:$0xff] %vm992, %v4696
      %4729 = vst.msk [vmem:[%s473 + $0xb8] sm:$0xff] %vm992, %v4697
      %4730 = vst.msk [vmem:[%s473 + $0xc0] sm:$0xff] %vm992, %v4698
      %4731 = vst.msk [vmem:[%s473 + $0xc8] sm:$0xff] %vm992, %v4699
      %4732 = vst.msk [vmem:[%s473 + $0xd0] sm:$0xff] %vm992, %v4700
      %4733 = vst.msk [vmem:[%s473 + $0xd8] sm:$0xff] %vm992, %v4701
      %4734 = vst.msk [vmem:[%s473 + $0xe0] sm:$0xff] %vm992, %v4702
      %4735 = vst.msk [vmem:[%s473 + $0xe8] sm:$0xff] %vm992, %v4703
      %4736 = vst.msk [vmem:[%s473 + $0xf0] sm:$0xff] %vm992, %v4704
      %4737 = vst.msk [vmem:[%s473 + $0xf8] sm:$0xff] %vm992, %v4705
      %s4738 = smul.u32 16, %s23
      %p4739 = scmp.lt.s32.totalorder %s22, 1
      %s4740 = scalar_select %p4739, %s22, 1
      %p4741 = scmp.lt.s32.totalorder %s4738, 15
      %s4742 = scalar_select %p4741, %s4738, 15
      %s4743 = smul.addr %s4742, 2
      %s4744 = smul.addr %s4740, 32
      %s4745 = sadd.s32 %s4743, %s4744
      %s4746 = smul.addr %s4745, 8
      %s4747 = scalar_lea.vmem %s7, %s4746
      // Predicated region
      $region49: #{c1_forward.1} parent=47 // pred_check
        %p4748 = pneg %p242
      $region50: #{c1_forward.1} parent=47 // pred_check_branch
        %4750 = sbr.rel (%p4748) target = $region52
      $region51: #{c1_forward.1} parent=47 // pred_region
        %s4751 = smul.u32 16, %s23
      $region52: #{c1_forward.1} parent=47 // pred_fallthru
        _
    $region48: #{c1_forward.1} parent=5 // pred_fallthru
      _
    %p4752 = scmp.le.s32.totalorder 2, %s13
    // Predicated region
    $region53: #{c1_forward.1} parent=5 // pred_check
      %p4753 = pneg %p4752
    $region54: #{c1_forward.1} parent=5 // pred_check_branch
      %4755 = sbr.rel (%p4753) target = $region56
    $region55: #{c1_forward.1} parent=5 // pred_region
      %s4756 = ssub.s32 %s13, 2
      // Predicated region
      $region57: #{c1_forward.1} parent=55 // pred_check
        %p4757 = pneg %p248
      $region58: #{c1_forward.1} parent=55 // pred_check_branch
        %4759 = sbr.rel (%p4757) target = $region60
      $region59: #{c1_forward.1} parent=55 // pred_region
        %s4760 = smul.u32 16, %s25
        %p4761 = scmp.lt.s32.totalorder %s24, 1
        %s4762 = scalar_select %p4761, %s24, 1
        %p4763 = scmp.lt.s32.totalorder %s4760, 15
        %s4764 = scalar_select %p4763, %s4760, 15
        %s4765 = smul.addr %s4764, 2
        %s4766 = smul.addr %s4762, 32
        %s4767 = sadd.s32 %s4765, %s4766
        %s4768 = smul.addr %s4767, 8
        %s4769 = scalar_lea.vmem %s7, %s4768
      $region60: #{c1_forward.1} parent=55 // pred_fallthru
        _
    $region56: #{c1_forward.1} parent=5 // pred_fallthru
      _
  $region6: #{c1_forward.1} parent=0 // loop_footer
    %s17 = sadd.s32 1, %s13
  $region7: #{c1_forward.1} parent=0 // loop_footer_branch
    %12 = sbr.rel target = $region3
  $region8: #{c1_forward.1} parent=0 // loop_exit
    _

</llo_original>
